<compile_context>
chip_gen: v7x
topology: tpu7x:2x2x1
jax: 0.10.0
libtpu: 0.0.40
codegen_flags: <defaults>
</compile_context>

<pallas_src>
import jax
import jax.numpy as jnp
from jax.experimental import pallas as pl
from jax.experimental.pallas import tpu as pltpu

MID = 256          # mid_channels per branch
MID2 = 2 * MID     # fused mid channels (both branches share one stage-1 matmul)
NUM_DIR = 8        # num_directions
NUM_MASK = 2       # num_masks
BN_EPS = 1e-5


def boundary_kernel(x_ref, w1t_ref, b_ref, w2m_ref, w2d_ref, mask_ref, dir_ref):
    """One (batch image, HW-tile) step.

    x_ref    : (1, C, tile_hw)        input pixels, lane-dense along H*W
    w1t_ref  : (MID2, C)              BN-folded fused stage-1 weights (transposed)
    b_ref    : (MID2, 1)              BN-folded bias
    w2m_ref  : (NUM_MASK, MID)        boundary-branch stage-2 weights (transposed)
    w2d_ref  : (NUM_DIR, MID)         direction-branch stage-2 weights (transposed)
    mask_ref : (1, NUM_MASK, tile_hw)
    dir_ref  : (1, NUM_DIR, tile_hw)
    """
    x = x_ref[0]                                                        # (C, tile_hw)
    h = jnp.dot(w1t_ref[...], x, preferred_element_type=jnp.float32)   # (MID2, tile_hw)
    h = jnp.maximum(h + b_ref[...], 0.0)
    # Static, 256-aligned sublane slices of h feed the two small stage-2 matmuls
    # (no block-diagonal zero-padding, no zero output rows).
    mask_ref[0] = jnp.dot(w2m_ref[...], h[:MID], preferred_element_type=jnp.float32)
    dir_ref[0] = jnp.dot(w2d_ref[...], h[MID:], preferred_element_type=jnp.float32)


def _pick_tile_hw(hw, n_batch, max_tile_hw):
    """Largest multiple of 128 <= max_tile_hw that divides hw (no ragged tail)."""
    if hw % 128 != 0:
        return hw, 1                       # single full (lane-masked) block fallback
    tile = min(max_tile_hw, hw)
    tile -= tile % 128
    while hw % tile != 0:
        tile -= 128
    # v7x megacore: make sure the "parallel" grid has >= 2 steps when possible.
    if n_batch * (hw // tile) < 2 and hw >= 256:
        tile = max(128, (hw // 2 // 128) * 128)
        while hw % tile != 0:
            tile -= 128
    return tile, hw // tile


def boundry_module_forward(x_nchw, params, max_tile_hw=8192):
    n, c, hh, ww = x_nchw.shape
    hw = hh * ww
    m = n * hw
    x3 = x_nchw.reshape(n, c, hw)          # free reshape, native layout kept in HBM

    # ---- Fold BatchNorm (batch statistics) into the stage-1 weights. ----
    # Tiny (C,C) Gram + (C,) mean computed from the native layout (no x copy):
    # mean(h) = mean(x) @ W1 and E[h^2]_j = W1[:,j]^T (X^T X / M) W1[:,j].
    w1 = jnp.concatenate([params["w1_b"], params["w1_d"]], axis=1)      # (C, MID2)
    gram = jnp.einsum("ncp,ndp->cd", x3, x3,
                      preferred_element_type=jnp.float32) / m           # (C, C)
    mu_x = jnp.mean(x3, axis=(0, 2))                                    # (C,)

    mean_h = mu_x @ w1                                                  # (MID2,)
    e_h2 = jnp.sum(w1 * (gram @ w1), axis=0)                            # (MID2,)
    var_h = jnp.maximum(e_h2 - jnp.square(mean_h), 0.0)                 # biased var

    gamma = jnp.concatenate([params["gamma_b"], params["gamma_d"]], axis=1).reshape(-1)
    beta = jnp.concatenate([params["beta_b"], params["beta_d"]], axis=1).reshape(-1)
    scale = gamma * jax.lax.rsqrt(var_h + BN_EPS)                       # (MID2,)
    bias = beta - mean_h * scale                                        # (MID2,)

    w1f_t = (w1 * scale[None, :]).T                                     # (MID2, C)
    b_col = bias.reshape(MID2, 1)                                       # (MID2, 1)
    w2m_t = params["w2_b"].T                                            # (NUM_MASK, MID)
    w2d_t = params["w2_d"].T                                            # (NUM_DIR, MID)

    # ---- Tiled streaming grid over (batch, hw). ----
    tile_hw, n_hw_tiles = _pick_tile_hw(hw, n, max_tile_hw)

    flops = 2 * m * (c * MID2 + MID * (NUM_MASK + NUM_DIR))
    bytes_accessed = 4 * (m * c + m * (NUM_MASK + NUM_DIR)
                          + MID2 * (c + 1) + MID * (NUM_MASK + NUM_DIR))

    mask3, dir3 = pl.pallas_call(
        boundary_kernel,
        out_shape=(
            jax.ShapeDtypeStruct((n, NUM_MASK, hw), jnp.float32),
            jax.ShapeDtypeStruct((n, NUM_DIR, hw), jnp.float32),
        ),
        grid_spec=pltpu.PrefetchScalarGridSpec(
            num_scalar_prefetch=0,
            grid=(n, n_hw_tiles),
            in_specs=[
                pl.BlockSpec((1, c, tile_hw), lambda ni, hi: (ni, 0, hi)),
                pl.BlockSpec((MID2, c), lambda ni, hi: (0, 0)),
                pl.BlockSpec((MID2, 1), lambda ni, hi: (0, 0)),
                pl.BlockSpec((NUM_MASK, MID), lambda ni, hi: (0, 0)),
                pl.BlockSpec((NUM_DIR, MID), lambda ni, hi: (0, 0)),
            ],
            out_specs=[
                pl.BlockSpec((1, NUM_MASK, tile_hw), lambda ni, hi: (ni, 0, hi)),
                pl.BlockSpec((1, NUM_DIR, tile_hw), lambda ni, hi: (ni, 0, hi)),
            ],
        ),
        compiler_params=pltpu.CompilerParams(
            dimension_semantics=("parallel", "parallel"),   # megacore split on v7x
            vmem_limit_bytes=48 * 1024 * 1024,               # safe on v7x's 64 MiB/TC
        ),
        cost_estimate=pl.CostEstimate(
            flops=flops, transcendentals=0, bytes_accessed=bytes_accessed),
    )(x3, w1f_t, b_col, w2m_t, w2d_t)

    # Free reshapes back to NCHW.
    return (mask3.reshape(n, NUM_MASK, hh, ww),
            dir3.reshape(n, NUM_DIR, hh, ww))


def _reference_forward(x_nchw, params):
    """Pure-JAX reference with the original two-pass per-branch BN math."""
    n, c, hh, ww = x_nchw.shape
    x_flat = jnp.transpose(x_nchw, (0, 2, 3, 1)).reshape(n * hh * ww, c)

    def branch(w1, w2, gamma, beta):
        h = x_flat @ w1
        mean = jnp.mean(h, axis=0, keepdims=True)
        var = jnp.mean(jnp.square(h - mean), axis=0, keepdims=True)     # biased
        hn = (h - mean) * jax.lax.rsqrt(var + BN_EPS) * gamma + beta
        return jnp.maximum(hn, 0.0) @ w2

    mask_flat = branch(params["w1_b"], params["w2_b"],
                       params["gamma_b"], params["beta_b"])
    dir_flat = branch(params["w1_d"], params["w2_d"],
                      params["gamma_d"], params["beta_d"])
    mask = jnp.transpose(mask_flat.reshape(n, hh, ww, NUM_MASK), (0, 3, 1, 2))
    dirm = jnp.transpose(dir_flat.reshape(n, hh, ww, NUM_DIR), (0, 3, 1, 2))
    return mask, dirm


if __name__ == "__main__":
    key = jax.random.PRNGKey(0)
    in_channels = 3
    n, h, w = 2, 32, 32   # HW = 1024 -> grid (2, 1); exercises the 2-D grid

    k0, k1, k2, k3, k4 = jax.random.split(key, 5)
    x = jax.random.normal(k0, (n, in_channels, h, w), jnp.float32)

    # Deterministic synthetic parameters (1x1 conv weights stored as (C_in, C_out)).
    params = {
        "w1_b": 0.1 * jax.random.normal(k1, (in_channels, MID), jnp.float32),
        "w2_b": 0.1 * jax.random.normal(k2, (MID, NUM_MASK), jnp.float32),
        "gamma_b": jnp.ones((1, MID), jnp.float32),
        "beta_b": jnp.zeros((1, MID), jnp.float32),
        "w1_d": 0.1 * jax.random.normal(k3, (in_channels, MID), jnp.float32),
        "w2_d": 0.1 * jax.random.normal(k4, (MID, NUM_DIR), jnp.float32),
        "gamma_d": jnp.ones((1, MID), jnp.float32),
        "beta_d": jnp.zeros((1, MID), jnp.float32),
    }

    mask_map, direction_map = boundry_module_forward(x, params)
    mask_map = jax.block_until_ready(mask_map)
    direction_map = jax.block_until_ready(direction_map)

    assert mask_map.shape == (n, NUM_MASK, h, w)
    assert direction_map.shape == (n, NUM_DIR, h, w)

    ref_mask, ref_dir = _reference_forward(x, params)
    assert jnp.allclose(mask_map, ref_mask, rtol=1e-3, atol=1e-3)
    assert jnp.allclose(direction_map, ref_dir, rtol=1e-3, atol=1e-3)

    print("KERNEL_OK")
</pallas_src>

<mosaic_0001>
module attributes {stable_mosaic.version = 11 : i64} {
  func.func @boundary_kernel(%arg0: i32, %arg1: i32, %arg2: memref<1x3x1024xf32, #tpu.memory_space<vmem>>, %arg3: memref<512x3xf32, #tpu.memory_space<vmem>>, %arg4: memref<512x1xf32, #tpu.memory_space<vmem>>, %arg5: memref<2x256xf32, #tpu.memory_space<vmem>>, %arg6: memref<8x256xf32, #tpu.memory_space<vmem>>, %arg7: memref<1x2x1024xf32, #tpu.memory_space<vmem>>, %arg8: memref<1x8x1024xf32, #tpu.memory_space<vmem>>) attributes {dimension_semantics = [#tpu.dimension_semantics<parallel>, #tpu.dimension_semantics<parallel>], iteration_bounds = array<i64: 2, 1>, scalar_prefetch = 0 : i64, scratch_operands = 0 : i64, tpu.core_type = #tpu.core_type<tc>, window_params = [{transform_indices = @transform_0, window_bounds = array<i64: 1, 3, 1024>}, {pipeline_mode = #tpu.pipeline_mode<synchronous>, transform_indices = @transform_1, window_bounds = array<i64: 512, 3>}, {pipeline_mode = #tpu.pipeline_mode<synchronous>, transform_indices = @transform_2, window_bounds = array<i64: 512, 1>}, {pipeline_mode = #tpu.pipeline_mode<synchronous>, transform_indices = @transform_3, window_bounds = array<i64: 2, 256>}, {pipeline_mode = #tpu.pipeline_mode<synchronous>, transform_indices = @transform_4, window_bounds = array<i64: 8, 256>}, {transform_indices = @transform_5, window_bounds = array<i64: 1, 2, 1024>}, {transform_indices = @transform_6, window_bounds = array<i64: 1, 8, 1024>}]} {
    %c0 = arith.constant 0 : index
    %c0_0 = arith.constant 0 : index
    %c0_1 = arith.constant 0 : index
    %0 = vector.load %arg2[%c0, %c0_0, %c0_1] : memref<1x3x1024xf32, #tpu.memory_space<vmem>>, vector<1x3x1024xf32>
    %1 = vector.shape_cast %0 : vector<1x3x1024xf32> to vector<3x1024xf32>
    %c0_2 = arith.constant 0 : index
    %c0_3 = arith.constant 0 : index
    %2 = vector.load %arg3[%c0_2, %c0_3] : memref<512x3xf32, #tpu.memory_space<vmem>>, vector<512x3xf32>
    %cst = arith.constant dense<0.000000e+00> : vector<512x1024xf32>
    %3 = tpu.matmul %2, %1, %cst {dimension_numbers = #tpu.dot_dimension_numbers<[1], [0], [0], [1], [0, 0, 1, 1], [], []>} : vector<512x3xf32>, vector<3x1024xf32>, vector<512x1024xf32> -> vector<512x1024xf32>
    %c0_4 = arith.constant 0 : index
    %c0_5 = arith.constant 0 : index
    %4 = vector.load %arg4[%c0_4, %c0_5] : memref<512x1xf32, #tpu.memory_space<vmem>>, vector<512x1xf32>
    %5 = vector.broadcast %4 : vector<512x1xf32> to vector<512x1024xf32>
    %6 = arith.addf %3, %5 : vector<512x1024xf32>
    %cst_6 = arith.constant 0.000000e+00 : f32
    %7 = vector.broadcast %cst_6 : f32 to vector<512x1024xf32>
    %8 = arith.maximumf %6, %7 : vector<512x1024xf32>
    %c0_7 = arith.constant 0 : index
    %c0_8 = arith.constant 0 : index
    %9 = vector.load %arg5[%c0_7, %c0_8] : memref<2x256xf32, #tpu.memory_space<vmem>>, vector<2x256xf32>
    %10 = vector.extract_strided_slice %8 {offsets = [0, 0], sizes = [256, 1024], strides = [1, 1]} : vector<512x1024xf32> to vector<256x1024xf32>
    %cst_9 = arith.constant dense<0.000000e+00> : vector<2x1024xf32>
    %11 = tpu.matmul %9, %10, %cst_9 {dimension_numbers = #tpu.dot_dimension_numbers<[1], [0], [0], [1], [0, 0, 1, 1], [], []>} : vector<2x256xf32>, vector<256x1024xf32>, vector<2x1024xf32> -> vector<2x1024xf32>
    %c0_10 = arith.constant 0 : index
    %c0_11 = arith.constant 0 : index
    %c0_12 = arith.constant 0 : index
    %12 = vector.load %arg7[%c0_10, %c0_11, %c0_12] : memref<1x2x1024xf32, #tpu.memory_space<vmem>>, vector<1x2x1024xf32>
    %13 = vector.shape_cast %12 : vector<1x2x1024xf32> to vector<2x1024xf32>
    %14 = vector.shape_cast %11 : vector<2x1024xf32> to vector<1x2x1024xf32>
    tpu.vector_store %arg7[%c0_10, %c0_11, %c0_12], %14 {strides = array<i32>} : memref<1x2x1024xf32, #tpu.memory_space<vmem>>, vector<1x2x1024xf32>,
    %c0_13 = arith.constant 0 : index
    %c0_14 = arith.constant 0 : index
    %15 = vector.load %arg6[%c0_13, %c0_14] : memref<8x256xf32, #tpu.memory_space<vmem>>, vector<8x256xf32>
    %16 = vector.extract_strided_slice %8 {offsets = [256, 0], sizes = [256, 1024], strides = [1, 1]} : vector<512x1024xf32> to vector<256x1024xf32>
    %cst_15 = arith.constant dense<0.000000e+00> : vector<8x1024xf32>
    %17 = tpu.matmul %15, %16, %cst_15 {dimension_numbers = #tpu.dot_dimension_numbers<[1], [0], [0], [1], [0, 0, 1, 1], [], []>} : vector<8x256xf32>, vector<256x1024xf32>, vector<8x1024xf32> -> vector<8x1024xf32>
    %c0_16 = arith.constant 0 : index
    %c0_17 = arith.constant 0 : index
    %c0_18 = arith.constant 0 : index
    %18 = vector.load %arg8[%c0_16, %c0_17, %c0_18] : memref<1x8x1024xf32, #tpu.memory_space<vmem>>, vector<1x8x1024xf32>
    %19 = vector.shape_cast %18 : vector<1x8x1024xf32> to vector<8x1024xf32>
    %20 = vector.shape_cast %17 : vector<8x1024xf32> to vector<1x8x1024xf32>
    tpu.vector_store %arg8[%c0_16, %c0_17, %c0_18], %20 {strides = array<i32>} : memref<1x8x1024xf32, #tpu.memory_space<vmem>>, vector<1x8x1024xf32>,
    return
  }
  func.func @transform_0(%arg0: i32, %arg1: i32) -> (i32, i32, i32) {
    %c0_i32 = arith.constant 0 : i32
    %c0_i32_0 = arith.constant 0 : i32
    return %arg0, %c0_i32, %arg1 : i32, i32, i32
  }
  func.func @transform_1(%arg0: i32, %arg1: i32) -> (i32, i32) {
    %c0_i32 = arith.constant 0 : i32
    %c0_i32_0 = arith.constant 0 : i32
    %c0_i32_1 = arith.constant 0 : i32
    return %c0_i32, %c0_i32_0 : i32, i32
  }
  func.func @transform_2(%arg0: i32, %arg1: i32) -> (i32, i32) {
    %c0_i32 = arith.constant 0 : i32
    %c0_i32_0 = arith.constant 0 : i32
    %c0_i32_1 = arith.constant 0 : i32
    return %c0_i32, %c0_i32_0 : i32, i32
  }
  func.func @transform_3(%arg0: i32, %arg1: i32) -> (i32, i32) {
    %c0_i32 = arith.constant 0 : i32
    %c0_i32_0 = arith.constant 0 : i32
    %c0_i32_1 = arith.constant 0 : i32
    return %c0_i32, %c0_i32_0 : i32, i32
  }
  func.func @transform_4(%arg0: i32, %arg1: i32) -> (i32, i32) {
    %c0_i32 = arith.constant 0 : i32
    %c0_i32_0 = arith.constant 0 : i32
    %c0_i32_1 = arith.constant 0 : i32
    return %c0_i32, %c0_i32_0 : i32, i32
  }
  func.func @transform_5(%arg0: i32, %arg1: i32) -> (i32, i32, i32) {
    %c0_i32 = arith.constant 0 : i32
    %c0_i32_0 = arith.constant 0 : i32
    return %arg0, %c0_i32, %arg1 : i32, i32, i32
  }
  func.func @transform_6(%arg0: i32, %arg1: i32) -> (i32, i32, i32) {
    %c0_i32 = arith.constant 0 : i32
    %c0_i32_0 = arith.constant 0 : i32
    return %arg0, %c0_i32, %arg1 : i32, i32, i32
  }
}

</mosaic_0001>

<llo_original>
// kernel: tpu_custom_call.1
$region0: #{tpu_custom_call.1}
  #allocation0 [shape = 'u32[]', space=smem, size = 0x4, offset = 0x4, fixed_abs, tag = 'smem constant byte address 0x4 - core index']
  #allocation1 [shape = 'u32[144,128]{1,0:T(1,128)}', space=vmem, size = 0x12000, scoped, tag = 'internal scratch']
  %s0 = inlined_call_operand.vmem [shape: f32[2,3,1024], index: 0, kind: input, shape index: {}]
  %s1 = inlined_call_operand.vmem [shape: f32[512,3], index: 1, kind: input, shape index: {}]
  %s2 = inlined_call_operand.vmem [shape: f32[512,1], index: 2, kind: input, shape index: {}]
  %s3 = inlined_call_operand.vmem [shape: f32[2,256], index: 3, kind: input, shape index: {}]
  %s4 = inlined_call_operand.vmem [shape: f32[8,256], index: 4, kind: input, shape index: {}]
  %s5 = inlined_call_operand.hbm [shape: f32[2,2,1024], index: 5, kind: output, shape index: {0}]
  %s6 = inlined_call_operand.hbm [shape: f32[2,8,1024], index: 6, kind: output, shape index: {1}]
  %7 = xla_tuple %s5, %s6
  %s8 = sld [smem:[#allocation0]]
  $region61: #{tpu_custom_call.1} parent=0
    _
  %s10 = ssub.s32 1, %s8
  %s11 = scalar_select 0, %s10, %s8
  $region1: #{tpu_custom_call.1} parent=0
    #allocation2 [shape = 'u8[16384]{0}', space=vmem, size = 0x4000, scoped, tag = 'output window, operand 0']
    #allocation3 [shape = 's32[2]{0}', space=sflag, size = 0x8, scoped, tag = 'scoped memory for tpu_custom_call.1']
    #allocation4 [shape = 'u8[65536]{0}', space=vmem, size = 0x10000, scoped, tag = 'output window, operand 1']
    #allocation5 [shape = 's32[2]{0}', space=sflag, size = 0x8, scoped, tag = 'scoped memory for tpu_custom_call.1']
    %12 = vsyncpa [#allocation3], 0
    %s13 = scalar_lea.sflag [#allocation3], 1
    %14 = vsyncpa %s13, 0
    %15 = vsyncpa [#allocation5], 0
    %s16 = scalar_lea.sflag [#allocation5], 1
    %17 = vsyncpa %s16, 0
    loop: start=0, step=1, limit=4
    $region2: #{tpu_custom_call.1} parent=1 // loop_pre_header
      _
    $region3: #{tpu_custom_call.1} parent=1 // loop_header
      %s19 = sphi 0, %s23
      %p20 = scmp.ge.s32.totalorder %s19, 4
      %s26 = sphi 0, %s38
      %s27 = sphi 0, %s34
      %s28 = sphi 0, %s26
      %s29 = sphi 0, %s27
      %s30 = sphi 0, %s28
      %s31 = sphi 0, %s29
      %s43 = sphi 0, %s45
      %s46 = sphi 0, %s43
      %s47 = sphi 0, %s46
      %s63 = sphi 0, %s47
      %s67 = sphi 0, %s67
      %s69 = sphi 0, %s67
      %s70 = sphi 0, %s69
      %s84 = sphi 0, %s70
      %s88 = sphi 0, %s88
      %s90 = sphi 0, %s88
      %s91 = sphi 0, %s90
      %s105 = sphi 0, %s91
      %s109 = sphi 0, %s109
      %s111 = sphi 0, %s109
      %s112 = sphi 0, %s111
      %s126 = sphi 0, %s112
      %s130 = sphi 0, %s130
      %s132 = sphi 0, %s130
      %s133 = sphi 0, %s132
      %s147 = sphi 0, %s133
      %s155 = sphi 0, %s157
      %s158 = sphi 0, %s155
      %s159 = sphi 0, %s158
      %s175 = sphi 0, %s159
      %s183 = sphi 0, %s185
      %s186 = sphi 0, %s183
      %s187 = sphi 0, %s186
      %s203 = sphi 0, %s187
    $region4: #{tpu_custom_call.1} parent=1 // loop_header_branch
      %22 = sbr.rel (%p20) target = $region8
    $region5: #{tpu_custom_call.1} parent=1 // loop_body
      %s24 = ssub.s32 %s19, 1
      %s25 = ssub.s32 %s19, 2
      %s32 = sadd.s32 1, %s27
      %p33 = scmp.ge.s32.totalorder %s32, 1
      %s34 = scalar_select %p33, 0, %s32
      %s35 = sadd.s32 1, %s26
      %s36 = scalar_select %p33, %s35, %s26
      %p37 = scmp.ge.s32.totalorder %s36, 2
      %s38 = scalar_select %p37, 0, %s36
      %s39 = ssub.s32 %s26, %s38
      %s40 = ssub.s32 %s27, %s34
      %s41 = sor.u32 %s39, %s40
      %p42 = scmp.eq.s32.totalorder %s41, 0
      %s44 = sadd.s32 %s43, 1
      %s45 = scalar_select %p42, %s43, %s44
      %p48 = pneg %p42
      %p49 = scmp.eq.s32.totalorder %s19, 1
      %p50 = por %p48, %p49
      %p51 = scmp.ne.s32.totalorder %s43, %s46
      %p52 = scmp.eq.s32.totalorder %s19, 0
      %p53 = por %p51, %p52
      %p54 = scmp.ne.s32.totalorder %s43, %s46
      %p55 = scmp.eq.s32.totalorder %s24, 1
      %p56 = por %p54, %p55
      %p57 = scmp.ne.s32.totalorder %s46, %s47
      %p58 = scmp.eq.s32.totalorder %s24, 0
      %p59 = por %p57, %p58
      %p60 = scmp.ne.s32.totalorder %s46, %s47
      %p61 = scmp.eq.s32.totalorder %s25, 1
      %p62 = por %p60, %p61
      %p64 = scmp.ne.s32.totalorder %s47, %s63
      %p65 = scmp.eq.s32.totalorder %s25, 0
      %p66 = por %p64, %p65
      %s68 = sadd.s32 %s67, 1
      %p71 = scmp.eq.s32.totalorder %s19, 1
      %p72 = scmp.ne.s32.totalorder %s67, %s69
      %p73 = scmp.eq.s32.totalorder %s19, 0
      %p74 = por %p72, %p73
      %p75 = scmp.ne.s32.totalorder %s67, %s69
      %p76 = scmp.eq.s32.totalorder %s24, 1
      %p77 = por %p75, %p76
      %p78 = scmp.ne.s32.totalorder %s69, %s70
      %p79 = scmp.eq.s32.totalorder %s24, 0
      %p80 = por %p78, %p79
      %p81 = scmp.ne.s32.totalorder %s69, %s70
      %p82 = scmp.eq.s32.totalorder %s25, 1
      %p83 = por %p81, %p82
      %p85 = scmp.ne.s32.totalorder %s70, %s84
      %p86 = scmp.eq.s32.totalorder %s25, 0
      %p87 = por %p85, %p86
      %s89 = sadd.s32 %s88, 1
      %p92 = scmp.eq.s32.totalorder %s19, 1
      %p93 = scmp.ne.s32.totalorder %s88, %s90
      %p94 = scmp.eq.s32.totalorder %s19, 0
      %p95 = por %p93, %p94
      %p96 = scmp.ne.s32.totalorder %s88, %s90
      %p97 = scmp.eq.s32.totalorder %s24, 1
      %p98 = por %p96, %p97
      %p99 = scmp.ne.s32.totalorder %s90, %s91
      %p100 = scmp.eq.s32.totalorder %s24, 0
      %p101 = por %p99, %p100
      %p102 = scmp.ne.s32.totalorder %s90, %s91
      %p103 = scmp.eq.s32.totalorder %s25, 1
      %p104 = por %p102, %p103
      %p106 = scmp.ne.s32.totalorder %s91, %s105
      %p107 = scmp.eq.s32.totalorder %s25, 0
      %p108 = por %p106, %p107
      %s110 = sadd.s32 %s109, 1
      %p113 = scmp.eq.s32.totalorder %s19, 1
      %p114 = scmp.ne.s32.totalorder %s109, %s111
      %p115 = scmp.eq.s32.totalorder %s19, 0
      %p116 = por %p114, %p115
      %p117 = scmp.ne.s32.totalorder %s109, %s111
      %p118 = scmp.eq.s32.totalorder %s24, 1
      %p119 = por %p117, %p118
      %p120 = scmp.ne.s32.totalorder %s111, %s112
      %p121 = scmp.eq.s32.totalorder %s24, 0
      %p122 = por %p120, %p121
      %p123 = scmp.ne.s32.totalorder %s111, %s112
      %p124 = scmp.eq.s32.totalorder %s25, 1
      %p125 = por %p123, %p124
      %p127 = scmp.ne.s32.totalorder %s112, %s126
      %p128 = scmp.eq.s32.totalorder %s25, 0
      %p129 = por %p127, %p128
      %s131 = sadd.s32 %s130, 1
      %p134 = scmp.eq.s32.totalorder %s19, 1
      %p135 = scmp.ne.s32.totalorder %s130, %s132
      %p136 = scmp.eq.s32.totalorder %s19, 0
      %p137 = por %p135, %p136
      %p138 = scmp.ne.s32.totalorder %s130, %s132
      %p139 = scmp.eq.s32.totalorder %s24, 1
      %p140 = por %p138, %p139
      %p141 = scmp.ne.s32.totalorder %s132, %s133
      %p142 = scmp.eq.s32.totalorder %s24, 0
      %p143 = por %p141, %p142
      %p144 = scmp.ne.s32.totalorder %s132, %s133
      %p145 = scmp.eq.s32.totalorder %s25, 1
      %p146 = por %p144, %p145
      %p148 = scmp.ne.s32.totalorder %s133, %s147
      %p149 = scmp.eq.s32.totalorder %s25, 0
      %p150 = por %p148, %p149
      %s151 = ssub.s32 %s26, %s38
      %s152 = ssub.s32 %s27, %s34
      %s153 = sor.u32 %s151, %s152
      %p154 = scmp.eq.s32.totalorder %s153, 0
      %s156 = sadd.s32 %s155, 1
      %s157 = scalar_select %p154, %s155, %s156
      %p160 = pneg %p154
      %p161 = scmp.eq.s32.totalorder %s19, 1
      %p162 = por %p160, %p161
      %p163 = scmp.ne.s32.totalorder %s155, %s158
      %p164 = scmp.eq.s32.totalorder %s19, 0
      %p165 = por %p163, %p164
      %p166 = scmp.ne.s32.totalorder %s155, %s158
      %p167 = scmp.eq.s32.totalorder %s24, 1
      %p168 = por %p166, %p167
      %p169 = scmp.ne.s32.totalorder %s158, %s159
      %p170 = scmp.eq.s32.totalorder %s24, 0
      %p171 = por %p169, %p170
      %p172 = scmp.ne.s32.totalorder %s158, %s159
      %p173 = scmp.eq.s32.totalorder %s25, 1
      %p174 = por %p172, %p173
      %p176 = scmp.ne.s32.totalorder %s159, %s175
      %p177 = scmp.eq.s32.totalorder %s25, 0
      %p178 = por %p176, %p177
      %s179 = ssub.s32 %s26, %s38
      %s180 = ssub.s32 %s27, %s34
      %s181 = sor.u32 %s179, %s180
      %p182 = scmp.eq.s32.totalorder %s181, 0
      %s184 = sadd.s32 %s183, 1
      %s185 = scalar_select %p182, %s183, %s184
      %p188 = pneg %p182
      %p189 = scmp.eq.s32.totalorder %s19, 1
      %p190 = por %p188, %p189
      %p191 = scmp.ne.s32.totalorder %s183, %s186
      %p192 = scmp.eq.s32.totalorder %s19, 0
      %p193 = por %p191, %p192
      %p194 = scmp.ne.s32.totalorder %s183, %s186
      %p195 = scmp.eq.s32.totalorder %s24, 1
      %p196 = por %p194, %p195
      %p197 = scmp.ne.s32.totalorder %s186, %s187
      %p198 = scmp.eq.s32.totalorder %s24, 0
      %p199 = por %p197, %p198
      %p200 = scmp.ne.s32.totalorder %s186, %s187
      %p201 = scmp.eq.s32.totalorder %s25, 1
      %p202 = por %p200, %p201
      %p204 = scmp.ne.s32.totalorder %s187, %s203
      %p205 = scmp.eq.s32.totalorder %s25, 0
      %p206 = por %p204, %p205
      %p207 = scmp.le.s32.totalorder 1, %s19
      %p208 = scmp.lt.s32.totalorder %s19, 3
      %p209 = pnand %p207, %p208
      %p210 = pneg %p209
      // Predicated region
      $region9: #{tpu_custom_call.1} parent=5 // pred_check
        _
      $region10: #{tpu_custom_call.1} parent=5 // pred_check_branch
        %212 = sbr.rel (%p209) target = $region12
      $region11: #{tpu_custom_call.1} parent=5 // pred_region
        %s213 = ssub.s32 %s19, 1
        // Predicated region
        $region13: #{tpu_custom_call.1} parent=11 // pred_check
          %p214 = pneg %p80
        $region14: #{tpu_custom_call.1} parent=11 // pred_check_branch
          %216 = sbr.rel (%p214) target = $region16
        $region15: #{tpu_custom_call.1} parent=11 // pred_region
          _
        $region16: #{tpu_custom_call.1} parent=11 // pred_fallthru
          _
        // Predicated region
        $region17: #{tpu_custom_call.1} parent=11 // pred_check
          %p217 = pneg %p101
        $region18: #{tpu_custom_call.1} parent=11 // pred_check_branch
          %219 = sbr.rel (%p217) target = $region20
        $region19: #{tpu_custom_call.1} parent=11 // pred_region
          _
        $region20: #{tpu_custom_call.1} parent=11 // pred_fallthru
          _
        // Predicated region
        $region21: #{tpu_custom_call.1} parent=11 // pred_check
          %p220 = pneg %p122
        $region22: #{tpu_custom_call.1} parent=11 // pred_check_branch
          %222 = sbr.rel (%p220) target = $region24
        $region23: #{tpu_custom_call.1} parent=11 // pred_region
          _
        $region24: #{tpu_custom_call.1} parent=11 // pred_fallthru
          _
        // Predicated region
        $region25: #{tpu_custom_call.1} parent=11 // pred_check
          %p223 = pneg %p143
        $region26: #{tpu_custom_call.1} parent=11 // pred_check_branch
          %225 = sbr.rel (%p223) target = $region28
        $region27: #{tpu_custom_call.1} parent=11 // pred_region
          _
        $region28: #{tpu_custom_call.1} parent=11 // pred_fallthru
          _
      $region12: #{tpu_custom_call.1} parent=5 // pred_fallthru
        _
      %p226 = scmp.lt.s32.totalorder %s19, 2
      // Predicated region
      $region29: #{tpu_custom_call.1} parent=5 // pred_check
        %p227 = pneg %p226
      $region30: #{tpu_custom_call.1} parent=5 // pred_check_branch
        %229 = sbr.rel (%p227) target = $region32
      $region31: #{tpu_custom_call.1} parent=5 // pred_region
        // Predicated region
        $region33: #{tpu_custom_call.1} parent=31 // pred_check
          %p230 = pneg %p53
        $region34: #{tpu_custom_call.1} parent=31 // pred_check_branch
          %232 = sbr.rel (%p230) target = $region36
        $region35: #{tpu_custom_call.1} parent=31 // pred_region
          %s233 = smul.u32 8, %s27
          %p234 = scmp.lt.s32.totalorder %s26, 1
          %s235 = scalar_select %p234, %s26, 1
          %p236 = scmp.lt.s32.totalorder %s233, 7
          %s237 = scalar_select %p236, %s233, 7
          %s238 = smul.addr %s235, 8
          %s239 = sadd.s32 %s237, %s238
          %s240 = smul.addr %s239, 4
          %s241 = scalar_lea.vmem %s0, %s240
          %s242 = smul.u32 8, %s27
        $region36: #{tpu_custom_call.1} parent=31 // pred_fallthru
          _
      $region32: #{tpu_custom_call.1} parent=5 // pred_fallthru
        _
      %p243 = scmp.le.s32.totalorder 1, %s19
      %p244 = scmp.lt.s32.totalorder %s19, 3
      %p245 = pnand %p243, %p244
      %p246 = pneg %p245
      // Predicated region
      $region37: #{tpu_custom_call.1} parent=5 // pred_check
        _
      $region38: #{tpu_custom_call.1} parent=5 // pred_check_branch
        %248 = sbr.rel (%p245) target = $region40
      $region39: #{tpu_custom_call.1} parent=5 // pred_region
        %s249 = ssub.s32 %s19, 1
        %s250 = smul.u32 8, %s29
        %p251 = scmp.lt.s32.totalorder %s28, 1
        %s252 = scalar_select %p251, %s28, 1
        %p253 = scmp.lt.s32.totalorder %s250, 7
        %s254 = scalar_select %p253, %s250, 7
        %s255 = smul.addr %s252, 8
        %s256 = sadd.s32 %s254, %s255
        %s257 = smul.addr %s256, 4
        %s258 = scalar_lea.vmem %s0, %s257
        %p259 = pneg %p59
        %p260 = pneg %p56
        %p261 = pneg %p80
        %p262 = pneg %p77
        %p263 = pneg %p101
        %p264 = pneg %p98
        %p265 = pneg %p122
        %p266 = pneg %p119
        %p267 = pneg %p143
        %p268 = pneg %p140
        %p269 = pneg %p171
        %p270 = pneg %p168
        %s271 = sand.u32 %s158, 1
        %s272 = scalar_lea.sflag [#allocation3], %s271
        %s273 = sand.u32 %s158, 1
        %s274 = smul.addr %s273, 16
        %s275 = scalar_lea.vmem [#allocation2], %s274
        %p276 = pneg %p199
        %p277 = pneg %p196
        %s278 = sand.u32 %s186, 1
        %s279 = scalar_lea.sflag [#allocation5], %s278
        %s280 = sand.u32 %s186, 1
        %s281 = smul.addr %s280, 64
        %s282 = scalar_lea.vmem [#allocation4], %s281
        %s283 = smul.u32 8, %s29
        %p284 = scmp.lt.s32.totalorder %s28, 1
        %s285 = scalar_select %p284, %s28, 1
        %p286 = scmp.lt.s32.totalorder %s283, 7
        %s287 = scalar_select %p286, %s283, 7
        %s288 = smul.addr %s285, 8
        %s289 = sadd.s32 %s287, %s288
        %s290 = smul.addr %s289, 4
        %s291 = scalar_lea.vmem %s0, %s290
        %s292 = smul.u32 8, %s29
        %s293 = smul.u32 8, %s29
        %s294 = smul.u32 8, %s29
        %v295 = vld [vmem:[%s291] sm:$0x77]
        %v296 = vld [vmem:[%s291 + $0x8] sm:$0x77]
        %v297 = vld [vmem:[%s291 + $0x10] sm:$0x77]
        %v298 = vld [vmem:[%s291 + $0x18] sm:$0x77]
        %v299 = vld [vmem:[%s1] sm:$0xff]
        %v300 = vld [vmem:[%s1 + $0x8] sm:$0xff]
        %v301 = vld [vmem:[%s1 + $0x10] sm:$0xff]
        %v302 = vld [vmem:[%s1 + $0x18] sm:$0xff]
        %v303 = vld [vmem:[%s1 + $0x20] sm:$0xff]
        %v304 = vld [vmem:[%s1 + $0x28] sm:$0xff]
        %v305 = vld [vmem:[%s1 + $0x30] sm:$0xff]
        %v306 = vld [vmem:[%s1 + $0x38] sm:$0xff]
        %v307 = vld [vmem:[%s1 + $0x40] sm:$0xff]
        %v308 = vld [vmem:[%s1 + $0x48] sm:$0xff]
        %v309 = vld [vmem:[%s1 + $0x50] sm:$0xff]
        %v310 = vld [vmem:[%s1 + $0x58] sm:$0xff]
        %v311 = vld [vmem:[%s1 + $0x60] sm:$0xff]
        %v312 = vld [vmem:[%s1 + $0x68] sm:$0xff]
        %v313 = vld [vmem:[%s1 + $0x70] sm:$0xff]
        %v314 = vld [vmem:[%s1 + $0x78] sm:$0xff]
        %v315 = vld [vmem:[%s1 + $0x80] sm:$0xff]
        %v316 = vld [vmem:[%s1 + $0x88] sm:$0xff]
        %v317 = vld [vmem:[%s1 + $0x90] sm:$0xff]
        %v318 = vld [vmem:[%s1 + $0x98] sm:$0xff]
        %v319 = vld [vmem:[%s1 + $0xa0] sm:$0xff]
        %v320 = vld [vmem:[%s1 + $0xa8] sm:$0xff]
        %v321 = vld [vmem:[%s1 + $0xb0] sm:$0xff]
        %v322 = vld [vmem:[%s1 + $0xb8] sm:$0xff]
        %v323 = vld [vmem:[%s1 + $0xc0] sm:$0xff]
        %v324 = vld [vmem:[%s1 + $0xc8] sm:$0xff]
        %v325 = vld [vmem:[%s1 + $0xd0] sm:$0xff]
        %v326 = vld [vmem:[%s1 + $0xd8] sm:$0xff]
        %v327 = vld [vmem:[%s1 + $0xe0] sm:$0xff]
        %v328 = vld [vmem:[%s1 + $0xe8] sm:$0xff]
        %v329 = vld [vmem:[%s1 + $0xf0] sm:$0xff]
        %v330 = vld [vmem:[%s1 + $0xf8] sm:$0xff]
        %v331 = vld [vmem:[%s1 + $0x100] sm:$0xff]
        %v332 = vld [vmem:[%s1 + $0x108] sm:$0xff]
        %v333 = vld [vmem:[%s1 + $0x110] sm:$0xff]
        %v334 = vld [vmem:[%s1 + $0x118] sm:$0xff]
        %v335 = vld [vmem:[%s1 + $0x120] sm:$0xff]
        %v336 = vld [vmem:[%s1 + $0x128] sm:$0xff]
        %v337 = vld [vmem:[%s1 + $0x130] sm:$0xff]
        %v338 = vld [vmem:[%s1 + $0x138] sm:$0xff]
        %v339 = vld [vmem:[%s1 + $0x140] sm:$0xff]
        %v340 = vld [vmem:[%s1 + $0x148] sm:$0xff]
        %v341 = vld [vmem:[%s1 + $0x150] sm:$0xff]
        %v342 = vld [vmem:[%s1 + $0x158] sm:$0xff]
        %v343 = vld [vmem:[%s1 + $0x160] sm:$0xff]
        %v344 = vld [vmem:[%s1 + $0x168] sm:$0xff]
        %v345 = vld [vmem:[%s1 + $0x170] sm:$0xff]
        %v346 = vld [vmem:[%s1 + $0x178] sm:$0xff]
        %v347 = vld [vmem:[%s1 + $0x180] sm:$0xff]
        %v348 = vld [vmem:[%s1 + $0x188] sm:$0xff]
        %v349 = vld [vmem:[%s1 + $0x190] sm:$0xff]
        %v350 = vld [vmem:[%s1 + $0x198] sm:$0xff]
        %v351 = vld [vmem:[%s1 + $0x1a0] sm:$0xff]
        %v352 = vld [vmem:[%s1 + $0x1a8] sm:$0xff]
        %v353 = vld [vmem:[%s1 + $0x1b0] sm:$0xff]
        %v354 = vld [vmem:[%s1 + $0x1b8] sm:$0xff]
        %v355 = vld [vmem:[%s1 + $0x1c0] sm:$0xff]
        %v356 = vld [vmem:[%s1 + $0x1c8] sm:$0xff]
        %v357 = vld [vmem:[%s1 + $0x1d0] sm:$0xff]
        %v358 = vld [vmem:[%s1 + $0x1d8] sm:$0xff]
        %v359 = vld [vmem:[%s1 + $0x1e0] sm:$0xff]
        %v360 = vld [vmem:[%s1 + $0x1e8] sm:$0xff]
        %v361 = vld [vmem:[%s1 + $0x1f0] sm:$0xff]
        %v362 = vld [vmem:[%s1 + $0x1f8] sm:$0xff]
        %v363 = vld [vmem:[%s2] sm:$0xff]
        %v364 = vld [vmem:[%s2 + $0x8] sm:$0xff]
        %v365 = vld [vmem:[%s2 + $0x10] sm:$0xff]
        %v366 = vld [vmem:[%s2 + $0x18] sm:$0xff]
        %v367 = vld [vmem:[%s2 + $0x20] sm:$0xff]
        %v368 = vld [vmem:[%s2 + $0x28] sm:$0xff]
        %v369 = vld [vmem:[%s2 + $0x30] sm:$0xff]
        %v370 = vld [vmem:[%s2 + $0x38] sm:$0xff]
        %v371 = vld [vmem:[%s2 + $0x40] sm:$0xff]
        %v372 = vld [vmem:[%s2 + $0x48] sm:$0xff]
        %v373 = vld [vmem:[%s2 + $0x50] sm:$0xff]
        %v374 = vld [vmem:[%s2 + $0x58] sm:$0xff]
        %v375 = vld [vmem:[%s2 + $0x60] sm:$0xff]
        %v376 = vld [vmem:[%s2 + $0x68] sm:$0xff]
        %v377 = vld [vmem:[%s2 + $0x70] sm:$0xff]
        %v378 = vld [vmem:[%s2 + $0x78] sm:$0xff]
        %v379 = vld [vmem:[%s2 + $0x80] sm:$0xff]
        %v380 = vld [vmem:[%s2 + $0x88] sm:$0xff]
        %v381 = vld [vmem:[%s2 + $0x90] sm:$0xff]
        %v382 = vld [vmem:[%s2 + $0x98] sm:$0xff]
        %v383 = vld [vmem:[%s2 + $0xa0] sm:$0xff]
        %v384 = vld [vmem:[%s2 + $0xa8] sm:$0xff]
        %v385 = vld [vmem:[%s2 + $0xb0] sm:$0xff]
        %v386 = vld [vmem:[%s2 + $0xb8] sm:$0xff]
        %v387 = vld [vmem:[%s2 + $0xc0] sm:$0xff]
        %v388 = vld [vmem:[%s2 + $0xc8] sm:$0xff]
        %v389 = vld [vmem:[%s2 + $0xd0] sm:$0xff]
        %v390 = vld [vmem:[%s2 + $0xd8] sm:$0xff]
        %v391 = vld [vmem:[%s2 + $0xe0] sm:$0xff]
        %v392 = vld [vmem:[%s2 + $0xe8] sm:$0xff]
        %v393 = vld [vmem:[%s2 + $0xf0] sm:$0xff]
        %v394 = vld [vmem:[%s2 + $0xf8] sm:$0xff]
        %v395 = vld [vmem:[%s2 + $0x100] sm:$0xff]
        %v396 = vld [vmem:[%s2 + $0x108] sm:$0xff]
        %v397 = vld [vmem:[%s2 + $0x110] sm:$0xff]
        %v398 = vld [vmem:[%s2 + $0x118] sm:$0xff]
        %v399 = vld [vmem:[%s2 + $0x120] sm:$0xff]
        %v400 = vld [vmem:[%s2 + $0x128] sm:$0xff]
        %v401 = vld [vmem:[%s2 + $0x130] sm:$0xff]
        %v402 = vld [vmem:[%s2 + $0x138] sm:$0xff]
        %v403 = vld [vmem:[%s2 + $0x140] sm:$0xff]
        %v404 = vld [vmem:[%s2 + $0x148] sm:$0xff]
        %v405 = vld [vmem:[%s2 + $0x150] sm:$0xff]
        %v406 = vld [vmem:[%s2 + $0x158] sm:$0xff]
        %v407 = vld [vmem:[%s2 + $0x160] sm:$0xff]
        %v408 = vld [vmem:[%s2 + $0x168] sm:$0xff]
        %v409 = vld [vmem:[%s2 + $0x170] sm:$0xff]
        %v410 = vld [vmem:[%s2 + $0x178] sm:$0xff]
        %v411 = vld [vmem:[%s2 + $0x180] sm:$0xff]
        %v412 = vld [vmem:[%s2 + $0x188] sm:$0xff]
        %v413 = vld [vmem:[%s2 + $0x190] sm:$0xff]
        %v414 = vld [vmem:[%s2 + $0x198] sm:$0xff]
        %v415 = vld [vmem:[%s2 + $0x1a0] sm:$0xff]
        %v416 = vld [vmem:[%s2 + $0x1a8] sm:$0xff]
        %v417 = vld [vmem:[%s2 + $0x1b0] sm:$0xff]
        %v418 = vld [vmem:[%s2 + $0x1b8] sm:$0xff]
        %v419 = vld [vmem:[%s2 + $0x1c0] sm:$0xff]
        %v420 = vld [vmem:[%s2 + $0x1c8] sm:$0xff]
        %v421 = vld [vmem:[%s2 + $0x1d0] sm:$0xff]
        %v422 = vld [vmem:[%s2 + $0x1d8] sm:$0xff]
        %v423 = vld [vmem:[%s2 + $0x1e0] sm:$0xff]
        %v424 = vld [vmem:[%s2 + $0x1e8] sm:$0xff]
        %v425 = vld [vmem:[%s2 + $0x1f0] sm:$0xff]
        %v426 = vld [vmem:[%s2 + $0x1f8] sm:$0xff]
        %428 = vset.pattern.permute.xlu0 0
        %429 = vperm.xlu0 %428, %v363
        %v430 = vpop.permute.xlu0 %429
        %433 = vset.pattern.permute.xlu0 0
        %434 = vperm.xlu0 %433, %v364
        %v435 = vpop.permute.xlu0 %434
        %438 = vset.pattern.permute.xlu0 0
        %439 = vperm.xlu0 %438, %v365
        %v440 = vpop.permute.xlu0 %439
        %443 = vset.pattern.permute.xlu0 0
        %444 = vperm.xlu0 %443, %v366
        %v445 = vpop.permute.xlu0 %444
        %448 = vset.pattern.permute.xlu0 0
        %449 = vperm.xlu0 %448, %v367
        %v450 = vpop.permute.xlu0 %449
        %453 = vset.pattern.permute.xlu0 0
        %454 = vperm.xlu0 %453, %v368
        %v455 = vpop.permute.xlu0 %454
        %458 = vset.pattern.permute.xlu0 0
        %459 = vperm.xlu0 %458, %v369
        %v460 = vpop.permute.xlu0 %459
        %463 = vset.pattern.permute.xlu0 0
        %464 = vperm.xlu0 %463, %v370
        %v465 = vpop.permute.xlu0 %464
        %468 = vset.pattern.permute.xlu0 0
        %469 = vperm.xlu0 %468, %v371
        %v470 = vpop.permute.xlu0 %469
        %473 = vset.pattern.permute.xlu0 0
        %474 = vperm.xlu0 %473, %v372
        %v475 = vpop.permute.xlu0 %474
        %478 = vset.pattern.permute.xlu0 0
        %479 = vperm.xlu0 %478, %v373
        %v480 = vpop.permute.xlu0 %479
        %483 = vset.pattern.permute.xlu0 0
        %484 = vperm.xlu0 %483, %v374
        %v485 = vpop.permute.xlu0 %484
        %488 = vset.pattern.permute.xlu0 0
        %489 = vperm.xlu0 %488, %v375
        %v490 = vpop.permute.xlu0 %489
        %493 = vset.pattern.permute.xlu0 0
        %494 = vperm.xlu0 %493, %v376
        %v495 = vpop.permute.xlu0 %494
        %498 = vset.pattern.permute.xlu0 0
        %499 = vperm.xlu0 %498, %v377
        %v500 = vpop.permute.xlu0 %499
        %503 = vset.pattern.permute.xlu0 0
        %504 = vperm.xlu0 %503, %v378
        %v505 = vpop.permute.xlu0 %504
        %508 = vset.pattern.permute.xlu0 0
        %509 = vperm.xlu0 %508, %v379
        %v510 = vpop.permute.xlu0 %509
        %513 = vset.pattern.permute.xlu0 0
        %514 = vperm.xlu0 %513, %v380
        %v515 = vpop.permute.xlu0 %514
        %518 = vset.pattern.permute.xlu0 0
        %519 = vperm.xlu0 %518, %v381
        %v520 = vpop.permute.xlu0 %519
        %523 = vset.pattern.permute.xlu0 0
        %524 = vperm.xlu0 %523, %v382
        %v525 = vpop.permute.xlu0 %524
        %528 = vset.pattern.permute.xlu0 0
        %529 = vperm.xlu0 %528, %v383
        %v530 = vpop.permute.xlu0 %529
        %533 = vset.pattern.permute.xlu0 0
        %534 = vperm.xlu0 %533, %v384
        %v535 = vpop.permute.xlu0 %534
        %538 = vset.pattern.permute.xlu0 0
        %539 = vperm.xlu0 %538, %v385
        %v540 = vpop.permute.xlu0 %539
        %543 = vset.pattern.permute.xlu0 0
        %544 = vperm.xlu0 %543, %v386
        %v545 = vpop.permute.xlu0 %544
        %548 = vset.pattern.permute.xlu0 0
        %549 = vperm.xlu0 %548, %v387
        %v550 = vpop.permute.xlu0 %549
        %553 = vset.pattern.permute.xlu0 0
        %554 = vperm.xlu0 %553, %v388
        %v555 = vpop.permute.xlu0 %554
        %558 = vset.pattern.permute.xlu0 0
        %559 = vperm.xlu0 %558, %v389
        %v560 = vpop.permute.xlu0 %559
        %563 = vset.pattern.permute.xlu0 0
        %564 = vperm.xlu0 %563, %v390
        %v565 = vpop.permute.xlu0 %564
        %568 = vset.pattern.permute.xlu0 0
        %569 = vperm.xlu0 %568, %v391
        %v570 = vpop.permute.xlu0 %569
        %573 = vset.pattern.permute.xlu0 0
        %574 = vperm.xlu0 %573, %v392
        %v575 = vpop.permute.xlu0 %574
        %578 = vset.pattern.permute.xlu0 0
        %579 = vperm.xlu0 %578, %v393
        %v580 = vpop.permute.xlu0 %579
        %583 = vset.pattern.permute.xlu0 0
        %584 = vperm.xlu0 %583, %v394
        %v585 = vpop.permute.xlu0 %584
        %588 = vset.pattern.permute.xlu0 0
        %589 = vperm.xlu0 %588, %v395
        %v590 = vpop.permute.xlu0 %589
        %593 = vset.pattern.permute.xlu0 0
        %594 = vperm.xlu0 %593, %v396
        %v595 = vpop.permute.xlu0 %594
        %598 = vset.pattern.permute.xlu0 0
        %599 = vperm.xlu0 %598, %v397
        %v600 = vpop.permute.xlu0 %599
        %603 = vset.pattern.permute.xlu0 0
        %604 = vperm.xlu0 %603, %v398
        %v605 = vpop.permute.xlu0 %604
        %608 = vset.pattern.permute.xlu0 0
        %609 = vperm.xlu0 %608, %v399
        %v610 = vpop.permute.xlu0 %609
        %613 = vset.pattern.permute.xlu0 0
        %614 = vperm.xlu0 %613, %v400
        %v615 = vpop.permute.xlu0 %614
        %618 = vset.pattern.permute.xlu0 0
        %619 = vperm.xlu0 %618, %v401
        %v620 = vpop.permute.xlu0 %619
        %623 = vset.pattern.permute.xlu0 0
        %624 = vperm.xlu0 %623, %v402
        %v625 = vpop.permute.xlu0 %624
        %628 = vset.pattern.permute.xlu0 0
        %629 = vperm.xlu0 %628, %v403
        %v630 = vpop.permute.xlu0 %629
        %633 = vset.pattern.permute.xlu0 0
        %634 = vperm.xlu0 %633, %v404
        %v635 = vpop.permute.xlu0 %634
        %638 = vset.pattern.permute.xlu0 0
        %639 = vperm.xlu0 %638, %v405
        %v640 = vpop.permute.xlu0 %639
        %643 = vset.pattern.permute.xlu0 0
        %644 = vperm.xlu0 %643, %v406
        %v645 = vpop.permute.xlu0 %644
        %648 = vset.pattern.permute.xlu0 0
        %649 = vperm.xlu0 %648, %v407
        %v650 = vpop.permute.xlu0 %649
        %653 = vset.pattern.permute.xlu0 0
        %654 = vperm.xlu0 %653, %v408
        %v655 = vpop.permute.xlu0 %654
        %658 = vset.pattern.permute.xlu0 0
        %659 = vperm.xlu0 %658, %v409
        %v660 = vpop.permute.xlu0 %659
        %663 = vset.pattern.permute.xlu0 0
        %664 = vperm.xlu0 %663, %v410
        %v665 = vpop.permute.xlu0 %664
        %668 = vset.pattern.permute.xlu0 0
        %669 = vperm.xlu0 %668, %v411
        %v670 = vpop.permute.xlu0 %669
        %673 = vset.pattern.permute.xlu0 0
        %674 = vperm.xlu0 %673, %v412
        %v675 = vpop.permute.xlu0 %674
        %678 = vset.pattern.permute.xlu0 0
        %679 = vperm.xlu0 %678, %v413
        %v680 = vpop.permute.xlu0 %679
        %683 = vset.pattern.permute.xlu0 0
        %684 = vperm.xlu0 %683, %v414
        %v685 = vpop.permute.xlu0 %684
        %688 = vset.pattern.permute.xlu0 0
        %689 = vperm.xlu0 %688, %v415
        %v690 = vpop.permute.xlu0 %689
        %693 = vset.pattern.permute.xlu0 0
        %694 = vperm.xlu0 %693, %v416
        %v695 = vpop.permute.xlu0 %694
        %698 = vset.pattern.permute.xlu0 0
        %699 = vperm.xlu0 %698, %v417
        %v700 = vpop.permute.xlu0 %699
        %703 = vset.pattern.permute.xlu0 0
        %704 = vperm.xlu0 %703, %v418
        %v705 = vpop.permute.xlu0 %704
        %708 = vset.pattern.permute.xlu0 0
        %709 = vperm.xlu0 %708, %v419
        %v710 = vpop.permute.xlu0 %709
        %713 = vset.pattern.permute.xlu0 0
        %714 = vperm.xlu0 %713, %v420
        %v715 = vpop.permute.xlu0 %714
        %718 = vset.pattern.permute.xlu0 0
        %719 = vperm.xlu0 %718, %v421
        %v720 = vpop.permute.xlu0 %719
        %723 = vset.pattern.permute.xlu0 0
        %724 = vperm.xlu0 %723, %v422
        %v725 = vpop.permute.xlu0 %724
        %728 = vset.pattern.permute.xlu0 0
        %729 = vperm.xlu0 %728, %v423
        %v730 = vpop.permute.xlu0 %729
        %733 = vset.pattern.permute.xlu0 0
        %734 = vperm.xlu0 %733, %v424
        %v735 = vpop.permute.xlu0 %734
        %738 = vset.pattern.permute.xlu0 0
        %739 = vperm.xlu0 %738, %v425
        %v740 = vpop.permute.xlu0 %739
        %743 = vset.pattern.permute.xlu0 0
        %744 = vperm.xlu0 %743, %v426
        %v745 = vpop.permute.xlu0 %744
        %v751 = vcombine.high %v295, %v295
        %v752 = vcombine.high %v296, %v296
        %v753 = vcombine.high %v297, %v297
        %v754 = vcombine.high %v298, %v298
        %vm755 = vcmask 23552
        %v757 = vsel %vm755, %v299, 0
        %v760 = vsel %vm755, %v300, 0
        %v763 = vsel %vm755, %v301, 0
        %v766 = vsel %vm755, %v302, 0
        %v769 = vsel %vm755, %v303, 0
        %v772 = vsel %vm755, %v304, 0
        %v775 = vsel %vm755, %v305, 0
        %v778 = vsel %vm755, %v306, 0
        %v781 = vsel %vm755, %v307, 0
        %v784 = vsel %vm755, %v308, 0
        %v787 = vsel %vm755, %v309, 0
        %v790 = vsel %vm755, %v310, 0
        %v793 = vsel %vm755, %v311, 0
        %v796 = vsel %vm755, %v312, 0
        %v799 = vsel %vm755, %v313, 0
        %v802 = vsel %vm755, %v314, 0
        %v805 = vsel %vm755, %v315, 0
        %v808 = vsel %vm755, %v316, 0
        %v811 = vsel %vm755, %v317, 0
        %v814 = vsel %vm755, %v318, 0
        %v817 = vsel %vm755, %v319, 0
        %v820 = vsel %vm755, %v320, 0
        %v823 = vsel %vm755, %v321, 0
        %v826 = vsel %vm755, %v322, 0
        %v829 = vsel %vm755, %v323, 0
        %v832 = vsel %vm755, %v324, 0
        %v835 = vsel %vm755, %v325, 0
        %v838 = vsel %vm755, %v326, 0
        %v841 = vsel %vm755, %v327, 0
        %v844 = vsel %vm755, %v328, 0
        %v847 = vsel %vm755, %v329, 0
        %v850 = vsel %vm755, %v330, 0
        %v853 = vsel %vm755, %v331, 0
        %v856 = vsel %vm755, %v332, 0
        %v859 = vsel %vm755, %v333, 0
        %v862 = vsel %vm755, %v334, 0
        %v865 = vsel %vm755, %v335, 0
        %v868 = vsel %vm755, %v336, 0
        %v871 = vsel %vm755, %v337, 0
        %v874 = vsel %vm755, %v338, 0
        %v877 = vsel %vm755, %v339, 0
        %v880 = vsel %vm755, %v340, 0
        %v883 = vsel %vm755, %v341, 0
        %v886 = vsel %vm755, %v342, 0
        %v889 = vsel %vm755, %v343, 0
        %v892 = vsel %vm755, %v344, 0
        %v895 = vsel %vm755, %v345, 0
        %v898 = vsel %vm755, %v346, 0
        %v901 = vsel %vm755, %v347, 0
        %v904 = vsel %vm755, %v348, 0
        %v907 = vsel %vm755, %v349, 0
        %v910 = vsel %vm755, %v350, 0
        %v913 = vsel %vm755, %v351, 0
        %v916 = vsel %vm755, %v352, 0
        %v919 = vsel %vm755, %v353, 0
        %v922 = vsel %vm755, %v354, 0
        %v925 = vsel %vm755, %v355, 0
        %v928 = vsel %vm755, %v356, 0
        %v931 = vsel %vm755, %v357, 0
        %v934 = vsel %vm755, %v358, 0
        %v937 = vsel %vm755, %v359, 0
        %v940 = vsel %vm755, %v360, 0
        %v943 = vsel %vm755, %v361, 0
        %v946 = vsel %vm755, %v362, 0
        %vm948 = vcmask 1042432
        %v949 = vsel %vm948, %v295, 0
        %v951 = vsel %vm948, %v751, 0
        %v953 = vsel %vm948, %v296, 0
        %v955 = vsel %vm948, %v752, 0
        %v957 = vsel %vm948, %v297, 0
        %v959 = vsel %vm948, %v753, 0
        %v961 = vsel %vm948, %v298, 0
        %v963 = vsel %vm948, %v754, 0
        %965 = vmatprep.subr.mxu0 %v951
        %966 = vmatpush1.msra.mxu0 %v949
        %967 = vmatprep.subr.mxu0 0.0
        %968 = vmatpush1.msra.mxu0 0.0
        %969 = vmatprep.subr.mxu0 0.0
        %970 = vmatpush1.msra.mxu0 0.0
        %971 = vmatprep.subr.mxu0 0.0
        %972 = vmatpush1.msra.mxu0 0.0
        %973 = vmatprep.subr.mxu0 0.0
        %974 = vmatpush1.msra.mxu0 0.0
        %975 = vmatprep.subr.mxu0 0.0
        %976 = vmatpush1.msra.mxu0 0.0
        %977 = vmatprep.subr.mxu0 0.0
        %978 = vmatpush1.msra.mxu0 0.0
        %979 = vmatprep.subr.mxu0 0.0
        %980 = vmatpush1.msra.mxu0 0.0
        %981 = vmatprep.subr.mxu0 0.0
        %982 = vmatpush1.msra.mxu0 0.0
        %983 = vmatprep.subr.mxu0 0.0
        %984 = vmatpush1.msra.mxu0 0.0
        %985 = vmatprep.subr.mxu0 0.0
        %986 = vmatpush1.msra.mxu0 0.0
        %987 = vmatprep.subr.mxu0 0.0
        %988 = vmatpush1.msra.mxu0 0.0
        %989 = vmatprep.subr.mxu0 0.0
        %990 = vmatpush1.msra.mxu0 0.0
        %991 = vmatprep.subr.mxu0 0.0
        %992 = vmatpush1.msra.mxu0 0.0
        %993 = vmatprep.subr.mxu0 0.0
        %994 = vmatpush1.msra.mxu0 0.0
        %995 = vmatprep.subr.mxu0 0.0
        %996 = vmatpush1.msra.mxu0 0.0
        %997 = vmatprep.subr.mxu0 0.0
        %998 = vmatpush1.msra.mxu0 0.0
        %999 = vmatprep.subr.mxu0 0.0
        %1000 = vmatpush1.msra.mxu0 0.0
        %1001 = vmatprep.subr.mxu0 0.0
        %1002 = vmatpush1.msra.mxu0 0.0
        %1003 = vmatprep.subr.mxu0 0.0
        %1004 = vmatpush1.msra.mxu0 0.0
        %1005 = vmatprep.subr.mxu0 0.0
        %1006 = vmatpush1.msra.mxu0 0.0
        %1007 = vmatprep.subr.mxu0 0.0
        %1008 = vmatpush1.msra.mxu0 0.0
        %1009 = vmatprep.subr.mxu0 0.0
        %1010 = vmatpush1.msra.mxu0 0.0
        %1011 = vmatprep.subr.mxu0 0.0
        %1012 = vmatpush1.msra.mxu0 0.0
        %1013 = vmatprep.subr.mxu0 0.0
        %1014 = vmatpush1.msra.mxu0 0.0
        %1015 = vmatprep.subr.mxu0 0.0
        %1016 = vmatpush1.msra.mxu0 0.0
        %1017 = vmatprep.subr.mxu0 0.0
        %1018 = vmatpush1.msra.mxu0 0.0
        %1019 = vmatprep.subr.mxu0 0.0
        %1020 = vmatpush1.msra.mxu0 0.0
        %1021 = vmatprep.subr.mxu0 0.0
        %1022 = vmatpush1.msra.mxu0 0.0
        %1023 = vmatprep.subr.mxu0 0.0
        %1024 = vmatpush1.msra.mxu0 0.0
        %1025 = vmatprep.subr.mxu0 0.0
        %1026 = vmatpush1.msra.mxu0 0.0
        %1027 = vmatprep.subr.mxu0 0.0
        %1028 = vmatpush1.msra.mxu0 0.0
        %1029 = vmatprep.mubr.f32.mxu0 0.0
        %1030 = vmatmul.mubr.f32.gmra.mrb[0].mxu0 %v757
        %v1031 = vpop.f32.mrb[0].mxu0
        %v1032 = vadd.f32 %v430, %v1031
        %v1033 = vpop.f32.mrb[0].mxu0
        %v1034 = vadd.f32 %v430, %v1033
        %1035 = vmatprep.mubr.f32.mxu0 0.0
        %1036 = vmatmul.mubr.f32.gmra.mrb[0].mxu0 %v760
        %v1037 = vpop.f32.mrb[0].mxu0
        %v1038 = vadd.f32 %v435, %v1037
        %v1039 = vpop.f32.mrb[0].mxu0
        %v1040 = vadd.f32 %v435, %v1039
        %1041 = vmatprep.mubr.f32.mxu0 0.0
        %1042 = vmatmul.mubr.f32.gmra.mrb[0].mxu0 %v763
        %v1043 = vpop.f32.mrb[0].mxu0
        %v1044 = vadd.f32 %v440, %v1043
        %v1045 = vpop.f32.mrb[0].mxu0
        %v1046 = vadd.f32 %v440, %v1045
        %1047 = vmatprep.mubr.f32.mxu0 0.0
        %1048 = vmatmul.mubr.f32.gmra.mrb[0].mxu0 %v766
        %v1049 = vpop.f32.mrb[0].mxu0
        %v1050 = vadd.f32 %v445, %v1049
        %v1051 = vpop.f32.mrb[0].mxu0
        %v1052 = vadd.f32 %v445, %v1051
        %1053 = vmatprep.mubr.f32.mxu0 0.0
        %1054 = vmatmul.mubr.f32.gmra.mrb[0].mxu0 %v769
        %v1055 = vpop.f32.mrb[0].mxu0
        %v1056 = vadd.f32 %v450, %v1055
        %v1057 = vpop.f32.mrb[0].mxu0
        %v1058 = vadd.f32 %v450, %v1057
        %1059 = vmatprep.mubr.f32.mxu0 0.0
        %1060 = vmatmul.mubr.f32.gmra.mrb[0].mxu0 %v772
        %v1061 = vpop.f32.mrb[0].mxu0
        %v1062 = vadd.f32 %v455, %v1061
        %v1063 = vpop.f32.mrb[0].mxu0
        %v1064 = vadd.f32 %v455, %v1063
        %1065 = vmatprep.mubr.f32.mxu0 0.0
        %1066 = vmatmul.mubr.f32.gmra.mrb[0].mxu0 %v775
        %v1067 = vpop.f32.mrb[0].mxu0
        %v1068 = vadd.f32 %v460, %v1067
        %v1069 = vpop.f32.mrb[0].mxu0
        %v1070 = vadd.f32 %v460, %v1069
        %1071 = vmatprep.mubr.f32.mxu0 0.0
        %1072 = vmatmul.mubr.f32.gmra.mrb[0].mxu0 %v778
        %v1073 = vpop.f32.mrb[0].mxu0
        %v1074 = vadd.f32 %v465, %v1073
        %v1075 = vpop.f32.mrb[0].mxu0
        %v1076 = vadd.f32 %v465, %v1075
        %1077 = vmatprep.mubr.f32.mxu0 0.0
        %1078 = vmatmul.mubr.f32.gmra.mrb[0].mxu0 %v781
        %v1079 = vpop.f32.mrb[0].mxu0
        %v1080 = vadd.f32 %v470, %v1079
        %v1081 = vpop.f32.mrb[0].mxu0
        %v1082 = vadd.f32 %v470, %v1081
        %1083 = vmatprep.mubr.f32.mxu0 0.0
        %1084 = vmatmul.mubr.f32.gmra.mrb[0].mxu0 %v784
        %v1085 = vpop.f32.mrb[0].mxu0
        %v1086 = vadd.f32 %v475, %v1085
        %v1087 = vpop.f32.mrb[0].mxu0
        %v1088 = vadd.f32 %v475, %v1087
        %1089 = vmatprep.mubr.f32.mxu0 0.0
        %1090 = vmatmul.mubr.f32.gmra.mrb[0].mxu0 %v787
        %v1091 = vpop.f32.mrb[0].mxu0
        %v1092 = vadd.f32 %v480, %v1091
        %v1093 = vpop.f32.mrb[0].mxu0
        %v1094 = vadd.f32 %v480, %v1093
        %1095 = vmatprep.mubr.f32.mxu0 0.0
        %1096 = vmatmul.mubr.f32.gmra.mrb[0].mxu0 %v790
        %v1097 = vpop.f32.mrb[0].mxu0
        %v1098 = vadd.f32 %v485, %v1097
        %v1099 = vpop.f32.mrb[0].mxu0
        %v1100 = vadd.f32 %v485, %v1099
        %1101 = vmatprep.mubr.f32.mxu0 0.0
        %1102 = vmatmul.mubr.f32.gmra.mrb[0].mxu0 %v793
        %v1103 = vpop.f32.mrb[0].mxu0
        %v1104 = vadd.f32 %v490, %v1103
        %v1105 = vpop.f32.mrb[0].mxu0
        %v1106 = vadd.f32 %v490, %v1105
        %1107 = vmatprep.mubr.f32.mxu0 0.0
        %1108 = vmatmul.mubr.f32.gmra.mrb[0].mxu0 %v796
        %v1109 = vpop.f32.mrb[0].mxu0
        %v1110 = vadd.f32 %v495, %v1109
        %v1111 = vpop.f32.mrb[0].mxu0
        %v1112 = vadd.f32 %v495, %v1111
        %1113 = vmatprep.mubr.f32.mxu0 0.0
        %1114 = vmatmul.mubr.f32.gmra.mrb[0].mxu0 %v799
        %v1115 = vpop.f32.mrb[0].mxu0
        %v1116 = vadd.f32 %v500, %v1115
        %v1117 = vpop.f32.mrb[0].mxu0
        %v1118 = vadd.f32 %v500, %v1117
        %1119 = vmatprep.mubr.f32.mxu0 0.0
        %1120 = vmatmul.mubr.f32.gmra.mrb[0].mxu0 %v802
        %v1121 = vpop.f32.mrb[0].mxu0
        %v1122 = vadd.f32 %v505, %v1121
        %v1123 = vpop.f32.mrb[0].mxu0
        %v1124 = vadd.f32 %v505, %v1123
        %1125 = vmatprep.mubr.f32.mxu0 0.0
        %1126 = vmatmul.mubr.f32.gmra.mrb[0].mxu0 %v805
        %v1127 = vpop.f32.mrb[0].mxu0
        %v1128 = vadd.f32 %v510, %v1127
        %v1129 = vpop.f32.mrb[0].mxu0
        %v1130 = vadd.f32 %v510, %v1129
        %1131 = vmatprep.mubr.f32.mxu0 0.0
        %1132 = vmatmul.mubr.f32.gmra.mrb[0].mxu0 %v808
        %v1133 = vpop.f32.mrb[0].mxu0
        %v1134 = vadd.f32 %v515, %v1133
        %v1135 = vpop.f32.mrb[0].mxu0
        %v1136 = vadd.f32 %v515, %v1135
        %1137 = vmatprep.mubr.f32.mxu0 0.0
        %1138 = vmatmul.mubr.f32.gmra.mrb[0].mxu0 %v811
        %v1139 = vpop.f32.mrb[0].mxu0
        %v1140 = vadd.f32 %v520, %v1139
        %v1141 = vpop.f32.mrb[0].mxu0
        %v1142 = vadd.f32 %v520, %v1141
        %1143 = vmatprep.mubr.f32.mxu0 0.0
        %1144 = vmatmul.mubr.f32.gmra.mrb[0].mxu0 %v814
        %v1145 = vpop.f32.mrb[0].mxu0
        %v1146 = vadd.f32 %v525, %v1145
        %v1147 = vpop.f32.mrb[0].mxu0
        %v1148 = vadd.f32 %v525, %v1147
        %1149 = vmatprep.mubr.f32.mxu0 0.0
        %1150 = vmatmul.mubr.f32.gmra.mrb[0].mxu0 %v817
        %v1151 = vpop.f32.mrb[0].mxu0
        %v1152 = vadd.f32 %v530, %v1151
        %v1153 = vpop.f32.mrb[0].mxu0
        %v1154 = vadd.f32 %v530, %v1153
        %1155 = vmatprep.mubr.f32.mxu0 0.0
        %1156 = vmatmul.mubr.f32.gmra.mrb[0].mxu0 %v820
        %v1157 = vpop.f32.mrb[0].mxu0
        %v1158 = vadd.f32 %v535, %v1157
        %v1159 = vpop.f32.mrb[0].mxu0
        %v1160 = vadd.f32 %v535, %v1159
        %1161 = vmatprep.mubr.f32.mxu0 0.0
        %1162 = vmatmul.mubr.f32.gmra.mrb[0].mxu0 %v823
        %v1163 = vpop.f32.mrb[0].mxu0
        %v1164 = vadd.f32 %v540, %v1163
        %v1165 = vpop.f32.mrb[0].mxu0
        %v1166 = vadd.f32 %v540, %v1165
        %1167 = vmatprep.mubr.f32.mxu0 0.0
        %1168 = vmatmul.mubr.f32.gmra.mrb[0].mxu0 %v826
        %v1169 = vpop.f32.mrb[0].mxu0
        %v1170 = vadd.f32 %v545, %v1169
        %v1171 = vpop.f32.mrb[0].mxu0
        %v1172 = vadd.f32 %v545, %v1171
        %1173 = vmatprep.mubr.f32.mxu0 0.0
        %1174 = vmatmul.mubr.f32.gmra.mrb[0].mxu0 %v829
        %v1175 = vpop.f32.mrb[0].mxu0
        %v1176 = vadd.f32 %v550, %v1175
        %v1177 = vpop.f32.mrb[0].mxu0
        %v1178 = vadd.f32 %v550, %v1177
        %1179 = vmatprep.mubr.f32.mxu0 0.0
        %1180 = vmatmul.mubr.f32.gmra.mrb[0].mxu0 %v832
        %v1181 = vpop.f32.mrb[0].mxu0
        %v1182 = vadd.f32 %v555, %v1181
        %v1183 = vpop.f32.mrb[0].mxu0
        %v1184 = vadd.f32 %v555, %v1183
        %1185 = vmatprep.mubr.f32.mxu0 0.0
        %1186 = vmatmul.mubr.f32.gmra.mrb[0].mxu0 %v835
        %v1187 = vpop.f32.mrb[0].mxu0
        %v1188 = vadd.f32 %v560, %v1187
        %v1189 = vpop.f32.mrb[0].mxu0
        %v1190 = vadd.f32 %v560, %v1189
        %1191 = vmatprep.mubr.f32.mxu0 0.0
        %1192 = vmatmul.mubr.f32.gmra.mrb[0].mxu0 %v838
        %v1193 = vpop.f32.mrb[0].mxu0
        %v1194 = vadd.f32 %v565, %v1193
        %v1195 = vpop.f32.mrb[0].mxu0
        %v1196 = vadd.f32 %v565, %v1195
        %1197 = vmatprep.mubr.f32.mxu0 0.0
        %1198 = vmatmul.mubr.f32.gmra.mrb[0].mxu0 %v841
        %v1199 = vpop.f32.mrb[0].mxu0
        %v1200 = vadd.f32 %v570, %v1199
        %v1201 = vpop.f32.mrb[0].mxu0
        %v1202 = vadd.f32 %v570, %v1201
        %1203 = vmatprep.mubr.f32.mxu0 0.0
        %1204 = vmatmul.mubr.f32.gmra.mrb[0].mxu0 %v844
        %v1205 = vpop.f32.mrb[0].mxu0
        %v1206 = vadd.f32 %v575, %v1205
        %v1207 = vpop.f32.mrb[0].mxu0
        %v1208 = vadd.f32 %v575, %v1207
        %1209 = vmatprep.mubr.f32.mxu0 0.0
        %1210 = vmatmul.mubr.f32.gmra.mrb[0].mxu0 %v847
        %v1211 = vpop.f32.mrb[0].mxu0
        %v1212 = vadd.f32 %v580, %v1211
        %v1213 = vpop.f32.mrb[0].mxu0
        %v1214 = vadd.f32 %v580, %v1213
        %1215 = vmatprep.mubr.f32.mxu0 0.0
        %1216 = vmatmul.mubr.f32.gmra.mrb[0].mxu0 %v850
        %v1217 = vpop.f32.mrb[0].mxu0
        %v1218 = vadd.f32 %v585, %v1217
        %v1219 = vpop.f32.mrb[0].mxu0
        %v1220 = vadd.f32 %v585, %v1219
        %1221 = vmatprep.mubr.f32.mxu0 0.0
        %1222 = vmatmul.mubr.f32.gmra.mrb[0].mxu0 %v853
        %v1223 = vpop.f32.mrb[0].mxu0
        %v1224 = vadd.f32 %v590, %v1223
        %v1225 = vpop.f32.mrb[0].mxu0
        %v1226 = vadd.f32 %v590, %v1225
        %1227 = vmatprep.mubr.f32.mxu0 0.0
        %1228 = vmatmul.mubr.f32.gmra.mrb[0].mxu0 %v856
        %v1229 = vpop.f32.mrb[0].mxu0
        %v1230 = vadd.f32 %v595, %v1229
        %v1231 = vpop.f32.mrb[0].mxu0
        %v1232 = vadd.f32 %v595, %v1231
        %1233 = vmatprep.mubr.f32.mxu0 0.0
        %1234 = vmatmul.mubr.f32.gmra.mrb[0].mxu0 %v859
        %v1235 = vpop.f32.mrb[0].mxu0
        %v1236 = vadd.f32 %v600, %v1235
        %v1237 = vpop.f32.mrb[0].mxu0
        %v1238 = vadd.f32 %v600, %v1237
        %1239 = vmatprep.mubr.f32.mxu0 0.0
        %1240 = vmatmul.mubr.f32.gmra.mrb[0].mxu0 %v862
        %v1241 = vpop.f32.mrb[0].mxu0
        %v1242 = vadd.f32 %v605, %v1241
        %v1243 = vpop.f32.mrb[0].mxu0
        %v1244 = vadd.f32 %v605, %v1243
        %1245 = vmatprep.mubr.f32.mxu0 0.0
        %1246 = vmatmul.mubr.f32.gmra.mrb[0].mxu0 %v865
        %v1247 = vpop.f32.mrb[0].mxu0
        %v1248 = vadd.f32 %v610, %v1247
        %v1249 = vpop.f32.mrb[0].mxu0
        %v1250 = vadd.f32 %v610, %v1249
        %1251 = vmatprep.mubr.f32.mxu0 0.0
        %1252 = vmatmul.mubr.f32.gmra.mrb[0].mxu0 %v868
        %v1253 = vpop.f32.mrb[0].mxu0
        %v1254 = vadd.f32 %v615, %v1253
        %v1255 = vpop.f32.mrb[0].mxu0
        %v1256 = vadd.f32 %v615, %v1255
        %1257 = vmatprep.mubr.f32.mxu0 0.0
        %1258 = vmatmul.mubr.f32.gmra.mrb[0].mxu0 %v871
        %v1259 = vpop.f32.mrb[0].mxu0
        %v1260 = vadd.f32 %v620, %v1259
        %v1261 = vpop.f32.mrb[0].mxu0
        %v1262 = vadd.f32 %v620, %v1261
        %1263 = vmatprep.mubr.f32.mxu0 0.0
        %1264 = vmatmul.mubr.f32.gmra.mrb[0].mxu0 %v874
        %v1265 = vpop.f32.mrb[0].mxu0
        %v1266 = vadd.f32 %v625, %v1265
        %v1267 = vpop.f32.mrb[0].mxu0
        %v1268 = vadd.f32 %v625, %v1267
        %1269 = vmatprep.mubr.f32.mxu0 0.0
        %1270 = vmatmul.mubr.f32.gmra.mrb[0].mxu0 %v877
        %v1271 = vpop.f32.mrb[0].mxu0
        %v1272 = vadd.f32 %v630, %v1271
        %v1273 = vpop.f32.mrb[0].mxu0
        %v1274 = vadd.f32 %v630, %v1273
        %1275 = vmatprep.mubr.f32.mxu0 0.0
        %1276 = vmatmul.mubr.f32.gmra.mrb[0].mxu0 %v880
        %v1277 = vpop.f32.mrb[0].mxu0
        %v1278 = vadd.f32 %v635, %v1277
        %v1279 = vpop.f32.mrb[0].mxu0
        %v1280 = vadd.f32 %v635, %v1279
        %1281 = vmatprep.mubr.f32.mxu0 0.0
        %1282 = vmatmul.mubr.f32.gmra.mrb[0].mxu0 %v883
        %v1283 = vpop.f32.mrb[0].mxu0
        %v1284 = vadd.f32 %v640, %v1283
        %v1285 = vpop.f32.mrb[0].mxu0
        %v1286 = vadd.f32 %v640, %v1285
        %1287 = vmatprep.mubr.f32.mxu0 0.0
        %1288 = vmatmul.mubr.f32.gmra.mrb[0].mxu0 %v886
        %v1289 = vpop.f32.mrb[0].mxu0
        %v1290 = vadd.f32 %v645, %v1289
        %v1291 = vpop.f32.mrb[0].mxu0
        %v1292 = vadd.f32 %v645, %v1291
        %1293 = vmatprep.mubr.f32.mxu0 0.0
        %1294 = vmatmul.mubr.f32.gmra.mrb[0].mxu0 %v889
        %v1295 = vpop.f32.mrb[0].mxu0
        %v1296 = vadd.f32 %v650, %v1295
        %v1297 = vpop.f32.mrb[0].mxu0
        %v1298 = vadd.f32 %v650, %v1297
        %1299 = vmatprep.mubr.f32.mxu0 0.0
        %1300 = vmatmul.mubr.f32.gmra.mrb[0].mxu0 %v892
        %v1301 = vpop.f32.mrb[0].mxu0
        %v1302 = vadd.f32 %v655, %v1301
        %v1303 = vpop.f32.mrb[0].mxu0
        %v1304 = vadd.f32 %v655, %v1303
        %1305 = vmatprep.mubr.f32.mxu0 0.0
        %1306 = vmatmul.mubr.f32.gmra.mrb[0].mxu0 %v895
        %v1307 = vpop.f32.mrb[0].mxu0
        %v1308 = vadd.f32 %v660, %v1307
        %v1309 = vpop.f32.mrb[0].mxu0
        %v1310 = vadd.f32 %v660, %v1309
        %1311 = vmatprep.mubr.f32.mxu0 0.0
        %1312 = vmatmul.mubr.f32.gmra.mrb[0].mxu0 %v898
        %v1313 = vpop.f32.mrb[0].mxu0
        %v1314 = vadd.f32 %v665, %v1313
        %v1315 = vpop.f32.mrb[0].mxu0
        %v1316 = vadd.f32 %v665, %v1315
        %1317 = vmatprep.mubr.f32.mxu0 0.0
        %1318 = vmatmul.mubr.f32.gmra.mrb[0].mxu0 %v901
        %v1319 = vpop.f32.mrb[0].mxu0
        %v1320 = vadd.f32 %v670, %v1319
        %v1321 = vpop.f32.mrb[0].mxu0
        %v1322 = vadd.f32 %v670, %v1321
        %1323 = vmatprep.mubr.f32.mxu0 0.0
        %1324 = vmatmul.mubr.f32.gmra.mrb[0].mxu0 %v904
        %v1325 = vpop.f32.mrb[0].mxu0
        %v1326 = vadd.f32 %v675, %v1325
        %v1327 = vpop.f32.mrb[0].mxu0
        %v1328 = vadd.f32 %v675, %v1327
        %1329 = vmatprep.mubr.f32.mxu0 0.0
        %1330 = vmatmul.mubr.f32.gmra.mrb[0].mxu0 %v907
        %v1331 = vpop.f32.mrb[0].mxu0
        %v1332 = vadd.f32 %v680, %v1331
        %v1333 = vpop.f32.mrb[0].mxu0
        %v1334 = vadd.f32 %v680, %v1333
        %1335 = vmatprep.mubr.f32.mxu0 0.0
        %1336 = vmatmul.mubr.f32.gmra.mrb[0].mxu0 %v910
        %v1337 = vpop.f32.mrb[0].mxu0
        %v1338 = vadd.f32 %v685, %v1337
        %v1339 = vpop.f32.mrb[0].mxu0
        %v1340 = vadd.f32 %v685, %v1339
        %1341 = vmatprep.mubr.f32.mxu0 0.0
        %1342 = vmatmul.mubr.f32.gmra.mrb[0].mxu0 %v913
        %v1343 = vpop.f32.mrb[0].mxu0
        %v1344 = vadd.f32 %v690, %v1343
        %v1345 = vpop.f32.mrb[0].mxu0
        %v1346 = vadd.f32 %v690, %v1345
        %1347 = vmatprep.mubr.f32.mxu0 0.0
        %1348 = vmatmul.mubr.f32.gmra.mrb[0].mxu0 %v916
        %v1349 = vpop.f32.mrb[0].mxu0
        %v1350 = vadd.f32 %v695, %v1349
        %v1351 = vpop.f32.mrb[0].mxu0
        %v1352 = vadd.f32 %v695, %v1351
        %1353 = vmatprep.mubr.f32.mxu0 0.0
        %1354 = vmatmul.mubr.f32.gmra.mrb[0].mxu0 %v919
        %v1355 = vpop.f32.mrb[0].mxu0
        %v1356 = vadd.f32 %v700, %v1355
        %v1357 = vpop.f32.mrb[0].mxu0
        %v1358 = vadd.f32 %v700, %v1357
        %1359 = vmatprep.mubr.f32.mxu0 0.0
        %1360 = vmatmul.mubr.f32.gmra.mrb[0].mxu0 %v922
        %v1361 = vpop.f32.mrb[0].mxu0
        %v1362 = vadd.f32 %v705, %v1361
        %v1363 = vpop.f32.mrb[0].mxu0
        %v1364 = vadd.f32 %v705, %v1363
        %1365 = vmatprep.mubr.f32.mxu0 0.0
        %1366 = vmatmul.mubr.f32.gmra.mrb[0].mxu0 %v925
        %v1367 = vpop.f32.mrb[0].mxu0
        %v1368 = vadd.f32 %v710, %v1367
        %v1369 = vpop.f32.mrb[0].mxu0
        %v1370 = vadd.f32 %v710, %v1369
        %1371 = vmatprep.mubr.f32.mxu0 0.0
        %1372 = vmatmul.mubr.f32.gmra.mrb[0].mxu0 %v928
        %v1373 = vpop.f32.mrb[0].mxu0
        %v1374 = vadd.f32 %v715, %v1373
        %v1375 = vpop.f32.mrb[0].mxu0
        %v1376 = vadd.f32 %v715, %v1375
        %1377 = vmatprep.mubr.f32.mxu0 0.0
        %1378 = vmatmul.mubr.f32.gmra.mrb[0].mxu0 %v931
        %v1379 = vpop.f32.mrb[0].mxu0
        %v1380 = vadd.f32 %v720, %v1379
        %v1381 = vpop.f32.mrb[0].mxu0
        %v1382 = vadd.f32 %v720, %v1381
        %1383 = vmatprep.mubr.f32.mxu0 0.0
        %1384 = vmatmul.mubr.f32.gmra.mrb[0].mxu0 %v934
        %v1385 = vpop.f32.mrb[0].mxu0
        %v1386 = vadd.f32 %v725, %v1385
        %v1387 = vpop.f32.mrb[0].mxu0
        %v1388 = vadd.f32 %v725, %v1387
        %1389 = vmatprep.mubr.f32.mxu0 0.0
        %1390 = vmatmul.mubr.f32.gmra.mrb[0].mxu0 %v937
        %v1391 = vpop.f32.mrb[0].mxu0
        %v1392 = vadd.f32 %v730, %v1391
        %v1393 = vpop.f32.mrb[0].mxu0
        %v1394 = vadd.f32 %v730, %v1393
        %1395 = vmatprep.mubr.f32.mxu0 0.0
        %1396 = vmatmul.mubr.f32.gmra.mrb[0].mxu0 %v940
        %v1397 = vpop.f32.mrb[0].mxu0
        %v1398 = vadd.f32 %v735, %v1397
        %v1399 = vpop.f32.mrb[0].mxu0
        %v1400 = vadd.f32 %v735, %v1399
        %1401 = vmatprep.mubr.f32.mxu0 0.0
        %1402 = vmatmul.mubr.f32.gmra.mrb[0].mxu0 %v943
        %v1403 = vpop.f32.mrb[0].mxu0
        %v1404 = vadd.f32 %v740, %v1403
        %v1405 = vpop.f32.mrb[0].mxu0
        %v1406 = vadd.f32 %v740, %v1405
        %1407 = vmatprep.mubr.f32.mxu0 0.0
        %1408 = vmatmul.mubr.f32.gmra.mrb[0].mxu0 %v946
        %v1409 = vpop.f32.mrb[0].mxu0
        %v1410 = vadd.f32 %v745, %v1409
        %v1411 = vpop.f32.mrb[0].mxu0
        %v1412 = vadd.f32 %v745, %v1411
        %1413 = vdwg.mxu0
        %1414 = vmatprep.subr.mxu0 %v955
        %1415 = vmatpush1.msra.mxu0 %v953
        %1416 = vmatprep.subr.mxu0 0.0
        %1417 = vmatpush1.msra.mxu0 0.0
        %1418 = vmatprep.subr.mxu0 0.0
        %1419 = vmatpush1.msra.mxu0 0.0
        %1420 = vmatprep.subr.mxu0 0.0
        %1421 = vmatpush1.msra.mxu0 0.0
        %1422 = vmatprep.subr.mxu0 0.0
        %1423 = vmatpush1.msra.mxu0 0.0
        %1424 = vmatprep.subr.mxu0 0.0
        %1425 = vmatpush1.msra.mxu0 0.0
        %1426 = vmatprep.subr.mxu0 0.0
        %1427 = vmatpush1.msra.mxu0 0.0
        %1428 = vmatprep.subr.mxu0 0.0
        %1429 = vmatpush1.msra.mxu0 0.0
        %1430 = vmatprep.subr.mxu0 0.0
        %1431 = vmatpush1.msra.mxu0 0.0
        %1432 = vmatprep.subr.mxu0 0.0
        %1433 = vmatpush1.msra.mxu0 0.0
        %1434 = vmatprep.subr.mxu0 0.0
        %1435 = vmatpush1.msra.mxu0 0.0
        %1436 = vmatprep.subr.mxu0 0.0
        %1437 = vmatpush1.msra.mxu0 0.0
        %1438 = vmatprep.subr.mxu0 0.0
        %1439 = vmatpush1.msra.mxu0 0.0
        %1440 = vmatprep.subr.mxu0 0.0
        %1441 = vmatpush1.msra.mxu0 0.0
        %1442 = vmatprep.subr.mxu0 0.0
        %1443 = vmatpush1.msra.mxu0 0.0
        %1444 = vmatprep.subr.mxu0 0.0
        %1445 = vmatpush1.msra.mxu0 0.0
        %1446 = vmatprep.subr.mxu0 0.0
        %1447 = vmatpush1.msra.mxu0 0.0
        %1448 = vmatprep.subr.mxu0 0.0
        %1449 = vmatpush1.msra.mxu0 0.0
        %1450 = vmatprep.subr.mxu0 0.0
        %1451 = vmatpush1.msra.mxu0 0.0
        %1452 = vmatprep.subr.mxu0 0.0
        %1453 = vmatpush1.msra.mxu0 0.0
        %1454 = vmatprep.subr.mxu0 0.0
        %1455 = vmatpush1.msra.mxu0 0.0
        %1456 = vmatprep.subr.mxu0 0.0
        %1457 = vmatpush1.msra.mxu0 0.0
        %1458 = vmatprep.subr.mxu0 0.0
        %1459 = vmatpush1.msra.mxu0 0.0
        %1460 = vmatprep.subr.mxu0 0.0
        %1461 = vmatpush1.msra.mxu0 0.0
        %1462 = vmatprep.subr.mxu0 0.0
        %1463 = vmatpush1.msra.mxu0 0.0
        %1464 = vmatprep.subr.mxu0 0.0
        %1465 = vmatpush1.msra.mxu0 0.0
        %1466 = vmatprep.subr.mxu0 0.0
        %1467 = vmatpush1.msra.mxu0 0.0
        %1468 = vmatprep.subr.mxu0 0.0
        %1469 = vmatpush1.msra.mxu0 0.0
        %1470 = vmatprep.subr.mxu0 0.0
        %1471 = vmatpush1.msra.mxu0 0.0
        %1472 = vmatprep.subr.mxu0 0.0
        %1473 = vmatpush1.msra.mxu0 0.0
        %1474 = vmatprep.subr.mxu0 0.0
        %1475 = vmatpush1.msra.mxu0 0.0
        %1476 = vmatprep.subr.mxu0 0.0
        %1477 = vmatpush1.msra.mxu0 0.0
        %1478 = vmatprep.mubr.f32.mxu0 0.0
        %1479 = vmatmul.mubr.f32.gmra.mrb[0].mxu0 %v757
        %v1480 = vpop.f32.mrb[0].mxu0
        %v1481 = vadd.f32 %v430, %v1480
        %v1482 = vpop.f32.mrb[0].mxu0
        %v1483 = vadd.f32 %v430, %v1482
        %1484 = vmatprep.mubr.f32.mxu0 0.0
        %1485 = vmatmul.mubr.f32.gmra.mrb[0].mxu0 %v760
        %v1486 = vpop.f32.mrb[0].mxu0
        %v1487 = vadd.f32 %v435, %v1486
        %v1488 = vpop.f32.mrb[0].mxu0
        %v1489 = vadd.f32 %v435, %v1488
        %1490 = vmatprep.mubr.f32.mxu0 0.0
        %1491 = vmatmul.mubr.f32.gmra.mrb[0].mxu0 %v763
        %v1492 = vpop.f32.mrb[0].mxu0
        %v1493 = vadd.f32 %v440, %v1492
        %v1494 = vpop.f32.mrb[0].mxu0
        %v1495 = vadd.f32 %v440, %v1494
        %1496 = vmatprep.mubr.f32.mxu0 0.0
        %1497 = vmatmul.mubr.f32.gmra.mrb[0].mxu0 %v766
        %v1498 = vpop.f32.mrb[0].mxu0
        %v1499 = vadd.f32 %v445, %v1498
        %v1500 = vpop.f32.mrb[0].mxu0
        %v1501 = vadd.f32 %v445, %v1500
        %1502 = vmatprep.mubr.f32.mxu0 0.0
        %1503 = vmatmul.mubr.f32.gmra.mrb[0].mxu0 %v769
        %v1504 = vpop.f32.mrb[0].mxu0
        %v1505 = vadd.f32 %v450, %v1504
        %v1506 = vpop.f32.mrb[0].mxu0
        %v1507 = vadd.f32 %v450, %v1506
        %1508 = vmatprep.mubr.f32.mxu0 0.0
        %1509 = vmatmul.mubr.f32.gmra.mrb[0].mxu0 %v772
        %v1510 = vpop.f32.mrb[0].mxu0
        %v1511 = vadd.f32 %v455, %v1510
        %v1512 = vpop.f32.mrb[0].mxu0
        %v1513 = vadd.f32 %v455, %v1512
        %1514 = vmatprep.mubr.f32.mxu0 0.0
        %1515 = vmatmul.mubr.f32.gmra.mrb[0].mxu0 %v775
        %v1516 = vpop.f32.mrb[0].mxu0
        %v1517 = vadd.f32 %v460, %v1516
        %v1518 = vpop.f32.mrb[0].mxu0
        %v1519 = vadd.f32 %v460, %v1518
        %1520 = vmatprep.mubr.f32.mxu0 0.0
        %1521 = vmatmul.mubr.f32.gmra.mrb[0].mxu0 %v778
        %v1522 = vpop.f32.mrb[0].mxu0
        %v1523 = vadd.f32 %v465, %v1522
        %v1524 = vpop.f32.mrb[0].mxu0
        %v1525 = vadd.f32 %v465, %v1524
        %1526 = vmatprep.mubr.f32.mxu0 0.0
        %1527 = vmatmul.mubr.f32.gmra.mrb[0].mxu0 %v781
        %v1528 = vpop.f32.mrb[0].mxu0
        %v1529 = vadd.f32 %v470, %v1528
        %v1530 = vpop.f32.mrb[0].mxu0
        %v1531 = vadd.f32 %v470, %v1530
        %1532 = vmatprep.mubr.f32.mxu0 0.0
        %1533 = vmatmul.mubr.f32.gmra.mrb[0].mxu0 %v784
        %v1534 = vpop.f32.mrb[0].mxu0
        %v1535 = vadd.f32 %v475, %v1534
        %v1536 = vpop.f32.mrb[0].mxu0
        %v1537 = vadd.f32 %v475, %v1536
        %1538 = vmatprep.mubr.f32.mxu0 0.0
        %1539 = vmatmul.mubr.f32.gmra.mrb[0].mxu0 %v787
        %v1540 = vpop.f32.mrb[0].mxu0
        %v1541 = vadd.f32 %v480, %v1540
        %v1542 = vpop.f32.mrb[0].mxu0
        %v1543 = vadd.f32 %v480, %v1542
        %1544 = vmatprep.mubr.f32.mxu0 0.0
        %1545 = vmatmul.mubr.f32.gmra.mrb[0].mxu0 %v790
        %v1546 = vpop.f32.mrb[0].mxu0
        %v1547 = vadd.f32 %v485, %v1546
        %v1548 = vpop.f32.mrb[0].mxu0
        %v1549 = vadd.f32 %v485, %v1548
        %1550 = vmatprep.mubr.f32.mxu0 0.0
        %1551 = vmatmul.mubr.f32.gmra.mrb[0].mxu0 %v793
        %v1552 = vpop.f32.mrb[0].mxu0
        %v1553 = vadd.f32 %v490, %v1552
        %v1554 = vpop.f32.mrb[0].mxu0
        %v1555 = vadd.f32 %v490, %v1554
        %1556 = vmatprep.mubr.f32.mxu0 0.0
        %1557 = vmatmul.mubr.f32.gmra.mrb[0].mxu0 %v796
        %v1558 = vpop.f32.mrb[0].mxu0
        %v1559 = vadd.f32 %v495, %v1558
        %v1560 = vpop.f32.mrb[0].mxu0
        %v1561 = vadd.f32 %v495, %v1560
        %1562 = vmatprep.mubr.f32.mxu0 0.0
        %1563 = vmatmul.mubr.f32.gmra.mrb[0].mxu0 %v799
        %v1564 = vpop.f32.mrb[0].mxu0
        %v1565 = vadd.f32 %v500, %v1564
        %v1566 = vpop.f32.mrb[0].mxu0
        %v1567 = vadd.f32 %v500, %v1566
        %1568 = vmatprep.mubr.f32.mxu0 0.0
        %1569 = vmatmul.mubr.f32.gmra.mrb[0].mxu0 %v802
        %v1570 = vpop.f32.mrb[0].mxu0
        %v1571 = vadd.f32 %v505, %v1570
        %v1572 = vpop.f32.mrb[0].mxu0
        %v1573 = vadd.f32 %v505, %v1572
        %1574 = vmatprep.mubr.f32.mxu0 0.0
        %1575 = vmatmul.mubr.f32.gmra.mrb[0].mxu0 %v805
        %v1576 = vpop.f32.mrb[0].mxu0
        %v1577 = vadd.f32 %v510, %v1576
        %v1578 = vpop.f32.mrb[0].mxu0
        %v1579 = vadd.f32 %v510, %v1578
        %1580 = vmatprep.mubr.f32.mxu0 0.0
        %1581 = vmatmul.mubr.f32.gmra.mrb[0].mxu0 %v808
        %v1582 = vpop.f32.mrb[0].mxu0
        %v1583 = vadd.f32 %v515, %v1582
        %v1584 = vpop.f32.mrb[0].mxu0
        %v1585 = vadd.f32 %v515, %v1584
        %1586 = vmatprep.mubr.f32.mxu0 0.0
        %1587 = vmatmul.mubr.f32.gmra.mrb[0].mxu0 %v811
        %v1588 = vpop.f32.mrb[0].mxu0
        %v1589 = vadd.f32 %v520, %v1588
        %v1590 = vpop.f32.mrb[0].mxu0
        %v1591 = vadd.f32 %v520, %v1590
        %1592 = vmatprep.mubr.f32.mxu0 0.0
        %1593 = vmatmul.mubr.f32.gmra.mrb[0].mxu0 %v814
        %v1594 = vpop.f32.mrb[0].mxu0
        %v1595 = vadd.f32 %v525, %v1594
        %v1596 = vpop.f32.mrb[0].mxu0
        %v1597 = vadd.f32 %v525, %v1596
        %1598 = vmatprep.mubr.f32.mxu0 0.0
        %1599 = vmatmul.mubr.f32.gmra.mrb[0].mxu0 %v817
        %v1600 = vpop.f32.mrb[0].mxu0
        %v1601 = vadd.f32 %v530, %v1600
        %v1602 = vpop.f32.mrb[0].mxu0
        %v1603 = vadd.f32 %v530, %v1602
        %1604 = vmatprep.mubr.f32.mxu0 0.0
        %1605 = vmatmul.mubr.f32.gmra.mrb[0].mxu0 %v820
        %v1606 = vpop.f32.mrb[0].mxu0
        %v1607 = vadd.f32 %v535, %v1606
        %v1608 = vpop.f32.mrb[0].mxu0
        %v1609 = vadd.f32 %v535, %v1608
        %1610 = vmatprep.mubr.f32.mxu0 0.0
        %1611 = vmatmul.mubr.f32.gmra.mrb[0].mxu0 %v823
        %v1612 = vpop.f32.mrb[0].mxu0
        %v1613 = vadd.f32 %v540, %v1612
        %v1614 = vpop.f32.mrb[0].mxu0
        %v1615 = vadd.f32 %v540, %v1614
        %1616 = vmatprep.mubr.f32.mxu0 0.0
        %1617 = vmatmul.mubr.f32.gmra.mrb[0].mxu0 %v826
        %v1618 = vpop.f32.mrb[0].mxu0
        %v1619 = vadd.f32 %v545, %v1618
        %v1620 = vpop.f32.mrb[0].mxu0
        %v1621 = vadd.f32 %v545, %v1620
        %1622 = vmatprep.mubr.f32.mxu0 0.0
        %1623 = vmatmul.mubr.f32.gmra.mrb[0].mxu0 %v829
        %v1624 = vpop.f32.mrb[0].mxu0
        %v1625 = vadd.f32 %v550, %v1624
        %v1626 = vpop.f32.mrb[0].mxu0
        %v1627 = vadd.f32 %v550, %v1626
        %1628 = vmatprep.mubr.f32.mxu0 0.0
        %1629 = vmatmul.mubr.f32.gmra.mrb[0].mxu0 %v832
        %v1630 = vpop.f32.mrb[0].mxu0
        %v1631 = vadd.f32 %v555, %v1630
        %v1632 = vpop.f32.mrb[0].mxu0
        %v1633 = vadd.f32 %v555, %v1632
        %1634 = vmatprep.mubr.f32.mxu0 0.0
        %1635 = vmatmul.mubr.f32.gmra.mrb[0].mxu0 %v835
        %v1636 = vpop.f32.mrb[0].mxu0
        %v1637 = vadd.f32 %v560, %v1636
        %v1638 = vpop.f32.mrb[0].mxu0
        %v1639 = vadd.f32 %v560, %v1638
        %1640 = vmatprep.mubr.f32.mxu0 0.0
        %1641 = vmatmul.mubr.f32.gmra.mrb[0].mxu0 %v838
        %v1642 = vpop.f32.mrb[0].mxu0
        %v1643 = vadd.f32 %v565, %v1642
        %v1644 = vpop.f32.mrb[0].mxu0
        %v1645 = vadd.f32 %v565, %v1644
        %1646 = vmatprep.mubr.f32.mxu0 0.0
        %1647 = vmatmul.mubr.f32.gmra.mrb[0].mxu0 %v841
        %v1648 = vpop.f32.mrb[0].mxu0
        %v1649 = vadd.f32 %v570, %v1648
        %v1650 = vpop.f32.mrb[0].mxu0
        %v1651 = vadd.f32 %v570, %v1650
        %1652 = vmatprep.mubr.f32.mxu0 0.0
        %1653 = vmatmul.mubr.f32.gmra.mrb[0].mxu0 %v844
        %v1654 = vpop.f32.mrb[0].mxu0
        %v1655 = vadd.f32 %v575, %v1654
        %v1656 = vpop.f32.mrb[0].mxu0
        %v1657 = vadd.f32 %v575, %v1656
        %1658 = vmatprep.mubr.f32.mxu0 0.0
        %1659 = vmatmul.mubr.f32.gmra.mrb[0].mxu0 %v847
        %v1660 = vpop.f32.mrb[0].mxu0
        %v1661 = vadd.f32 %v580, %v1660
        %v1662 = vpop.f32.mrb[0].mxu0
        %v1663 = vadd.f32 %v580, %v1662
        %1664 = vmatprep.mubr.f32.mxu0 0.0
        %1665 = vmatmul.mubr.f32.gmra.mrb[0].mxu0 %v850
        %v1666 = vpop.f32.mrb[0].mxu0
        %v1667 = vadd.f32 %v585, %v1666
        %v1668 = vpop.f32.mrb[0].mxu0
        %v1669 = vadd.f32 %v585, %v1668
        %1670 = vmatprep.mubr.f32.mxu0 0.0
        %1671 = vmatmul.mubr.f32.gmra.mrb[0].mxu0 %v853
        %v1672 = vpop.f32.mrb[0].mxu0
        %v1673 = vadd.f32 %v590, %v1672
        %v1674 = vpop.f32.mrb[0].mxu0
        %v1675 = vadd.f32 %v590, %v1674
        %1676 = vmatprep.mubr.f32.mxu0 0.0
        %1677 = vmatmul.mubr.f32.gmra.mrb[0].mxu0 %v856
        %v1678 = vpop.f32.mrb[0].mxu0
        %v1679 = vadd.f32 %v595, %v1678
        %v1680 = vpop.f32.mrb[0].mxu0
        %v1681 = vadd.f32 %v595, %v1680
        %1682 = vmatprep.mubr.f32.mxu0 0.0
        %1683 = vmatmul.mubr.f32.gmra.mrb[0].mxu0 %v859
        %v1684 = vpop.f32.mrb[0].mxu0
        %v1685 = vadd.f32 %v600, %v1684
        %v1686 = vpop.f32.mrb[0].mxu0
        %v1687 = vadd.f32 %v600, %v1686
        %1688 = vmatprep.mubr.f32.mxu0 0.0
        %1689 = vmatmul.mubr.f32.gmra.mrb[0].mxu0 %v862
        %v1690 = vpop.f32.mrb[0].mxu0
        %v1691 = vadd.f32 %v605, %v1690
        %v1692 = vpop.f32.mrb[0].mxu0
        %v1693 = vadd.f32 %v605, %v1692
        %1694 = vmatprep.mubr.f32.mxu0 0.0
        %1695 = vmatmul.mubr.f32.gmra.mrb[0].mxu0 %v865
        %v1696 = vpop.f32.mrb[0].mxu0
        %v1697 = vadd.f32 %v610, %v1696
        %v1698 = vpop.f32.mrb[0].mxu0
        %v1699 = vadd.f32 %v610, %v1698
        %1700 = vmatprep.mubr.f32.mxu0 0.0
        %1701 = vmatmul.mubr.f32.gmra.mrb[0].mxu0 %v868
        %v1702 = vpop.f32.mrb[0].mxu0
        %v1703 = vadd.f32 %v615, %v1702
        %v1704 = vpop.f32.mrb[0].mxu0
        %v1705 = vadd.f32 %v615, %v1704
        %1706 = vmatprep.mubr.f32.mxu0 0.0
        %1707 = vmatmul.mubr.f32.gmra.mrb[0].mxu0 %v871
        %v1708 = vpop.f32.mrb[0].mxu0
        %v1709 = vadd.f32 %v620, %v1708
        %v1710 = vpop.f32.mrb[0].mxu0
        %v1711 = vadd.f32 %v620, %v1710
        %1712 = vmatprep.mubr.f32.mxu0 0.0
        %1713 = vmatmul.mubr.f32.gmra.mrb[0].mxu0 %v874
        %v1714 = vpop.f32.mrb[0].mxu0
        %v1715 = vadd.f32 %v625, %v1714
        %v1716 = vpop.f32.mrb[0].mxu0
        %v1717 = vadd.f32 %v625, %v1716
        %1718 = vmatprep.mubr.f32.mxu0 0.0
        %1719 = vmatmul.mubr.f32.gmra.mrb[0].mxu0 %v877
        %v1720 = vpop.f32.mrb[0].mxu0
        %v1721 = vadd.f32 %v630, %v1720
        %v1722 = vpop.f32.mrb[0].mxu0
        %v1723 = vadd.f32 %v630, %v1722
        %1724 = vmatprep.mubr.f32.mxu0 0.0
        %1725 = vmatmul.mubr.f32.gmra.mrb[0].mxu0 %v880
        %v1726 = vpop.f32.mrb[0].mxu0
        %v1727 = vadd.f32 %v635, %v1726
        %v1728 = vpop.f32.mrb[0].mxu0
        %v1729 = vadd.f32 %v635, %v1728
        %1730 = vmatprep.mubr.f32.mxu0 0.0
        %1731 = vmatmul.mubr.f32.gmra.mrb[0].mxu0 %v883
        %v1732 = vpop.f32.mrb[0].mxu0
        %v1733 = vadd.f32 %v640, %v1732
        %v1734 = vpop.f32.mrb[0].mxu0
        %v1735 = vadd.f32 %v640, %v1734
        %1736 = vmatprep.mubr.f32.mxu0 0.0
        %1737 = vmatmul.mubr.f32.gmra.mrb[0].mxu0 %v886
        %v1738 = vpop.f32.mrb[0].mxu0
        %v1739 = vadd.f32 %v645, %v1738
        %v1740 = vpop.f32.mrb[0].mxu0
        %v1741 = vadd.f32 %v645, %v1740
        %1742 = vmatprep.mubr.f32.mxu0 0.0
        %1743 = vmatmul.mubr.f32.gmra.mrb[0].mxu0 %v889
        %v1744 = vpop.f32.mrb[0].mxu0
        %v1745 = vadd.f32 %v650, %v1744
        %v1746 = vpop.f32.mrb[0].mxu0
        %v1747 = vadd.f32 %v650, %v1746
        %1748 = vmatprep.mubr.f32.mxu0 0.0
        %1749 = vmatmul.mubr.f32.gmra.mrb[0].mxu0 %v892
        %v1750 = vpop.f32.mrb[0].mxu0
        %v1751 = vadd.f32 %v655, %v1750
        %v1752 = vpop.f32.mrb[0].mxu0
        %v1753 = vadd.f32 %v655, %v1752
        %1754 = vmatprep.mubr.f32.mxu0 0.0
        %1755 = vmatmul.mubr.f32.gmra.mrb[0].mxu0 %v895
        %v1756 = vpop.f32.mrb[0].mxu0
        %v1757 = vadd.f32 %v660, %v1756
        %v1758 = vpop.f32.mrb[0].mxu0
        %v1759 = vadd.f32 %v660, %v1758
        %1760 = vmatprep.mubr.f32.mxu0 0.0
        %1761 = vmatmul.mubr.f32.gmra.mrb[0].mxu0 %v898
        %v1762 = vpop.f32.mrb[0].mxu0
        %v1763 = vadd.f32 %v665, %v1762
        %v1764 = vpop.f32.mrb[0].mxu0
        %v1765 = vadd.f32 %v665, %v1764
        %1766 = vmatprep.mubr.f32.mxu0 0.0
        %1767 = vmatmul.mubr.f32.gmra.mrb[0].mxu0 %v901
        %v1768 = vpop.f32.mrb[0].mxu0
        %v1769 = vadd.f32 %v670, %v1768
        %v1770 = vpop.f32.mrb[0].mxu0
        %v1771 = vadd.f32 %v670, %v1770
        %1772 = vmatprep.mubr.f32.mxu0 0.0
        %1773 = vmatmul.mubr.f32.gmra.mrb[0].mxu0 %v904
        %v1774 = vpop.f32.mrb[0].mxu0
        %v1775 = vadd.f32 %v675, %v1774
        %v1776 = vpop.f32.mrb[0].mxu0
        %v1777 = vadd.f32 %v675, %v1776
        %1778 = vmatprep.mubr.f32.mxu0 0.0
        %1779 = vmatmul.mubr.f32.gmra.mrb[0].mxu0 %v907
        %v1780 = vpop.f32.mrb[0].mxu0
        %v1781 = vadd.f32 %v680, %v1780
        %v1782 = vpop.f32.mrb[0].mxu0
        %v1783 = vadd.f32 %v680, %v1782
        %1784 = vmatprep.mubr.f32.mxu0 0.0
        %1785 = vmatmul.mubr.f32.gmra.mrb[0].mxu0 %v910
        %v1786 = vpop.f32.mrb[0].mxu0
        %v1787 = vadd.f32 %v685, %v1786
        %v1788 = vpop.f32.mrb[0].mxu0
        %v1789 = vadd.f32 %v685, %v1788
        %1790 = vmatprep.mubr.f32.mxu0 0.0
        %1791 = vmatmul.mubr.f32.gmra.mrb[0].mxu0 %v913
        %v1792 = vpop.f32.mrb[0].mxu0
        %v1793 = vadd.f32 %v690, %v1792
        %v1794 = vpop.f32.mrb[0].mxu0
        %v1795 = vadd.f32 %v690, %v1794
        %1796 = vmatprep.mubr.f32.mxu0 0.0
        %1797 = vmatmul.mubr.f32.gmra.mrb[0].mxu0 %v916
        %v1798 = vpop.f32.mrb[0].mxu0
        %v1799 = vadd.f32 %v695, %v1798
        %v1800 = vpop.f32.mrb[0].mxu0
        %v1801 = vadd.f32 %v695, %v1800
        %1802 = vmatprep.mubr.f32.mxu0 0.0
        %1803 = vmatmul.mubr.f32.gmra.mrb[0].mxu0 %v919
        %v1804 = vpop.f32.mrb[0].mxu0
        %v1805 = vadd.f32 %v700, %v1804
        %v1806 = vpop.f32.mrb[0].mxu0
        %v1807 = vadd.f32 %v700, %v1806
        %1808 = vmatprep.mubr.f32.mxu0 0.0
        %1809 = vmatmul.mubr.f32.gmra.mrb[0].mxu0 %v922
        %v1810 = vpop.f32.mrb[0].mxu0
        %v1811 = vadd.f32 %v705, %v1810
        %v1812 = vpop.f32.mrb[0].mxu0
        %v1813 = vadd.f32 %v705, %v1812
        %1814 = vmatprep.mubr.f32.mxu0 0.0
        %1815 = vmatmul.mubr.f32.gmra.mrb[0].mxu0 %v925
        %v1816 = vpop.f32.mrb[0].mxu0
        %v1817 = vadd.f32 %v710, %v1816
        %v1818 = vpop.f32.mrb[0].mxu0
        %v1819 = vadd.f32 %v710, %v1818
        %1820 = vmatprep.mubr.f32.mxu0 0.0
        %1821 = vmatmul.mubr.f32.gmra.mrb[0].mxu0 %v928
        %v1822 = vpop.f32.mrb[0].mxu0
        %v1823 = vadd.f32 %v715, %v1822
        %v1824 = vpop.f32.mrb[0].mxu0
        %v1825 = vadd.f32 %v715, %v1824
        %1826 = vmatprep.mubr.f32.mxu0 0.0
        %1827 = vmatmul.mubr.f32.gmra.mrb[0].mxu0 %v931
        %v1828 = vpop.f32.mrb[0].mxu0
        %v1829 = vadd.f32 %v720, %v1828
        %v1830 = vpop.f32.mrb[0].mxu0
        %v1831 = vadd.f32 %v720, %v1830
        %1832 = vmatprep.mubr.f32.mxu0 0.0
        %1833 = vmatmul.mubr.f32.gmra.mrb[0].mxu0 %v934
        %v1834 = vpop.f32.mrb[0].mxu0
        %v1835 = vadd.f32 %v725, %v1834
        %v1836 = vpop.f32.mrb[0].mxu0
        %v1837 = vadd.f32 %v725, %v1836
        %1838 = vmatprep.mubr.f32.mxu0 0.0
        %1839 = vmatmul.mubr.f32.gmra.mrb[0].mxu0 %v937
        %v1840 = vpop.f32.mrb[0].mxu0
        %v1841 = vadd.f32 %v730, %v1840
        %v1842 = vpop.f32.mrb[0].mxu0
        %v1843 = vadd.f32 %v730, %v1842
        %1844 = vmatprep.mubr.f32.mxu0 0.0
        %1845 = vmatmul.mubr.f32.gmra.mrb[0].mxu0 %v940
        %v1846 = vpop.f32.mrb[0].mxu0
        %v1847 = vadd.f32 %v735, %v1846
        %v1848 = vpop.f32.mrb[0].mxu0
        %v1849 = vadd.f32 %v735, %v1848
        %1850 = vmatprep.mubr.f32.mxu0 0.0
        %1851 = vmatmul.mubr.f32.gmra.mrb[0].mxu0 %v943
        %v1852 = vpop.f32.mrb[0].mxu0
        %v1853 = vadd.f32 %v740, %v1852
        %v1854 = vpop.f32.mrb[0].mxu0
        %v1855 = vadd.f32 %v740, %v1854
        %1856 = vmatprep.mubr.f32.mxu0 0.0
        %1857 = vmatmul.mubr.f32.gmra.mrb[0].mxu0 %v946
        %v1858 = vpop.f32.mrb[0].mxu0
        %v1859 = vadd.f32 %v745, %v1858
        %v1860 = vpop.f32.mrb[0].mxu0
        %v1861 = vadd.f32 %v745, %v1860
        %1862 = vdwg.mxu0
        %1863 = vmatprep.subr.mxu0 %v959
        %1864 = vmatpush1.msra.mxu0 %v957
        %1865 = vmatprep.subr.mxu0 0.0
        %1866 = vmatpush1.msra.mxu0 0.0
        %1867 = vmatprep.subr.mxu0 0.0
        %1868 = vmatpush1.msra.mxu0 0.0
        %1869 = vmatprep.subr.mxu0 0.0
        %1870 = vmatpush1.msra.mxu0 0.0
        %1871 = vmatprep.subr.mxu0 0.0
        %1872 = vmatpush1.msra.mxu0 0.0
        %1873 = vmatprep.subr.mxu0 0.0
        %1874 = vmatpush1.msra.mxu0 0.0
        %1875 = vmatprep.subr.mxu0 0.0
        %1876 = vmatpush1.msra.mxu0 0.0
        %1877 = vmatprep.subr.mxu0 0.0
        %1878 = vmatpush1.msra.mxu0 0.0
        %1879 = vmatprep.subr.mxu0 0.0
        %1880 = vmatpush1.msra.mxu0 0.0
        %1881 = vmatprep.subr.mxu0 0.0
        %1882 = vmatpush1.msra.mxu0 0.0
        %1883 = vmatprep.subr.mxu0 0.0
        %1884 = vmatpush1.msra.mxu0 0.0
        %1885 = vmatprep.subr.mxu0 0.0
        %1886 = vmatpush1.msra.mxu0 0.0
        %1887 = vmatprep.subr.mxu0 0.0
        %1888 = vmatpush1.msra.mxu0 0.0
        %1889 = vmatprep.subr.mxu0 0.0
        %1890 = vmatpush1.msra.mxu0 0.0
        %1891 = vmatprep.subr.mxu0 0.0
        %1892 = vmatpush1.msra.mxu0 0.0
        %1893 = vmatprep.subr.mxu0 0.0
        %1894 = vmatpush1.msra.mxu0 0.0
        %1895 = vmatprep.subr.mxu0 0.0
        %1896 = vmatpush1.msra.mxu0 0.0
        %1897 = vmatprep.subr.mxu0 0.0
        %1898 = vmatpush1.msra.mxu0 0.0
        %1899 = vmatprep.subr.mxu0 0.0
        %1900 = vmatpush1.msra.mxu0 0.0
        %1901 = vmatprep.subr.mxu0 0.0
        %1902 = vmatpush1.msra.mxu0 0.0
        %1903 = vmatprep.subr.mxu0 0.0
        %1904 = vmatpush1.msra.mxu0 0.0
        %1905 = vmatprep.subr.mxu0 0.0
        %1906 = vmatpush1.msra.mxu0 0.0
        %1907 = vmatprep.subr.mxu0 0.0
        %1908 = vmatpush1.msra.mxu0 0.0
        %1909 = vmatprep.subr.mxu0 0.0
        %1910 = vmatpush1.msra.mxu0 0.0
        %1911 = vmatprep.subr.mxu0 0.0
        %1912 = vmatpush1.msra.mxu0 0.0
        %1913 = vmatprep.subr.mxu0 0.0
        %1914 = vmatpush1.msra.mxu0 0.0
        %1915 = vmatprep.subr.mxu0 0.0
        %1916 = vmatpush1.msra.mxu0 0.0
        %1917 = vmatprep.subr.mxu0 0.0
        %1918 = vmatpush1.msra.mxu0 0.0
        %1919 = vmatprep.subr.mxu0 0.0
        %1920 = vmatpush1.msra.mxu0 0.0
        %1921 = vmatprep.subr.mxu0 0.0
        %1922 = vmatpush1.msra.mxu0 0.0
        %1923 = vmatprep.subr.mxu0 0.0
        %1924 = vmatpush1.msra.mxu0 0.0
        %1925 = vmatprep.subr.mxu0 0.0
        %1926 = vmatpush1.msra.mxu0 0.0
        %1927 = vmatprep.mubr.f32.mxu0 0.0
        %1928 = vmatmul.mubr.f32.gmra.mrb[0].mxu0 %v757
        %v1929 = vpop.f32.mrb[0].mxu0
        %v1930 = vadd.f32 %v430, %v1929
        %v1931 = vpop.f32.mrb[0].mxu0
        %v1932 = vadd.f32 %v430, %v1931
        %1933 = vmatprep.mubr.f32.mxu0 0.0
        %1934 = vmatmul.mubr.f32.gmra.mrb[0].mxu0 %v760
        %v1935 = vpop.f32.mrb[0].mxu0
        %v1936 = vadd.f32 %v435, %v1935
        %v1937 = vpop.f32.mrb[0].mxu0
        %v1938 = vadd.f32 %v435, %v1937
        %1939 = vmatprep.mubr.f32.mxu0 0.0
        %1940 = vmatmul.mubr.f32.gmra.mrb[0].mxu0 %v763
        %v1941 = vpop.f32.mrb[0].mxu0
        %v1942 = vadd.f32 %v440, %v1941
        %v1943 = vpop.f32.mrb[0].mxu0
        %v1944 = vadd.f32 %v440, %v1943
        %1945 = vmatprep.mubr.f32.mxu0 0.0
        %1946 = vmatmul.mubr.f32.gmra.mrb[0].mxu0 %v766
        %v1947 = vpop.f32.mrb[0].mxu0
        %v1948 = vadd.f32 %v445, %v1947
        %v1949 = vpop.f32.mrb[0].mxu0
        %v1950 = vadd.f32 %v445, %v1949
        %1951 = vmatprep.mubr.f32.mxu0 0.0
        %1952 = vmatmul.mubr.f32.gmra.mrb[0].mxu0 %v769
        %v1953 = vpop.f32.mrb[0].mxu0
        %v1954 = vadd.f32 %v450, %v1953
        %v1955 = vpop.f32.mrb[0].mxu0
        %v1956 = vadd.f32 %v450, %v1955
        %1957 = vmatprep.mubr.f32.mxu0 0.0
        %1958 = vmatmul.mubr.f32.gmra.mrb[0].mxu0 %v772
        %v1959 = vpop.f32.mrb[0].mxu0
        %v1960 = vadd.f32 %v455, %v1959
        %v1961 = vpop.f32.mrb[0].mxu0
        %v1962 = vadd.f32 %v455, %v1961
        %1963 = vmatprep.mubr.f32.mxu0 0.0
        %1964 = vmatmul.mubr.f32.gmra.mrb[0].mxu0 %v775
        %v1965 = vpop.f32.mrb[0].mxu0
        %v1966 = vadd.f32 %v460, %v1965
        %v1967 = vpop.f32.mrb[0].mxu0
        %v1968 = vadd.f32 %v460, %v1967
        %1969 = vmatprep.mubr.f32.mxu0 0.0
        %1970 = vmatmul.mubr.f32.gmra.mrb[0].mxu0 %v778
        %v1971 = vpop.f32.mrb[0].mxu0
        %v1972 = vadd.f32 %v465, %v1971
        %v1973 = vpop.f32.mrb[0].mxu0
        %v1974 = vadd.f32 %v465, %v1973
        %1975 = vmatprep.mubr.f32.mxu0 0.0
        %1976 = vmatmul.mubr.f32.gmra.mrb[0].mxu0 %v781
        %v1977 = vpop.f32.mrb[0].mxu0
        %v1978 = vadd.f32 %v470, %v1977
        %v1979 = vpop.f32.mrb[0].mxu0
        %v1980 = vadd.f32 %v470, %v1979
        %1981 = vmatprep.mubr.f32.mxu0 0.0
        %1982 = vmatmul.mubr.f32.gmra.mrb[0].mxu0 %v784
        %v1983 = vpop.f32.mrb[0].mxu0
        %v1984 = vadd.f32 %v475, %v1983
        %v1985 = vpop.f32.mrb[0].mxu0
        %v1986 = vadd.f32 %v475, %v1985
        %1987 = vmatprep.mubr.f32.mxu0 0.0
        %1988 = vmatmul.mubr.f32.gmra.mrb[0].mxu0 %v787
        %v1989 = vpop.f32.mrb[0].mxu0
        %v1990 = vadd.f32 %v480, %v1989
        %v1991 = vpop.f32.mrb[0].mxu0
        %v1992 = vadd.f32 %v480, %v1991
        %1993 = vmatprep.mubr.f32.mxu0 0.0
        %1994 = vmatmul.mubr.f32.gmra.mrb[0].mxu0 %v790
        %v1995 = vpop.f32.mrb[0].mxu0
        %v1996 = vadd.f32 %v485, %v1995
        %v1997 = vpop.f32.mrb[0].mxu0
        %v1998 = vadd.f32 %v485, %v1997
        %1999 = vmatprep.mubr.f32.mxu0 0.0
        %2000 = vmatmul.mubr.f32.gmra.mrb[0].mxu0 %v793
        %v2001 = vpop.f32.mrb[0].mxu0
        %v2002 = vadd.f32 %v490, %v2001
        %v2003 = vpop.f32.mrb[0].mxu0
        %v2004 = vadd.f32 %v490, %v2003
        %2005 = vmatprep.mubr.f32.mxu0 0.0
        %2006 = vmatmul.mubr.f32.gmra.mrb[0].mxu0 %v796
        %v2007 = vpop.f32.mrb[0].mxu0
        %v2008 = vadd.f32 %v495, %v2007
        %v2009 = vpop.f32.mrb[0].mxu0
        %v2010 = vadd.f32 %v495, %v2009
        %2011 = vmatprep.mubr.f32.mxu0 0.0
        %2012 = vmatmul.mubr.f32.gmra.mrb[0].mxu0 %v799
        %v2013 = vpop.f32.mrb[0].mxu0
        %v2014 = vadd.f32 %v500, %v2013
        %v2015 = vpop.f32.mrb[0].mxu0
        %v2016 = vadd.f32 %v500, %v2015
        %2017 = vmatprep.mubr.f32.mxu0 0.0
        %2018 = vmatmul.mubr.f32.gmra.mrb[0].mxu0 %v802
        %v2019 = vpop.f32.mrb[0].mxu0
        %v2020 = vadd.f32 %v505, %v2019
        %v2021 = vpop.f32.mrb[0].mxu0
        %v2022 = vadd.f32 %v505, %v2021
        %2023 = vmatprep.mubr.f32.mxu0 0.0
        %2024 = vmatmul.mubr.f32.gmra.mrb[0].mxu0 %v805
        %v2025 = vpop.f32.mrb[0].mxu0
        %v2026 = vadd.f32 %v510, %v2025
        %v2027 = vpop.f32.mrb[0].mxu0
        %v2028 = vadd.f32 %v510, %v2027
        %2029 = vmatprep.mubr.f32.mxu0 0.0
        %2030 = vmatmul.mubr.f32.gmra.mrb[0].mxu0 %v808
        %v2031 = vpop.f32.mrb[0].mxu0
        %v2032 = vadd.f32 %v515, %v2031
        %v2033 = vpop.f32.mrb[0].mxu0
        %v2034 = vadd.f32 %v515, %v2033
        %2035 = vmatprep.mubr.f32.mxu0 0.0
        %2036 = vmatmul.mubr.f32.gmra.mrb[0].mxu0 %v811
        %v2037 = vpop.f32.mrb[0].mxu0
        %v2038 = vadd.f32 %v520, %v2037
        %v2039 = vpop.f32.mrb[0].mxu0
        %v2040 = vadd.f32 %v520, %v2039
        %2041 = vmatprep.mubr.f32.mxu0 0.0
        %2042 = vmatmul.mubr.f32.gmra.mrb[0].mxu0 %v814
        %v2043 = vpop.f32.mrb[0].mxu0
        %v2044 = vadd.f32 %v525, %v2043
        %v2045 = vpop.f32.mrb[0].mxu0
        %v2046 = vadd.f32 %v525, %v2045
        %2047 = vmatprep.mubr.f32.mxu0 0.0
        %2048 = vmatmul.mubr.f32.gmra.mrb[0].mxu0 %v817
        %v2049 = vpop.f32.mrb[0].mxu0
        %v2050 = vadd.f32 %v530, %v2049
        %v2051 = vpop.f32.mrb[0].mxu0
        %v2052 = vadd.f32 %v530, %v2051
        %2053 = vmatprep.mubr.f32.mxu0 0.0
        %2054 = vmatmul.mubr.f32.gmra.mrb[0].mxu0 %v820
        %v2055 = vpop.f32.mrb[0].mxu0
        %v2056 = vadd.f32 %v535, %v2055
        %v2057 = vpop.f32.mrb[0].mxu0
        %v2058 = vadd.f32 %v535, %v2057
        %2059 = vmatprep.mubr.f32.mxu0 0.0
        %2060 = vmatmul.mubr.f32.gmra.mrb[0].mxu0 %v823
        %v2061 = vpop.f32.mrb[0].mxu0
        %v2062 = vadd.f32 %v540, %v2061
        %v2063 = vpop.f32.mrb[0].mxu0
        %v2064 = vadd.f32 %v540, %v2063
        %2065 = vmatprep.mubr.f32.mxu0 0.0
        %2066 = vmatmul.mubr.f32.gmra.mrb[0].mxu0 %v826
        %v2067 = vpop.f32.mrb[0].mxu0
        %v2068 = vadd.f32 %v545, %v2067
        %v2069 = vpop.f32.mrb[0].mxu0
        %v2070 = vadd.f32 %v545, %v2069
        %2071 = vmatprep.mubr.f32.mxu0 0.0
        %2072 = vmatmul.mubr.f32.gmra.mrb[0].mxu0 %v829
        %v2073 = vpop.f32.mrb[0].mxu0
        %v2074 = vadd.f32 %v550, %v2073
        %v2075 = vpop.f32.mrb[0].mxu0
        %v2076 = vadd.f32 %v550, %v2075
        %2077 = vmatprep.mubr.f32.mxu0 0.0
        %2078 = vmatmul.mubr.f32.gmra.mrb[0].mxu0 %v832
        %v2079 = vpop.f32.mrb[0].mxu0
        %v2080 = vadd.f32 %v555, %v2079
        %v2081 = vpop.f32.mrb[0].mxu0
        %v2082 = vadd.f32 %v555, %v2081
        %2083 = vmatprep.mubr.f32.mxu0 0.0
        %2084 = vmatmul.mubr.f32.gmra.mrb[0].mxu0 %v835
        %v2085 = vpop.f32.mrb[0].mxu0
        %v2086 = vadd.f32 %v560, %v2085
        %v2087 = vpop.f32.mrb[0].mxu0
        %v2088 = vadd.f32 %v560, %v2087
        %2089 = vmatprep.mubr.f32.mxu0 0.0
        %2090 = vmatmul.mubr.f32.gmra.mrb[0].mxu0 %v838
        %v2091 = vpop.f32.mrb[0].mxu0
        %v2092 = vadd.f32 %v565, %v2091
        %v2093 = vpop.f32.mrb[0].mxu0
        %v2094 = vadd.f32 %v565, %v2093
        %2095 = vmatprep.mubr.f32.mxu0 0.0
        %2096 = vmatmul.mubr.f32.gmra.mrb[0].mxu0 %v841
        %v2097 = vpop.f32.mrb[0].mxu0
        %v2098 = vadd.f32 %v570, %v2097
        %v2099 = vpop.f32.mrb[0].mxu0
        %v2100 = vadd.f32 %v570, %v2099
        %2101 = vmatprep.mubr.f32.mxu0 0.0
        %2102 = vmatmul.mubr.f32.gmra.mrb[0].mxu0 %v844
        %v2103 = vpop.f32.mrb[0].mxu0
        %v2104 = vadd.f32 %v575, %v2103
        %v2105 = vpop.f32.mrb[0].mxu0
        %v2106 = vadd.f32 %v575, %v2105
        %2107 = vmatprep.mubr.f32.mxu0 0.0
        %2108 = vmatmul.mubr.f32.gmra.mrb[0].mxu0 %v847
        %v2109 = vpop.f32.mrb[0].mxu0
        %v2110 = vadd.f32 %v580, %v2109
        %v2111 = vpop.f32.mrb[0].mxu0
        %v2112 = vadd.f32 %v580, %v2111
        %2113 = vmatprep.mubr.f32.mxu0 0.0
        %2114 = vmatmul.mubr.f32.gmra.mrb[0].mxu0 %v850
        %v2115 = vpop.f32.mrb[0].mxu0
        %v2116 = vadd.f32 %v585, %v2115
        %v2117 = vpop.f32.mrb[0].mxu0
        %v2118 = vadd.f32 %v585, %v2117
        %2119 = vmatprep.mubr.f32.mxu0 0.0
        %2120 = vmatmul.mubr.f32.gmra.mrb[0].mxu0 %v853
        %v2121 = vpop.f32.mrb[0].mxu0
        %v2122 = vadd.f32 %v590, %v2121
        %v2123 = vpop.f32.mrb[0].mxu0
        %v2124 = vadd.f32 %v590, %v2123
        %2125 = vmatprep.mubr.f32.mxu0 0.0
        %2126 = vmatmul.mubr.f32.gmra.mrb[0].mxu0 %v856
        %v2127 = vpop.f32.mrb[0].mxu0
        %v2128 = vadd.f32 %v595, %v2127
        %v2129 = vpop.f32.mrb[0].mxu0
        %v2130 = vadd.f32 %v595, %v2129
        %2131 = vmatprep.mubr.f32.mxu0 0.0
        %2132 = vmatmul.mubr.f32.gmra.mrb[0].mxu0 %v859
        %v2133 = vpop.f32.mrb[0].mxu0
        %v2134 = vadd.f32 %v600, %v2133
        %v2135 = vpop.f32.mrb[0].mxu0
        %v2136 = vadd.f32 %v600, %v2135
        %2137 = vmatprep.mubr.f32.mxu0 0.0
        %2138 = vmatmul.mubr.f32.gmra.mrb[0].mxu0 %v862
        %v2139 = vpop.f32.mrb[0].mxu0
        %v2140 = vadd.f32 %v605, %v2139
        %v2141 = vpop.f32.mrb[0].mxu0
        %v2142 = vadd.f32 %v605, %v2141
        %2143 = vmatprep.mubr.f32.mxu0 0.0
        %2144 = vmatmul.mubr.f32.gmra.mrb[0].mxu0 %v865
        %v2145 = vpop.f32.mrb[0].mxu0
        %v2146 = vadd.f32 %v610, %v2145
        %v2147 = vpop.f32.mrb[0].mxu0
        %v2148 = vadd.f32 %v610, %v2147
        %2149 = vmatprep.mubr.f32.mxu0 0.0
        %2150 = vmatmul.mubr.f32.gmra.mrb[0].mxu0 %v868
        %v2151 = vpop.f32.mrb[0].mxu0
        %v2152 = vadd.f32 %v615, %v2151
        %v2153 = vpop.f32.mrb[0].mxu0
        %v2154 = vadd.f32 %v615, %v2153
        %2155 = vmatprep.mubr.f32.mxu0 0.0
        %2156 = vmatmul.mubr.f32.gmra.mrb[0].mxu0 %v871
        %v2157 = vpop.f32.mrb[0].mxu0
        %v2158 = vadd.f32 %v620, %v2157
        %v2159 = vpop.f32.mrb[0].mxu0
        %v2160 = vadd.f32 %v620, %v2159
        %2161 = vmatprep.mubr.f32.mxu0 0.0
        %2162 = vmatmul.mubr.f32.gmra.mrb[0].mxu0 %v874
        %v2163 = vpop.f32.mrb[0].mxu0
        %v2164 = vadd.f32 %v625, %v2163
        %v2165 = vpop.f32.mrb[0].mxu0
        %v2166 = vadd.f32 %v625, %v2165
        %2167 = vmatprep.mubr.f32.mxu0 0.0
        %2168 = vmatmul.mubr.f32.gmra.mrb[0].mxu0 %v877
        %v2169 = vpop.f32.mrb[0].mxu0
        %v2170 = vadd.f32 %v630, %v2169
        %v2171 = vpop.f32.mrb[0].mxu0
        %v2172 = vadd.f32 %v630, %v2171
        %2173 = vmatprep.mubr.f32.mxu0 0.0
        %2174 = vmatmul.mubr.f32.gmra.mrb[0].mxu0 %v880
        %v2175 = vpop.f32.mrb[0].mxu0
        %v2176 = vadd.f32 %v635, %v2175
        %v2177 = vpop.f32.mrb[0].mxu0
        %v2178 = vadd.f32 %v635, %v2177
        %2179 = vmatprep.mubr.f32.mxu0 0.0
        %2180 = vmatmul.mubr.f32.gmra.mrb[0].mxu0 %v883
        %v2181 = vpop.f32.mrb[0].mxu0
        %v2182 = vadd.f32 %v640, %v2181
        %v2183 = vpop.f32.mrb[0].mxu0
        %v2184 = vadd.f32 %v640, %v2183
        %2185 = vmatprep.mubr.f32.mxu0 0.0
        %2186 = vmatmul.mubr.f32.gmra.mrb[0].mxu0 %v886
        %v2187 = vpop.f32.mrb[0].mxu0
        %v2188 = vadd.f32 %v645, %v2187
        %v2189 = vpop.f32.mrb[0].mxu0
        %v2190 = vadd.f32 %v645, %v2189
        %2191 = vmatprep.mubr.f32.mxu0 0.0
        %2192 = vmatmul.mubr.f32.gmra.mrb[0].mxu0 %v889
        %v2193 = vpop.f32.mrb[0].mxu0
        %v2194 = vadd.f32 %v650, %v2193
        %v2195 = vpop.f32.mrb[0].mxu0
        %v2196 = vadd.f32 %v650, %v2195
        %2197 = vmatprep.mubr.f32.mxu0 0.0
        %2198 = vmatmul.mubr.f32.gmra.mrb[0].mxu0 %v892
        %v2199 = vpop.f32.mrb[0].mxu0
        %v2200 = vadd.f32 %v655, %v2199
        %v2201 = vpop.f32.mrb[0].mxu0
        %v2202 = vadd.f32 %v655, %v2201
        %2203 = vmatprep.mubr.f32.mxu0 0.0
        %2204 = vmatmul.mubr.f32.gmra.mrb[0].mxu0 %v895
        %v2205 = vpop.f32.mrb[0].mxu0
        %v2206 = vadd.f32 %v660, %v2205
        %v2207 = vpop.f32.mrb[0].mxu0
        %v2208 = vadd.f32 %v660, %v2207
        %2209 = vmatprep.mubr.f32.mxu0 0.0
        %2210 = vmatmul.mubr.f32.gmra.mrb[0].mxu0 %v898
        %v2211 = vpop.f32.mrb[0].mxu0
        %v2212 = vadd.f32 %v665, %v2211
        %v2213 = vpop.f32.mrb[0].mxu0
        %v2214 = vadd.f32 %v665, %v2213
        %2215 = vmatprep.mubr.f32.mxu0 0.0
        %2216 = vmatmul.mubr.f32.gmra.mrb[0].mxu0 %v901
        %v2217 = vpop.f32.mrb[0].mxu0
        %v2218 = vadd.f32 %v670, %v2217
        %v2219 = vpop.f32.mrb[0].mxu0
        %v2220 = vadd.f32 %v670, %v2219
        %2221 = vmatprep.mubr.f32.mxu0 0.0
        %2222 = vmatmul.mubr.f32.gmra.mrb[0].mxu0 %v904
        %v2223 = vpop.f32.mrb[0].mxu0
        %v2224 = vadd.f32 %v675, %v2223
        %v2225 = vpop.f32.mrb[0].mxu0
        %v2226 = vadd.f32 %v675, %v2225
        %2227 = vmatprep.mubr.f32.mxu0 0.0
        %2228 = vmatmul.mubr.f32.gmra.mrb[0].mxu0 %v907
        %v2229 = vpop.f32.mrb[0].mxu0
        %v2230 = vadd.f32 %v680, %v2229
        %v2231 = vpop.f32.mrb[0].mxu0
        %v2232 = vadd.f32 %v680, %v2231
        %2233 = vmatprep.mubr.f32.mxu0 0.0
        %2234 = vmatmul.mubr.f32.gmra.mrb[0].mxu0 %v910
        %v2235 = vpop.f32.mrb[0].mxu0
        %v2236 = vadd.f32 %v685, %v2235
        %v2237 = vpop.f32.mrb[0].mxu0
        %v2238 = vadd.f32 %v685, %v2237
        %2239 = vmatprep.mubr.f32.mxu0 0.0
        %2240 = vmatmul.mubr.f32.gmra.mrb[0].mxu0 %v913
        %v2241 = vpop.f32.mrb[0].mxu0
        %v2242 = vadd.f32 %v690, %v2241
        %v2243 = vpop.f32.mrb[0].mxu0
        %v2244 = vadd.f32 %v690, %v2243
        %2245 = vmatprep.mubr.f32.mxu0 0.0
        %2246 = vmatmul.mubr.f32.gmra.mrb[0].mxu0 %v916
        %v2247 = vpop.f32.mrb[0].mxu0
        %v2248 = vadd.f32 %v695, %v2247
        %v2249 = vpop.f32.mrb[0].mxu0
        %v2250 = vadd.f32 %v695, %v2249
        %2251 = vmatprep.mubr.f32.mxu0 0.0
        %2252 = vmatmul.mubr.f32.gmra.mrb[0].mxu0 %v919
        %v2253 = vpop.f32.mrb[0].mxu0
        %v2254 = vadd.f32 %v700, %v2253
        %v2255 = vpop.f32.mrb[0].mxu0
        %v2256 = vadd.f32 %v700, %v2255
        %2257 = vmatprep.mubr.f32.mxu0 0.0
        %2258 = vmatmul.mubr.f32.gmra.mrb[0].mxu0 %v922
        %v2259 = vpop.f32.mrb[0].mxu0
        %v2260 = vadd.f32 %v705, %v2259
        %v2261 = vpop.f32.mrb[0].mxu0
        %v2262 = vadd.f32 %v705, %v2261
        %2263 = vmatprep.mubr.f32.mxu0 0.0
        %2264 = vmatmul.mubr.f32.gmra.mrb[0].mxu0 %v925
        %v2265 = vpop.f32.mrb[0].mxu0
        %v2266 = vadd.f32 %v710, %v2265
        %v2267 = vpop.f32.mrb[0].mxu0
        %v2268 = vadd.f32 %v710, %v2267
        %2269 = vmatprep.mubr.f32.mxu0 0.0
        %2270 = vmatmul.mubr.f32.gmra.mrb[0].mxu0 %v928
        %v2271 = vpop.f32.mrb[0].mxu0
        %v2272 = vadd.f32 %v715, %v2271
        %v2273 = vpop.f32.mrb[0].mxu0
        %v2274 = vadd.f32 %v715, %v2273
        %2275 = vmatprep.mubr.f32.mxu0 0.0
        %2276 = vmatmul.mubr.f32.gmra.mrb[0].mxu0 %v931
        %v2277 = vpop.f32.mrb[0].mxu0
        %v2278 = vadd.f32 %v720, %v2277
        %v2279 = vpop.f32.mrb[0].mxu0
        %v2280 = vadd.f32 %v720, %v2279
        %2281 = vmatprep.mubr.f32.mxu0 0.0
        %2282 = vmatmul.mubr.f32.gmra.mrb[0].mxu0 %v934
        %v2283 = vpop.f32.mrb[0].mxu0
        %v2284 = vadd.f32 %v725, %v2283
        %v2285 = vpop.f32.mrb[0].mxu0
        %v2286 = vadd.f32 %v725, %v2285
        %2287 = vmatprep.mubr.f32.mxu0 0.0
        %2288 = vmatmul.mubr.f32.gmra.mrb[0].mxu0 %v937
        %v2289 = vpop.f32.mrb[0].mxu0
        %v2290 = vadd.f32 %v730, %v2289
        %v2291 = vpop.f32.mrb[0].mxu0
        %v2292 = vadd.f32 %v730, %v2291
        %2293 = vmatprep.mubr.f32.mxu0 0.0
        %2294 = vmatmul.mubr.f32.gmra.mrb[0].mxu0 %v940
        %v2295 = vpop.f32.mrb[0].mxu0
        %v2296 = vadd.f32 %v735, %v2295
        %v2297 = vpop.f32.mrb[0].mxu0
        %v2298 = vadd.f32 %v735, %v2297
        %2299 = vmatprep.mubr.f32.mxu0 0.0
        %2300 = vmatmul.mubr.f32.gmra.mrb[0].mxu0 %v943
        %v2301 = vpop.f32.mrb[0].mxu0
        %v2302 = vadd.f32 %v740, %v2301
        %v2303 = vpop.f32.mrb[0].mxu0
        %v2304 = vadd.f32 %v740, %v2303
        %2305 = vmatprep.mubr.f32.mxu0 0.0
        %2306 = vmatmul.mubr.f32.gmra.mrb[0].mxu0 %v946
        %v2307 = vpop.f32.mrb[0].mxu0
        %v2308 = vadd.f32 %v745, %v2307
        %v2309 = vpop.f32.mrb[0].mxu0
        %v2310 = vadd.f32 %v745, %v2309
        %2311 = vdwg.mxu0
        %2312 = vmatprep.subr.mxu0 %v963
        %2313 = vmatpush1.msra.mxu0 %v961
        %2314 = vmatprep.subr.mxu0 0.0
        %2315 = vmatpush1.msra.mxu0 0.0
        %2316 = vmatprep.subr.mxu0 0.0
        %2317 = vmatpush1.msra.mxu0 0.0
        %2318 = vmatprep.subr.mxu0 0.0
        %2319 = vmatpush1.msra.mxu0 0.0
        %2320 = vmatprep.subr.mxu0 0.0
        %2321 = vmatpush1.msra.mxu0 0.0
        %2322 = vmatprep.subr.mxu0 0.0
        %2323 = vmatpush1.msra.mxu0 0.0
        %2324 = vmatprep.subr.mxu0 0.0
        %2325 = vmatpush1.msra.mxu0 0.0
        %2326 = vmatprep.subr.mxu0 0.0
        %2327 = vmatpush1.msra.mxu0 0.0
        %2328 = vmatprep.subr.mxu0 0.0
        %2329 = vmatpush1.msra.mxu0 0.0
        %2330 = vmatprep.subr.mxu0 0.0
        %2331 = vmatpush1.msra.mxu0 0.0
        %2332 = vmatprep.subr.mxu0 0.0
        %2333 = vmatpush1.msra.mxu0 0.0
        %2334 = vmatprep.subr.mxu0 0.0
        %2335 = vmatpush1.msra.mxu0 0.0
        %2336 = vmatprep.subr.mxu0 0.0
        %2337 = vmatpush1.msra.mxu0 0.0
        %2338 = vmatprep.subr.mxu0 0.0
        %2339 = vmatpush1.msra.mxu0 0.0
        %2340 = vmatprep.subr.mxu0 0.0
        %2341 = vmatpush1.msra.mxu0 0.0
        %2342 = vmatprep.subr.mxu0 0.0
        %2343 = vmatpush1.msra.mxu0 0.0
        %2344 = vmatprep.subr.mxu0 0.0
        %2345 = vmatpush1.msra.mxu0 0.0
        %2346 = vmatprep.subr.mxu0 0.0
        %2347 = vmatpush1.msra.mxu0 0.0
        %2348 = vmatprep.subr.mxu0 0.0
        %2349 = vmatpush1.msra.mxu0 0.0
        %2350 = vmatprep.subr.mxu0 0.0
        %2351 = vmatpush1.msra.mxu0 0.0
        %2352 = vmatprep.subr.mxu0 0.0
        %2353 = vmatpush1.msra.mxu0 0.0
        %2354 = vmatprep.subr.mxu0 0.0
        %2355 = vmatpush1.msra.mxu0 0.0
        %2356 = vmatprep.subr.mxu0 0.0
        %2357 = vmatpush1.msra.mxu0 0.0
        %2358 = vmatprep.subr.mxu0 0.0
        %2359 = vmatpush1.msra.mxu0 0.0
        %2360 = vmatprep.subr.mxu0 0.0
        %2361 = vmatpush1.msra.mxu0 0.0
        %2362 = vmatprep.subr.mxu0 0.0
        %2363 = vmatpush1.msra.mxu0 0.0
        %2364 = vmatprep.subr.mxu0 0.0
        %2365 = vmatpush1.msra.mxu0 0.0
        %2366 = vmatprep.subr.mxu0 0.0
        %2367 = vmatpush1.msra.mxu0 0.0
        %2368 = vmatprep.subr.mxu0 0.0
        %2369 = vmatpush1.msra.mxu0 0.0
        %2370 = vmatprep.subr.mxu0 0.0
        %2371 = vmatpush1.msra.mxu0 0.0
        %2372 = vmatprep.subr.mxu0 0.0
        %2373 = vmatpush1.msra.mxu0 0.0
        %2374 = vmatprep.subr.mxu0 0.0
        %2375 = vmatpush1.msra.mxu0 0.0
        %2376 = vmatprep.mubr.f32.mxu0 0.0
        %2377 = vmatmul.mubr.f32.gmra.mrb[0].mxu0 %v757
        %v2378 = vpop.f32.mrb[0].mxu0
        %v2379 = vadd.f32 %v430, %v2378
        %v2380 = vpop.f32.mrb[0].mxu0
        %v2381 = vadd.f32 %v430, %v2380
        %2382 = vmatprep.mubr.f32.mxu0 0.0
        %2383 = vmatmul.mubr.f32.gmra.mrb[0].mxu0 %v760
        %v2384 = vpop.f32.mrb[0].mxu0
        %v2385 = vadd.f32 %v435, %v2384
        %v2386 = vpop.f32.mrb[0].mxu0
        %v2387 = vadd.f32 %v435, %v2386
        %2388 = vmatprep.mubr.f32.mxu0 0.0
        %2389 = vmatmul.mubr.f32.gmra.mrb[0].mxu0 %v763
        %v2390 = vpop.f32.mrb[0].mxu0
        %v2391 = vadd.f32 %v440, %v2390
        %v2392 = vpop.f32.mrb[0].mxu0
        %v2393 = vadd.f32 %v440, %v2392
        %2394 = vmatprep.mubr.f32.mxu0 0.0
        %2395 = vmatmul.mubr.f32.gmra.mrb[0].mxu0 %v766
        %v2396 = vpop.f32.mrb[0].mxu0
        %v2397 = vadd.f32 %v445, %v2396
        %v2398 = vpop.f32.mrb[0].mxu0
        %v2399 = vadd.f32 %v445, %v2398
        %2400 = vmatprep.mubr.f32.mxu0 0.0
        %2401 = vmatmul.mubr.f32.gmra.mrb[0].mxu0 %v769
        %v2402 = vpop.f32.mrb[0].mxu0
        %v2403 = vadd.f32 %v450, %v2402
        %v2404 = vpop.f32.mrb[0].mxu0
        %v2405 = vadd.f32 %v450, %v2404
        %2406 = vmatprep.mubr.f32.mxu0 0.0
        %2407 = vmatmul.mubr.f32.gmra.mrb[0].mxu0 %v772
        %v2408 = vpop.f32.mrb[0].mxu0
        %v2409 = vadd.f32 %v455, %v2408
        %v2410 = vpop.f32.mrb[0].mxu0
        %v2411 = vadd.f32 %v455, %v2410
        %2412 = vmatprep.mubr.f32.mxu0 0.0
        %2413 = vmatmul.mubr.f32.gmra.mrb[0].mxu0 %v775
        %v2414 = vpop.f32.mrb[0].mxu0
        %v2415 = vadd.f32 %v460, %v2414
        %v2416 = vpop.f32.mrb[0].mxu0
        %v2417 = vadd.f32 %v460, %v2416
        %2418 = vmatprep.mubr.f32.mxu0 0.0
        %2419 = vmatmul.mubr.f32.gmra.mrb[0].mxu0 %v778
        %v2420 = vpop.f32.mrb[0].mxu0
        %v2421 = vadd.f32 %v465, %v2420
        %v2422 = vpop.f32.mrb[0].mxu0
        %v2423 = vadd.f32 %v465, %v2422
        %2424 = vmatprep.mubr.f32.mxu0 0.0
        %2425 = vmatmul.mubr.f32.gmra.mrb[0].mxu0 %v781
        %v2426 = vpop.f32.mrb[0].mxu0
        %v2427 = vadd.f32 %v470, %v2426
        %v2428 = vpop.f32.mrb[0].mxu0
        %v2429 = vadd.f32 %v470, %v2428
        %2430 = vmatprep.mubr.f32.mxu0 0.0
        %2431 = vmatmul.mubr.f32.gmra.mrb[0].mxu0 %v784
        %v2432 = vpop.f32.mrb[0].mxu0
        %v2433 = vadd.f32 %v475, %v2432
        %v2434 = vpop.f32.mrb[0].mxu0
        %v2435 = vadd.f32 %v475, %v2434
        %2436 = vmatprep.mubr.f32.mxu0 0.0
        %2437 = vmatmul.mubr.f32.gmra.mrb[0].mxu0 %v787
        %v2438 = vpop.f32.mrb[0].mxu0
        %v2439 = vadd.f32 %v480, %v2438
        %v2440 = vpop.f32.mrb[0].mxu0
        %v2441 = vadd.f32 %v480, %v2440
        %2442 = vmatprep.mubr.f32.mxu0 0.0
        %2443 = vmatmul.mubr.f32.gmra.mrb[0].mxu0 %v790
        %v2444 = vpop.f32.mrb[0].mxu0
        %v2445 = vadd.f32 %v485, %v2444
        %v2446 = vpop.f32.mrb[0].mxu0
        %v2447 = vadd.f32 %v485, %v2446
        %2448 = vmatprep.mubr.f32.mxu0 0.0
        %2449 = vmatmul.mubr.f32.gmra.mrb[0].mxu0 %v793
        %v2450 = vpop.f32.mrb[0].mxu0
        %v2451 = vadd.f32 %v490, %v2450
        %v2452 = vpop.f32.mrb[0].mxu0
        %v2453 = vadd.f32 %v490, %v2452
        %2454 = vmatprep.mubr.f32.mxu0 0.0
        %2455 = vmatmul.mubr.f32.gmra.mrb[0].mxu0 %v796
        %v2456 = vpop.f32.mrb[0].mxu0
        %v2457 = vadd.f32 %v495, %v2456
        %v2458 = vpop.f32.mrb[0].mxu0
        %v2459 = vadd.f32 %v495, %v2458
        %2460 = vmatprep.mubr.f32.mxu0 0.0
        %2461 = vmatmul.mubr.f32.gmra.mrb[0].mxu0 %v799
        %v2462 = vpop.f32.mrb[0].mxu0
        %v2463 = vadd.f32 %v500, %v2462
        %v2464 = vpop.f32.mrb[0].mxu0
        %v2465 = vadd.f32 %v500, %v2464
        %2466 = vmatprep.mubr.f32.mxu0 0.0
        %2467 = vmatmul.mubr.f32.gmra.mrb[0].mxu0 %v802
        %v2468 = vpop.f32.mrb[0].mxu0
        %v2469 = vadd.f32 %v505, %v2468
        %v2470 = vpop.f32.mrb[0].mxu0
        %v2471 = vadd.f32 %v505, %v2470
        %2472 = vmatprep.mubr.f32.mxu0 0.0
        %2473 = vmatmul.mubr.f32.gmra.mrb[0].mxu0 %v805
        %v2474 = vpop.f32.mrb[0].mxu0
        %v2475 = vadd.f32 %v510, %v2474
        %v2476 = vpop.f32.mrb[0].mxu0
        %v2477 = vadd.f32 %v510, %v2476
        %2478 = vmatprep.mubr.f32.mxu0 0.0
        %2479 = vmatmul.mubr.f32.gmra.mrb[0].mxu0 %v808
        %v2480 = vpop.f32.mrb[0].mxu0
        %v2481 = vadd.f32 %v515, %v2480
        %v2482 = vpop.f32.mrb[0].mxu0
        %v2483 = vadd.f32 %v515, %v2482
        %2484 = vmatprep.mubr.f32.mxu0 0.0
        %2485 = vmatmul.mubr.f32.gmra.mrb[0].mxu0 %v811
        %v2486 = vpop.f32.mrb[0].mxu0
        %v2487 = vadd.f32 %v520, %v2486
        %v2488 = vpop.f32.mrb[0].mxu0
        %v2489 = vadd.f32 %v520, %v2488
        %2490 = vmatprep.mubr.f32.mxu0 0.0
        %2491 = vmatmul.mubr.f32.gmra.mrb[0].mxu0 %v814
        %v2492 = vpop.f32.mrb[0].mxu0
        %v2493 = vadd.f32 %v525, %v2492
        %v2494 = vpop.f32.mrb[0].mxu0
        %v2495 = vadd.f32 %v525, %v2494
        %2496 = vmatprep.mubr.f32.mxu0 0.0
        %2497 = vmatmul.mubr.f32.gmra.mrb[0].mxu0 %v817
        %v2498 = vpop.f32.mrb[0].mxu0
        %v2499 = vadd.f32 %v530, %v2498
        %v2500 = vpop.f32.mrb[0].mxu0
        %v2501 = vadd.f32 %v530, %v2500
        %2502 = vmatprep.mubr.f32.mxu0 0.0
        %2503 = vmatmul.mubr.f32.gmra.mrb[0].mxu0 %v820
        %v2504 = vpop.f32.mrb[0].mxu0
        %v2505 = vadd.f32 %v535, %v2504
        %v2506 = vpop.f32.mrb[0].mxu0
        %v2507 = vadd.f32 %v535, %v2506
        %2508 = vmatprep.mubr.f32.mxu0 0.0
        %2509 = vmatmul.mubr.f32.gmra.mrb[0].mxu0 %v823
        %v2510 = vpop.f32.mrb[0].mxu0
        %v2511 = vadd.f32 %v540, %v2510
        %v2512 = vpop.f32.mrb[0].mxu0
        %v2513 = vadd.f32 %v540, %v2512
        %2514 = vmatprep.mubr.f32.mxu0 0.0
        %2515 = vmatmul.mubr.f32.gmra.mrb[0].mxu0 %v826
        %v2516 = vpop.f32.mrb[0].mxu0
        %v2517 = vadd.f32 %v545, %v2516
        %v2518 = vpop.f32.mrb[0].mxu0
        %v2519 = vadd.f32 %v545, %v2518
        %2520 = vmatprep.mubr.f32.mxu0 0.0
        %2521 = vmatmul.mubr.f32.gmra.mrb[0].mxu0 %v829
        %v2522 = vpop.f32.mrb[0].mxu0
        %v2523 = vadd.f32 %v550, %v2522
        %v2524 = vpop.f32.mrb[0].mxu0
        %v2525 = vadd.f32 %v550, %v2524
        %2526 = vmatprep.mubr.f32.mxu0 0.0
        %2527 = vmatmul.mubr.f32.gmra.mrb[0].mxu0 %v832
        %v2528 = vpop.f32.mrb[0].mxu0
        %v2529 = vadd.f32 %v555, %v2528
        %v2530 = vpop.f32.mrb[0].mxu0
        %v2531 = vadd.f32 %v555, %v2530
        %2532 = vmatprep.mubr.f32.mxu0 0.0
        %2533 = vmatmul.mubr.f32.gmra.mrb[0].mxu0 %v835
        %v2534 = vpop.f32.mrb[0].mxu0
        %v2535 = vadd.f32 %v560, %v2534
        %v2536 = vpop.f32.mrb[0].mxu0
        %v2537 = vadd.f32 %v560, %v2536
        %2538 = vmatprep.mubr.f32.mxu0 0.0
        %2539 = vmatmul.mubr.f32.gmra.mrb[0].mxu0 %v838
        %v2540 = vpop.f32.mrb[0].mxu0
        %v2541 = vadd.f32 %v565, %v2540
        %v2542 = vpop.f32.mrb[0].mxu0
        %v2543 = vadd.f32 %v565, %v2542
        %2544 = vmatprep.mubr.f32.mxu0 0.0
        %2545 = vmatmul.mubr.f32.gmra.mrb[0].mxu0 %v841
        %v2546 = vpop.f32.mrb[0].mxu0
        %v2547 = vadd.f32 %v570, %v2546
        %v2548 = vpop.f32.mrb[0].mxu0
        %v2549 = vadd.f32 %v570, %v2548
        %2550 = vmatprep.mubr.f32.mxu0 0.0
        %2551 = vmatmul.mubr.f32.gmra.mrb[0].mxu0 %v844
        %v2552 = vpop.f32.mrb[0].mxu0
        %v2553 = vadd.f32 %v575, %v2552
        %v2554 = vpop.f32.mrb[0].mxu0
        %v2555 = vadd.f32 %v575, %v2554
        %2556 = vmatprep.mubr.f32.mxu0 0.0
        %2557 = vmatmul.mubr.f32.gmra.mrb[0].mxu0 %v847
        %v2558 = vpop.f32.mrb[0].mxu0
        %v2559 = vadd.f32 %v580, %v2558
        %v2560 = vpop.f32.mrb[0].mxu0
        %v2561 = vadd.f32 %v580, %v2560
        %2562 = vmatprep.mubr.f32.mxu0 0.0
        %2563 = vmatmul.mubr.f32.gmra.mrb[0].mxu0 %v850
        %v2564 = vpop.f32.mrb[0].mxu0
        %v2565 = vadd.f32 %v585, %v2564
        %v2566 = vpop.f32.mrb[0].mxu0
        %v2567 = vadd.f32 %v585, %v2566
        %2568 = vmatprep.mubr.f32.mxu0 0.0
        %2569 = vmatmul.mubr.f32.gmra.mrb[0].mxu0 %v853
        %v2570 = vpop.f32.mrb[0].mxu0
        %v2571 = vadd.f32 %v590, %v2570
        %v2572 = vpop.f32.mrb[0].mxu0
        %v2573 = vadd.f32 %v590, %v2572
        %2574 = vmatprep.mubr.f32.mxu0 0.0
        %2575 = vmatmul.mubr.f32.gmra.mrb[0].mxu0 %v856
        %v2576 = vpop.f32.mrb[0].mxu0
        %v2577 = vadd.f32 %v595, %v2576
        %v2578 = vpop.f32.mrb[0].mxu0
        %v2579 = vadd.f32 %v595, %v2578
        %2580 = vmatprep.mubr.f32.mxu0 0.0
        %2581 = vmatmul.mubr.f32.gmra.mrb[0].mxu0 %v859
        %v2582 = vpop.f32.mrb[0].mxu0
        %v2583 = vadd.f32 %v600, %v2582
        %v2584 = vpop.f32.mrb[0].mxu0
        %v2585 = vadd.f32 %v600, %v2584
        %2586 = vmatprep.mubr.f32.mxu0 0.0
        %2587 = vmatmul.mubr.f32.gmra.mrb[0].mxu0 %v862
        %v2588 = vpop.f32.mrb[0].mxu0
        %v2589 = vadd.f32 %v605, %v2588
        %v2590 = vpop.f32.mrb[0].mxu0
        %v2591 = vadd.f32 %v605, %v2590
        %2592 = vmatprep.mubr.f32.mxu0 0.0
        %2593 = vmatmul.mubr.f32.gmra.mrb[0].mxu0 %v865
        %v2594 = vpop.f32.mrb[0].mxu0
        %v2595 = vadd.f32 %v610, %v2594
        %v2596 = vpop.f32.mrb[0].mxu0
        %v2597 = vadd.f32 %v610, %v2596
        %2598 = vmatprep.mubr.f32.mxu0 0.0
        %2599 = vmatmul.mubr.f32.gmra.mrb[0].mxu0 %v868
        %v2600 = vpop.f32.mrb[0].mxu0
        %v2601 = vadd.f32 %v615, %v2600
        %v2602 = vpop.f32.mrb[0].mxu0
        %v2603 = vadd.f32 %v615, %v2602
        %2604 = vmatprep.mubr.f32.mxu0 0.0
        %2605 = vmatmul.mubr.f32.gmra.mrb[0].mxu0 %v871
        %v2606 = vpop.f32.mrb[0].mxu0
        %v2607 = vadd.f32 %v620, %v2606
        %v2608 = vpop.f32.mrb[0].mxu0
        %v2609 = vadd.f32 %v620, %v2608
        %2610 = vmatprep.mubr.f32.mxu0 0.0
        %2611 = vmatmul.mubr.f32.gmra.mrb[0].mxu0 %v874
        %v2612 = vpop.f32.mrb[0].mxu0
        %v2613 = vadd.f32 %v625, %v2612
        %v2614 = vpop.f32.mrb[0].mxu0
        %v2615 = vadd.f32 %v625, %v2614
        %2616 = vmatprep.mubr.f32.mxu0 0.0
        %2617 = vmatmul.mubr.f32.gmra.mrb[0].mxu0 %v877
        %v2618 = vpop.f32.mrb[0].mxu0
        %v2619 = vadd.f32 %v630, %v2618
        %v2620 = vpop.f32.mrb[0].mxu0
        %v2621 = vadd.f32 %v630, %v2620
        %2622 = vmatprep.mubr.f32.mxu0 0.0
        %2623 = vmatmul.mubr.f32.gmra.mrb[0].mxu0 %v880
        %v2624 = vpop.f32.mrb[0].mxu0
        %v2625 = vadd.f32 %v635, %v2624
        %v2626 = vpop.f32.mrb[0].mxu0
        %v2627 = vadd.f32 %v635, %v2626
        %2628 = vmatprep.mubr.f32.mxu0 0.0
        %2629 = vmatmul.mubr.f32.gmra.mrb[0].mxu0 %v883
        %v2630 = vpop.f32.mrb[0].mxu0
        %v2631 = vadd.f32 %v640, %v2630
        %v2632 = vpop.f32.mrb[0].mxu0
        %v2633 = vadd.f32 %v640, %v2632
        %2634 = vmatprep.mubr.f32.mxu0 0.0
        %2635 = vmatmul.mubr.f32.gmra.mrb[0].mxu0 %v886
        %v2636 = vpop.f32.mrb[0].mxu0
        %v2637 = vadd.f32 %v645, %v2636
        %v2638 = vpop.f32.mrb[0].mxu0
        %v2639 = vadd.f32 %v645, %v2638
        %2640 = vmatprep.mubr.f32.mxu0 0.0
        %2641 = vmatmul.mubr.f32.gmra.mrb[0].mxu0 %v889
        %v2642 = vpop.f32.mrb[0].mxu0
        %v2643 = vadd.f32 %v650, %v2642
        %v2644 = vpop.f32.mrb[0].mxu0
        %v2645 = vadd.f32 %v650, %v2644
        %2646 = vmatprep.mubr.f32.mxu0 0.0
        %2647 = vmatmul.mubr.f32.gmra.mrb[0].mxu0 %v892
        %v2648 = vpop.f32.mrb[0].mxu0
        %v2649 = vadd.f32 %v655, %v2648
        %v2650 = vpop.f32.mrb[0].mxu0
        %v2651 = vadd.f32 %v655, %v2650
        %2652 = vmatprep.mubr.f32.mxu0 0.0
        %2653 = vmatmul.mubr.f32.gmra.mrb[0].mxu0 %v895
        %v2654 = vpop.f32.mrb[0].mxu0
        %v2655 = vadd.f32 %v660, %v2654
        %v2656 = vpop.f32.mrb[0].mxu0
        %v2657 = vadd.f32 %v660, %v2656
        %2658 = vmatprep.mubr.f32.mxu0 0.0
        %2659 = vmatmul.mubr.f32.gmra.mrb[0].mxu0 %v898
        %v2660 = vpop.f32.mrb[0].mxu0
        %v2661 = vadd.f32 %v665, %v2660
        %v2662 = vpop.f32.mrb[0].mxu0
        %v2663 = vadd.f32 %v665, %v2662
        %2664 = vmatprep.mubr.f32.mxu0 0.0
        %2665 = vmatmul.mubr.f32.gmra.mrb[0].mxu0 %v901
        %v2666 = vpop.f32.mrb[0].mxu0
        %v2667 = vadd.f32 %v670, %v2666
        %v2668 = vpop.f32.mrb[0].mxu0
        %v2669 = vadd.f32 %v670, %v2668
        %2670 = vmatprep.mubr.f32.mxu0 0.0
        %2671 = vmatmul.mubr.f32.gmra.mrb[0].mxu0 %v904
        %v2672 = vpop.f32.mrb[0].mxu0
        %v2673 = vadd.f32 %v675, %v2672
        %v2674 = vpop.f32.mrb[0].mxu0
        %v2675 = vadd.f32 %v675, %v2674
        %2676 = vmatprep.mubr.f32.mxu0 0.0
        %2677 = vmatmul.mubr.f32.gmra.mrb[0].mxu0 %v907
        %v2678 = vpop.f32.mrb[0].mxu0
        %v2679 = vadd.f32 %v680, %v2678
        %v2680 = vpop.f32.mrb[0].mxu0
        %v2681 = vadd.f32 %v680, %v2680
        %2682 = vmatprep.mubr.f32.mxu0 0.0
        %2683 = vmatmul.mubr.f32.gmra.mrb[0].mxu0 %v910
        %v2684 = vpop.f32.mrb[0].mxu0
        %v2685 = vadd.f32 %v685, %v2684
        %v2686 = vpop.f32.mrb[0].mxu0
        %v2687 = vadd.f32 %v685, %v2686
        %2688 = vmatprep.mubr.f32.mxu0 0.0
        %2689 = vmatmul.mubr.f32.gmra.mrb[0].mxu0 %v913
        %v2690 = vpop.f32.mrb[0].mxu0
        %v2691 = vadd.f32 %v690, %v2690
        %v2692 = vpop.f32.mrb[0].mxu0
        %v2693 = vadd.f32 %v690, %v2692
        %2694 = vmatprep.mubr.f32.mxu0 0.0
        %2695 = vmatmul.mubr.f32.gmra.mrb[0].mxu0 %v916
        %v2696 = vpop.f32.mrb[0].mxu0
        %v2697 = vadd.f32 %v695, %v2696
        %v2698 = vpop.f32.mrb[0].mxu0
        %v2699 = vadd.f32 %v695, %v2698
        %2700 = vmatprep.mubr.f32.mxu0 0.0
        %2701 = vmatmul.mubr.f32.gmra.mrb[0].mxu0 %v919
        %v2702 = vpop.f32.mrb[0].mxu0
        %v2703 = vadd.f32 %v700, %v2702
        %v2704 = vpop.f32.mrb[0].mxu0
        %v2705 = vadd.f32 %v700, %v2704
        %2706 = vmatprep.mubr.f32.mxu0 0.0
        %2707 = vmatmul.mubr.f32.gmra.mrb[0].mxu0 %v922
        %v2708 = vpop.f32.mrb[0].mxu0
        %v2709 = vadd.f32 %v705, %v2708
        %v2710 = vpop.f32.mrb[0].mxu0
        %v2711 = vadd.f32 %v705, %v2710
        %2712 = vmatprep.mubr.f32.mxu0 0.0
        %2713 = vmatmul.mubr.f32.gmra.mrb[0].mxu0 %v925
        %v2714 = vpop.f32.mrb[0].mxu0
        %v2715 = vadd.f32 %v710, %v2714
        %v2716 = vpop.f32.mrb[0].mxu0
        %v2717 = vadd.f32 %v710, %v2716
        %2718 = vmatprep.mubr.f32.mxu0 0.0
        %2719 = vmatmul.mubr.f32.gmra.mrb[0].mxu0 %v928
        %v2720 = vpop.f32.mrb[0].mxu0
        %v2721 = vadd.f32 %v715, %v2720
        %v2722 = vpop.f32.mrb[0].mxu0
        %v2723 = vadd.f32 %v715, %v2722
        %2724 = vmatprep.mubr.f32.mxu0 0.0
        %2725 = vmatmul.mubr.f32.gmra.mrb[0].mxu0 %v931
        %v2726 = vpop.f32.mrb[0].mxu0
        %v2727 = vadd.f32 %v720, %v2726
        %v2728 = vpop.f32.mrb[0].mxu0
        %v2729 = vadd.f32 %v720, %v2728
        %2730 = vmatprep.mubr.f32.mxu0 0.0
        %2731 = vmatmul.mubr.f32.gmra.mrb[0].mxu0 %v934
        %v2732 = vpop.f32.mrb[0].mxu0
        %v2733 = vadd.f32 %v725, %v2732
        %v2734 = vpop.f32.mrb[0].mxu0
        %v2735 = vadd.f32 %v725, %v2734
        %2736 = vmatprep.mubr.f32.mxu0 0.0
        %2737 = vmatmul.mubr.f32.gmra.mrb[0].mxu0 %v937
        %v2738 = vpop.f32.mrb[0].mxu0
        %v2739 = vadd.f32 %v730, %v2738
        %v2740 = vpop.f32.mrb[0].mxu0
        %v2741 = vadd.f32 %v730, %v2740
        %2742 = vmatprep.mubr.f32.mxu0 0.0
        %2743 = vmatmul.mubr.f32.gmra.mrb[0].mxu0 %v940
        %v2744 = vpop.f32.mrb[0].mxu0
        %v2745 = vadd.f32 %v735, %v2744
        %v2746 = vpop.f32.mrb[0].mxu0
        %v2747 = vadd.f32 %v735, %v2746
        %2748 = vmatprep.mubr.f32.mxu0 0.0
        %2749 = vmatmul.mubr.f32.gmra.mrb[0].mxu0 %v943
        %v2750 = vpop.f32.mrb[0].mxu0
        %v2751 = vadd.f32 %v740, %v2750
        %v2752 = vpop.f32.mrb[0].mxu0
        %v2753 = vadd.f32 %v740, %v2752
        %2754 = vmatprep.mubr.f32.mxu0 0.0
        %2755 = vmatmul.mubr.f32.gmra.mrb[0].mxu0 %v946
        %v2756 = vpop.f32.mrb[0].mxu0
        %v2757 = vadd.f32 %v745, %v2756
        %v2758 = vpop.f32.mrb[0].mxu0
        %v2759 = vadd.f32 %v745, %v2758
        %2760 = vdwg.mxu0
        %v2761 = vmax.f32 %v1032, 0.0
        %v2762 = vmax.f32 %v1034, 0.0
        %v2763 = vmax.f32 %v1481, 0.0
        %v2764 = vmax.f32 %v1483, 0.0
        %v2765 = vmax.f32 %v1930, 0.0
        %v2766 = vmax.f32 %v1932, 0.0
        %v2767 = vmax.f32 %v2379, 0.0
        %v2768 = vmax.f32 %v2381, 0.0
        %v2769 = vmax.f32 %v1038, 0.0
        %v2770 = vmax.f32 %v1040, 0.0
        %v2771 = vmax.f32 %v1487, 0.0
        %v2772 = vmax.f32 %v1489, 0.0
        %v2773 = vmax.f32 %v1936, 0.0
        %v2774 = vmax.f32 %v1938, 0.0
        %v2775 = vmax.f32 %v2385, 0.0
        %v2776 = vmax.f32 %v2387, 0.0
        %v2777 = vmax.f32 %v1044, 0.0
        %v2778 = vmax.f32 %v1046, 0.0
        %v2779 = vmax.f32 %v1493, 0.0
        %v2780 = vmax.f32 %v1495, 0.0
        %v2781 = vmax.f32 %v1942, 0.0
        %v2782 = vmax.f32 %v1944, 0.0
        %v2783 = vmax.f32 %v2391, 0.0
        %v2784 = vmax.f32 %v2393, 0.0
        %v2785 = vmax.f32 %v1050, 0.0
        %v2786 = vmax.f32 %v1052, 0.0
        %v2787 = vmax.f32 %v1499, 0.0
        %v2788 = vmax.f32 %v1501, 0.0
        %v2789 = vmax.f32 %v1948, 0.0
        %v2790 = vmax.f32 %v1950, 0.0
        %v2791 = vmax.f32 %v2397, 0.0
        %v2792 = vmax.f32 %v2399, 0.0
        %v2793 = vmax.f32 %v1056, 0.0
        %v2794 = vmax.f32 %v1058, 0.0
        %v2795 = vmax.f32 %v1505, 0.0
        %v2796 = vmax.f32 %v1507, 0.0
        %v2797 = vmax.f32 %v1954, 0.0
        %v2798 = vmax.f32 %v1956, 0.0
        %v2799 = vmax.f32 %v2403, 0.0
        %v2800 = vmax.f32 %v2405, 0.0
        %v2801 = vmax.f32 %v1062, 0.0
        %v2802 = vmax.f32 %v1064, 0.0
        %v2803 = vmax.f32 %v1511, 0.0
        %v2804 = vmax.f32 %v1513, 0.0
        %v2805 = vmax.f32 %v1960, 0.0
        %v2806 = vmax.f32 %v1962, 0.0
        %v2807 = vmax.f32 %v2409, 0.0
        %v2808 = vmax.f32 %v2411, 0.0
        %v2809 = vmax.f32 %v1068, 0.0
        %v2810 = vmax.f32 %v1070, 0.0
        %v2811 = vmax.f32 %v1517, 0.0
        %v2812 = vmax.f32 %v1519, 0.0
        %v2813 = vmax.f32 %v1966, 0.0
        %v2814 = vmax.f32 %v1968, 0.0
        %v2815 = vmax.f32 %v2415, 0.0
        %v2816 = vmax.f32 %v2417, 0.0
        %v2817 = vmax.f32 %v1074, 0.0
        %v2818 = vmax.f32 %v1076, 0.0
        %v2819 = vmax.f32 %v1523, 0.0
        %v2820 = vmax.f32 %v1525, 0.0
        %v2821 = vmax.f32 %v1972, 0.0
        %v2822 = vmax.f32 %v1974, 0.0
        %v2823 = vmax.f32 %v2421, 0.0
        %v2824 = vmax.f32 %v2423, 0.0
        %v2825 = vmax.f32 %v1080, 0.0
        %v2826 = vmax.f32 %v1082, 0.0
        %v2827 = vmax.f32 %v1529, 0.0
        %v2828 = vmax.f32 %v1531, 0.0
        %v2829 = vmax.f32 %v1978, 0.0
        %v2830 = vmax.f32 %v1980, 0.0
        %v2831 = vmax.f32 %v2427, 0.0
        %v2832 = vmax.f32 %v2429, 0.0
        %v2833 = vmax.f32 %v1086, 0.0
        %v2834 = vmax.f32 %v1088, 0.0
        %v2835 = vmax.f32 %v1535, 0.0
        %v2836 = vmax.f32 %v1537, 0.0
        %v2837 = vmax.f32 %v1984, 0.0
        %v2838 = vmax.f32 %v1986, 0.0
        %v2839 = vmax.f32 %v2433, 0.0
        %v2840 = vmax.f32 %v2435, 0.0
        %v2841 = vmax.f32 %v1092, 0.0
        %v2842 = vmax.f32 %v1094, 0.0
        %v2843 = vmax.f32 %v1541, 0.0
        %v2844 = vmax.f32 %v1543, 0.0
        %v2845 = vmax.f32 %v1990, 0.0
        %v2846 = vmax.f32 %v1992, 0.0
        %v2847 = vmax.f32 %v2439, 0.0
        %v2848 = vmax.f32 %v2441, 0.0
        %v2849 = vmax.f32 %v1098, 0.0
        %v2850 = vmax.f32 %v1100, 0.0
        %v2851 = vmax.f32 %v1547, 0.0
        %v2852 = vmax.f32 %v1549, 0.0
        %v2853 = vmax.f32 %v1996, 0.0
        %v2854 = vmax.f32 %v1998, 0.0
        %v2855 = vmax.f32 %v2445, 0.0
        %v2856 = vmax.f32 %v2447, 0.0
        %v2857 = vmax.f32 %v1104, 0.0
        %v2858 = vmax.f32 %v1106, 0.0
        %v2859 = vmax.f32 %v1553, 0.0
        %v2860 = vmax.f32 %v1555, 0.0
        %v2861 = vmax.f32 %v2002, 0.0
        %v2862 = vmax.f32 %v2004, 0.0
        %v2863 = vmax.f32 %v2451, 0.0
        %v2864 = vmax.f32 %v2453, 0.0
        %v2865 = vmax.f32 %v1110, 0.0
        %v2866 = vmax.f32 %v1112, 0.0
        %v2867 = vmax.f32 %v1559, 0.0
        %v2868 = vmax.f32 %v1561, 0.0
        %v2869 = vmax.f32 %v2008, 0.0
        %v2870 = vmax.f32 %v2010, 0.0
        %v2871 = vmax.f32 %v2457, 0.0
        %v2872 = vmax.f32 %v2459, 0.0
        %v2873 = vmax.f32 %v1116, 0.0
        %v2874 = vmax.f32 %v1118, 0.0
        %v2875 = vmax.f32 %v1565, 0.0
        %v2876 = vmax.f32 %v1567, 0.0
        %v2877 = vmax.f32 %v2014, 0.0
        %v2878 = vmax.f32 %v2016, 0.0
        %v2879 = vmax.f32 %v2463, 0.0
        %v2880 = vmax.f32 %v2465, 0.0
        %v2881 = vmax.f32 %v1122, 0.0
        %v2882 = vmax.f32 %v1124, 0.0
        %v2883 = vmax.f32 %v1571, 0.0
        %v2884 = vmax.f32 %v1573, 0.0
        %v2885 = vmax.f32 %v2020, 0.0
        %v2886 = vmax.f32 %v2022, 0.0
        %v2887 = vmax.f32 %v2469, 0.0
        %v2888 = vmax.f32 %v2471, 0.0
        %v2889 = vmax.f32 %v1128, 0.0
        %v2890 = vmax.f32 %v1130, 0.0
        %v2891 = vmax.f32 %v1577, 0.0
        %v2892 = vmax.f32 %v1579, 0.0
        %v2893 = vmax.f32 %v2026, 0.0
        %v2894 = vmax.f32 %v2028, 0.0
        %v2895 = vmax.f32 %v2475, 0.0
        %v2896 = vmax.f32 %v2477, 0.0
        %v2897 = vmax.f32 %v1134, 0.0
        %v2898 = vmax.f32 %v1136, 0.0
        %v2899 = vmax.f32 %v1583, 0.0
        %v2900 = vmax.f32 %v1585, 0.0
        %v2901 = vmax.f32 %v2032, 0.0
        %v2902 = vmax.f32 %v2034, 0.0
        %v2903 = vmax.f32 %v2481, 0.0
        %v2904 = vmax.f32 %v2483, 0.0
        %v2905 = vmax.f32 %v1140, 0.0
        %v2906 = vmax.f32 %v1142, 0.0
        %v2907 = vmax.f32 %v1589, 0.0
        %v2908 = vmax.f32 %v1591, 0.0
        %v2909 = vmax.f32 %v2038, 0.0
        %v2910 = vmax.f32 %v2040, 0.0
        %v2911 = vmax.f32 %v2487, 0.0
        %v2912 = vmax.f32 %v2489, 0.0
        %v2913 = vmax.f32 %v1146, 0.0
        %v2914 = vmax.f32 %v1148, 0.0
        %v2915 = vmax.f32 %v1595, 0.0
        %v2916 = vmax.f32 %v1597, 0.0
        %v2917 = vmax.f32 %v2044, 0.0
        %v2918 = vmax.f32 %v2046, 0.0
        %v2919 = vmax.f32 %v2493, 0.0
        %v2920 = vmax.f32 %v2495, 0.0
        %v2921 = vmax.f32 %v1152, 0.0
        %v2922 = vmax.f32 %v1154, 0.0
        %v2923 = vmax.f32 %v1601, 0.0
        %v2924 = vmax.f32 %v1603, 0.0
        %v2925 = vmax.f32 %v2050, 0.0
        %v2926 = vmax.f32 %v2052, 0.0
        %v2927 = vmax.f32 %v2499, 0.0
        %v2928 = vmax.f32 %v2501, 0.0
        %v2929 = vmax.f32 %v1158, 0.0
        %v2930 = vmax.f32 %v1160, 0.0
        %v2931 = vmax.f32 %v1607, 0.0
        %v2932 = vmax.f32 %v1609, 0.0
        %v2933 = vmax.f32 %v2056, 0.0
        %v2934 = vmax.f32 %v2058, 0.0
        %v2935 = vmax.f32 %v2505, 0.0
        %v2936 = vmax.f32 %v2507, 0.0
        %v2937 = vmax.f32 %v1164, 0.0
        %v2938 = vmax.f32 %v1166, 0.0
        %v2939 = vmax.f32 %v1613, 0.0
        %v2940 = vmax.f32 %v1615, 0.0
        %v2941 = vmax.f32 %v2062, 0.0
        %v2942 = vmax.f32 %v2064, 0.0
        %v2943 = vmax.f32 %v2511, 0.0
        %v2944 = vmax.f32 %v2513, 0.0
        %v2945 = vmax.f32 %v1170, 0.0
        %v2946 = vmax.f32 %v1172, 0.0
        %v2947 = vmax.f32 %v1619, 0.0
        %v2948 = vmax.f32 %v1621, 0.0
        %v2949 = vmax.f32 %v2068, 0.0
        %v2950 = vmax.f32 %v2070, 0.0
        %v2951 = vmax.f32 %v2517, 0.0
        %v2952 = vmax.f32 %v2519, 0.0
        %v2953 = vmax.f32 %v1176, 0.0
        %v2954 = vmax.f32 %v1178, 0.0
        %v2955 = vmax.f32 %v1625, 0.0
        %v2956 = vmax.f32 %v1627, 0.0
        %v2957 = vmax.f32 %v2074, 0.0
        %v2958 = vmax.f32 %v2076, 0.0
        %v2959 = vmax.f32 %v2523, 0.0
        %v2960 = vmax.f32 %v2525, 0.0
        %v2961 = vmax.f32 %v1182, 0.0
        %v2962 = vmax.f32 %v1184, 0.0
        %v2963 = vmax.f32 %v1631, 0.0
        %v2964 = vmax.f32 %v1633, 0.0
        %v2965 = vmax.f32 %v2080, 0.0
        %v2966 = vmax.f32 %v2082, 0.0
        %v2967 = vmax.f32 %v2529, 0.0
        %v2968 = vmax.f32 %v2531, 0.0
        %v2969 = vmax.f32 %v1188, 0.0
        %v2970 = vmax.f32 %v1190, 0.0
        %v2971 = vmax.f32 %v1637, 0.0
        %v2972 = vmax.f32 %v1639, 0.0
        %v2973 = vmax.f32 %v2086, 0.0
        %v2974 = vmax.f32 %v2088, 0.0
        %v2975 = vmax.f32 %v2535, 0.0
        %v2976 = vmax.f32 %v2537, 0.0
        %v2977 = vmax.f32 %v1194, 0.0
        %v2978 = vmax.f32 %v1196, 0.0
        %v2979 = vmax.f32 %v1643, 0.0
        %v2980 = vmax.f32 %v1645, 0.0
        %v2981 = vmax.f32 %v2092, 0.0
        %v2982 = vmax.f32 %v2094, 0.0
        %v2983 = vmax.f32 %v2541, 0.0
        %v2984 = vmax.f32 %v2543, 0.0
        %v2985 = vmax.f32 %v1200, 0.0
        %v2986 = vmax.f32 %v1202, 0.0
        %v2987 = vmax.f32 %v1649, 0.0
        %v2988 = vmax.f32 %v1651, 0.0
        %v2989 = vmax.f32 %v2098, 0.0
        %v2990 = vmax.f32 %v2100, 0.0
        %v2991 = vmax.f32 %v2547, 0.0
        %v2992 = vmax.f32 %v2549, 0.0
        %v2993 = vmax.f32 %v1206, 0.0
        %v2994 = vmax.f32 %v1208, 0.0
        %v2995 = vmax.f32 %v1655, 0.0
        %v2996 = vmax.f32 %v1657, 0.0
        %v2997 = vmax.f32 %v2104, 0.0
        %v2998 = vmax.f32 %v2106, 0.0
        %v2999 = vmax.f32 %v2553, 0.0
        %v3000 = vmax.f32 %v2555, 0.0
        %v3001 = vmax.f32 %v1212, 0.0
        %v3002 = vmax.f32 %v1214, 0.0
        %v3003 = vmax.f32 %v1661, 0.0
        %v3004 = vmax.f32 %v1663, 0.0
        %v3005 = vmax.f32 %v2110, 0.0
        %v3006 = vmax.f32 %v2112, 0.0
        %v3007 = vmax.f32 %v2559, 0.0
        %v3008 = vmax.f32 %v2561, 0.0
        %v3009 = vmax.f32 %v1218, 0.0
        %v3010 = vmax.f32 %v1220, 0.0
        %v3011 = vmax.f32 %v1667, 0.0
        %v3012 = vmax.f32 %v1669, 0.0
        %v3013 = vmax.f32 %v2116, 0.0
        %v3014 = vmax.f32 %v2118, 0.0
        %v3015 = vmax.f32 %v2565, 0.0
        %v3016 = vmax.f32 %v2567, 0.0
        %v3017 = vmax.f32 %v1224, 0.0
        %v3018 = vmax.f32 %v1226, 0.0
        %v3019 = vmax.f32 %v1673, 0.0
        %v3020 = vmax.f32 %v1675, 0.0
        %v3021 = vmax.f32 %v2122, 0.0
        %v3022 = vmax.f32 %v2124, 0.0
        %v3023 = vmax.f32 %v2571, 0.0
        %v3024 = vmax.f32 %v2573, 0.0
        %v3025 = vmax.f32 %v1230, 0.0
        %v3026 = vmax.f32 %v1232, 0.0
        %v3027 = vmax.f32 %v1679, 0.0
        %v3028 = vmax.f32 %v1681, 0.0
        %v3029 = vmax.f32 %v2128, 0.0
        %v3030 = vmax.f32 %v2130, 0.0
        %v3031 = vmax.f32 %v2577, 0.0
        %v3032 = vmax.f32 %v2579, 0.0
        %v3033 = vmax.f32 %v1236, 0.0
        %v3034 = vmax.f32 %v1238, 0.0
        %v3035 = vmax.f32 %v1685, 0.0
        %v3036 = vmax.f32 %v1687, 0.0
        %v3037 = vmax.f32 %v2134, 0.0
        %v3038 = vmax.f32 %v2136, 0.0
        %v3039 = vmax.f32 %v2583, 0.0
        %v3040 = vmax.f32 %v2585, 0.0
        %v3041 = vmax.f32 %v1242, 0.0
        %v3042 = vmax.f32 %v1244, 0.0
        %v3043 = vmax.f32 %v1691, 0.0
        %v3044 = vmax.f32 %v1693, 0.0
        %v3045 = vmax.f32 %v2140, 0.0
        %v3046 = vmax.f32 %v2142, 0.0
        %v3047 = vmax.f32 %v2589, 0.0
        %v3048 = vmax.f32 %v2591, 0.0
        %v3049 = vmax.f32 %v1248, 0.0
        %v3050 = vmax.f32 %v1250, 0.0
        %v3051 = vmax.f32 %v1697, 0.0
        %v3052 = vmax.f32 %v1699, 0.0
        %v3053 = vmax.f32 %v2146, 0.0
        %v3054 = vmax.f32 %v2148, 0.0
        %v3055 = vmax.f32 %v2595, 0.0
        %v3056 = vmax.f32 %v2597, 0.0
        %v3057 = vmax.f32 %v1254, 0.0
        %v3058 = vmax.f32 %v1256, 0.0
        %v3059 = vmax.f32 %v1703, 0.0
        %v3060 = vmax.f32 %v1705, 0.0
        %v3061 = vmax.f32 %v2152, 0.0
        %v3062 = vmax.f32 %v2154, 0.0
        %v3063 = vmax.f32 %v2601, 0.0
        %v3064 = vmax.f32 %v2603, 0.0
        %v3065 = vmax.f32 %v1260, 0.0
        %v3066 = vmax.f32 %v1262, 0.0
        %v3067 = vmax.f32 %v1709, 0.0
        %v3068 = vmax.f32 %v1711, 0.0
        %v3069 = vmax.f32 %v2158, 0.0
        %v3070 = vmax.f32 %v2160, 0.0
        %v3071 = vmax.f32 %v2607, 0.0
        %v3072 = vmax.f32 %v2609, 0.0
        %v3073 = vmax.f32 %v1266, 0.0
        %v3074 = vmax.f32 %v1268, 0.0
        %v3075 = vmax.f32 %v1715, 0.0
        %v3076 = vmax.f32 %v1717, 0.0
        %v3077 = vmax.f32 %v2164, 0.0
        %v3078 = vmax.f32 %v2166, 0.0
        %v3079 = vmax.f32 %v2613, 0.0
        %v3080 = vmax.f32 %v2615, 0.0
        %v3081 = vmax.f32 %v1272, 0.0
        %v3082 = vmax.f32 %v1274, 0.0
        %v3083 = vmax.f32 %v1721, 0.0
        %v3084 = vmax.f32 %v1723, 0.0
        %v3085 = vmax.f32 %v2170, 0.0
        %v3086 = vmax.f32 %v2172, 0.0
        %v3087 = vmax.f32 %v2619, 0.0
        %v3088 = vmax.f32 %v2621, 0.0
        %v3089 = vmax.f32 %v1278, 0.0
        %v3090 = vmax.f32 %v1280, 0.0
        %v3091 = vmax.f32 %v1727, 0.0
        %v3092 = vmax.f32 %v1729, 0.0
        %v3093 = vmax.f32 %v2176, 0.0
        %v3094 = vmax.f32 %v2178, 0.0
        %v3095 = vmax.f32 %v2625, 0.0
        %v3096 = vmax.f32 %v2627, 0.0
        %v3097 = vmax.f32 %v1284, 0.0
        %v3098 = vmax.f32 %v1286, 0.0
        %v3099 = vmax.f32 %v1733, 0.0
        %v3100 = vmax.f32 %v1735, 0.0
        %v3101 = vmax.f32 %v2182, 0.0
        %v3102 = vmax.f32 %v2184, 0.0
        %v3103 = vmax.f32 %v2631, 0.0
        %v3104 = vmax.f32 %v2633, 0.0
        %v3105 = vmax.f32 %v1290, 0.0
        %v3106 = vmax.f32 %v1292, 0.0
        %v3107 = vmax.f32 %v1739, 0.0
        %v3108 = vmax.f32 %v1741, 0.0
        %v3109 = vmax.f32 %v2188, 0.0
        %v3110 = vmax.f32 %v2190, 0.0
        %v3111 = vmax.f32 %v2637, 0.0
        %v3112 = vmax.f32 %v2639, 0.0
        %v3113 = vmax.f32 %v1296, 0.0
        %v3114 = vmax.f32 %v1298, 0.0
        %v3115 = vmax.f32 %v1745, 0.0
        %v3116 = vmax.f32 %v1747, 0.0
        %v3117 = vmax.f32 %v2194, 0.0
        %v3118 = vmax.f32 %v2196, 0.0
        %v3119 = vmax.f32 %v2643, 0.0
        %v3120 = vmax.f32 %v2645, 0.0
        %v3121 = vmax.f32 %v1302, 0.0
        %v3122 = vmax.f32 %v1304, 0.0
        %v3123 = vmax.f32 %v1751, 0.0
        %v3124 = vmax.f32 %v1753, 0.0
        %v3125 = vmax.f32 %v2200, 0.0
        %v3126 = vmax.f32 %v2202, 0.0
        %v3127 = vmax.f32 %v2649, 0.0
        %v3128 = vmax.f32 %v2651, 0.0
        %v3129 = vmax.f32 %v1308, 0.0
        %v3130 = vmax.f32 %v1310, 0.0
        %v3131 = vmax.f32 %v1757, 0.0
        %v3132 = vmax.f32 %v1759, 0.0
        %v3133 = vmax.f32 %v2206, 0.0
        %v3134 = vmax.f32 %v2208, 0.0
        %v3135 = vmax.f32 %v2655, 0.0
        %v3136 = vmax.f32 %v2657, 0.0
        %v3137 = vmax.f32 %v1314, 0.0
        %v3138 = vmax.f32 %v1316, 0.0
        %v3139 = vmax.f32 %v1763, 0.0
        %v3140 = vmax.f32 %v1765, 0.0
        %v3141 = vmax.f32 %v2212, 0.0
        %v3142 = vmax.f32 %v2214, 0.0
        %v3143 = vmax.f32 %v2661, 0.0
        %v3144 = vmax.f32 %v2663, 0.0
        %v3145 = vmax.f32 %v1320, 0.0
        %v3146 = vmax.f32 %v1322, 0.0
        %v3147 = vmax.f32 %v1769, 0.0
        %v3148 = vmax.f32 %v1771, 0.0
        %v3149 = vmax.f32 %v2218, 0.0
        %v3150 = vmax.f32 %v2220, 0.0
        %v3151 = vmax.f32 %v2667, 0.0
        %v3152 = vmax.f32 %v2669, 0.0
        %v3153 = vmax.f32 %v1326, 0.0
        %v3154 = vmax.f32 %v1328, 0.0
        %v3155 = vmax.f32 %v1775, 0.0
        %v3156 = vmax.f32 %v1777, 0.0
        %v3157 = vmax.f32 %v2224, 0.0
        %v3158 = vmax.f32 %v2226, 0.0
        %v3159 = vmax.f32 %v2673, 0.0
        %v3160 = vmax.f32 %v2675, 0.0
        %v3161 = vmax.f32 %v1332, 0.0
        %v3162 = vmax.f32 %v1334, 0.0
        %v3163 = vmax.f32 %v1781, 0.0
        %v3164 = vmax.f32 %v1783, 0.0
        %v3165 = vmax.f32 %v2230, 0.0
        %v3166 = vmax.f32 %v2232, 0.0
        %v3167 = vmax.f32 %v2679, 0.0
        %v3168 = vmax.f32 %v2681, 0.0
        %v3169 = vmax.f32 %v1338, 0.0
        %v3170 = vmax.f32 %v1340, 0.0
        %v3171 = vmax.f32 %v1787, 0.0
        %v3172 = vmax.f32 %v1789, 0.0
        %v3173 = vmax.f32 %v2236, 0.0
        %v3174 = vmax.f32 %v2238, 0.0
        %v3175 = vmax.f32 %v2685, 0.0
        %v3176 = vmax.f32 %v2687, 0.0
        %v3177 = vmax.f32 %v1344, 0.0
        %v3178 = vmax.f32 %v1346, 0.0
        %v3179 = vmax.f32 %v1793, 0.0
        %v3180 = vmax.f32 %v1795, 0.0
        %v3181 = vmax.f32 %v2242, 0.0
        %v3182 = vmax.f32 %v2244, 0.0
        %v3183 = vmax.f32 %v2691, 0.0
        %v3184 = vmax.f32 %v2693, 0.0
        %v3185 = vmax.f32 %v1350, 0.0
        %v3186 = vmax.f32 %v1352, 0.0
        %v3187 = vmax.f32 %v1799, 0.0
        %v3188 = vmax.f32 %v1801, 0.0
        %v3189 = vmax.f32 %v2248, 0.0
        %v3190 = vmax.f32 %v2250, 0.0
        %v3191 = vmax.f32 %v2697, 0.0
        %v3192 = vmax.f32 %v2699, 0.0
        %v3193 = vmax.f32 %v1356, 0.0
        %v3194 = vmax.f32 %v1358, 0.0
        %v3195 = vmax.f32 %v1805, 0.0
        %v3196 = vmax.f32 %v1807, 0.0
        %v3197 = vmax.f32 %v2254, 0.0
        %v3198 = vmax.f32 %v2256, 0.0
        %v3199 = vmax.f32 %v2703, 0.0
        %v3200 = vmax.f32 %v2705, 0.0
        %v3201 = vmax.f32 %v1362, 0.0
        %v3202 = vmax.f32 %v1364, 0.0
        %v3203 = vmax.f32 %v1811, 0.0
        %v3204 = vmax.f32 %v1813, 0.0
        %v3205 = vmax.f32 %v2260, 0.0
        %v3206 = vmax.f32 %v2262, 0.0
        %v3207 = vmax.f32 %v2709, 0.0
        %v3208 = vmax.f32 %v2711, 0.0
        %v3209 = vmax.f32 %v1368, 0.0
        %v3210 = vmax.f32 %v1370, 0.0
        %v3211 = vmax.f32 %v1817, 0.0
        %v3212 = vmax.f32 %v1819, 0.0
        %v3213 = vmax.f32 %v2266, 0.0
        %v3214 = vmax.f32 %v2268, 0.0
        %v3215 = vmax.f32 %v2715, 0.0
        %v3216 = vmax.f32 %v2717, 0.0
        %v3217 = vmax.f32 %v1374, 0.0
        %v3218 = vmax.f32 %v1376, 0.0
        %v3219 = vmax.f32 %v1823, 0.0
        %v3220 = vmax.f32 %v1825, 0.0
        %v3221 = vmax.f32 %v2272, 0.0
        %v3222 = vmax.f32 %v2274, 0.0
        %v3223 = vmax.f32 %v2721, 0.0
        %v3224 = vmax.f32 %v2723, 0.0
        %v3225 = vmax.f32 %v1380, 0.0
        %v3226 = vmax.f32 %v1382, 0.0
        %v3227 = vmax.f32 %v1829, 0.0
        %v3228 = vmax.f32 %v1831, 0.0
        %v3229 = vmax.f32 %v2278, 0.0
        %v3230 = vmax.f32 %v2280, 0.0
        %v3231 = vmax.f32 %v2727, 0.0
        %v3232 = vmax.f32 %v2729, 0.0
        %v3233 = vmax.f32 %v1386, 0.0
        %v3234 = vmax.f32 %v1388, 0.0
        %v3235 = vmax.f32 %v1835, 0.0
        %v3236 = vmax.f32 %v1837, 0.0
        %v3237 = vmax.f32 %v2284, 0.0
        %v3238 = vmax.f32 %v2286, 0.0
        %v3239 = vmax.f32 %v2733, 0.0
        %v3240 = vmax.f32 %v2735, 0.0
        %v3241 = vmax.f32 %v1392, 0.0
        %v3242 = vmax.f32 %v1394, 0.0
        %v3243 = vmax.f32 %v1841, 0.0
        %v3244 = vmax.f32 %v1843, 0.0
        %v3245 = vmax.f32 %v2290, 0.0
        %v3246 = vmax.f32 %v2292, 0.0
        %v3247 = vmax.f32 %v2739, 0.0
        %v3248 = vmax.f32 %v2741, 0.0
        %v3249 = vmax.f32 %v1398, 0.0
        %v3250 = vmax.f32 %v1400, 0.0
        %v3251 = vmax.f32 %v1847, 0.0
        %v3252 = vmax.f32 %v1849, 0.0
        %v3253 = vmax.f32 %v2296, 0.0
        %v3254 = vmax.f32 %v2298, 0.0
        %v3255 = vmax.f32 %v2745, 0.0
        %v3256 = vmax.f32 %v2747, 0.0
        %v3257 = vmax.f32 %v1404, 0.0
        %v3258 = vmax.f32 %v1406, 0.0
        %v3259 = vmax.f32 %v1853, 0.0
        %v3260 = vmax.f32 %v1855, 0.0
        %v3261 = vmax.f32 %v2302, 0.0
        %v3262 = vmax.f32 %v2304, 0.0
        %v3263 = vmax.f32 %v2751, 0.0
        %v3264 = vmax.f32 %v2753, 0.0
        %v3265 = vmax.f32 %v1410, 0.0
        %v3266 = vmax.f32 %v1412, 0.0
        %v3267 = vmax.f32 %v1859, 0.0
        %v3268 = vmax.f32 %v1861, 0.0
        %v3269 = vmax.f32 %v2308, 0.0
        %v3270 = vmax.f32 %v2310, 0.0
        %v3271 = vmax.f32 %v2757, 0.0
        %v3272 = vmax.f32 %v2759, 0.0
        %v3273 = vld [vmem:[%s3] sm:$0xf]
        %v3276 = vunpack.c.l.s4 1983009808
        %v3277 = vunpack.c.0.s8 %v3276
        %v3278 = vlaneseq
        %v3279 = vshrl.u32 %v3278, 7
        %v3280 = vsub.s32 %v3277, %v3279
        %v3281 = vrot.slane %v3273, %v3280
        %v3282 = vcombine.high %v3281, %v3281
        %3285 = vmatprep.subr.mxu0 %v2762
        %3286 = vmatpush1.msra.mxu0 %v2761
        %3287 = vmatprep.subr.mxu0 %v2770
        %3288 = vmatpush1.msra.mxu0 %v2769
        %3289 = vmatprep.subr.mxu0 %v2778
        %3290 = vmatpush1.msra.mxu0 %v2777
        %3291 = vmatprep.subr.mxu0 %v2786
        %3292 = vmatpush1.msra.mxu0 %v2785
        %3293 = vmatprep.subr.mxu0 %v2794
        %3294 = vmatpush1.msra.mxu0 %v2793
        %3295 = vmatprep.subr.mxu0 %v2802
        %3296 = vmatpush1.msra.mxu0 %v2801
        %3297 = vmatprep.subr.mxu0 %v2810
        %3298 = vmatpush1.msra.mxu0 %v2809
        %3299 = vmatprep.subr.mxu0 %v2818
        %3300 = vmatpush1.msra.mxu0 %v2817
        %3301 = vmatprep.subr.mxu0 %v2826
        %3302 = vmatpush1.msra.mxu0 %v2825
        %3303 = vmatprep.subr.mxu0 %v2834
        %3304 = vmatpush1.msra.mxu0 %v2833
        %3305 = vmatprep.subr.mxu0 %v2842
        %3306 = vmatpush1.msra.mxu0 %v2841
        %3307 = vmatprep.subr.mxu0 %v2850
        %3308 = vmatpush1.msra.mxu0 %v2849
        %3309 = vmatprep.subr.mxu0 %v2858
        %3310 = vmatpush1.msra.mxu0 %v2857
        %3311 = vmatprep.subr.mxu0 %v2866
        %3312 = vmatpush1.msra.mxu0 %v2865
        %3313 = vmatprep.subr.mxu0 %v2874
        %3314 = vmatpush1.msra.mxu0 %v2873
        %3315 = vmatprep.subr.mxu0 %v2882
        %3316 = vmatpush1.msra.mxu0 %v2881
        %3317 = vmatprep.subr.mxu0 %v2890
        %3318 = vmatpush1.msra.mxu0 %v2889
        %3319 = vmatprep.subr.mxu0 %v2898
        %3320 = vmatpush1.msra.mxu0 %v2897
        %3321 = vmatprep.subr.mxu0 %v2906
        %3322 = vmatpush1.msra.mxu0 %v2905
        %3323 = vmatprep.subr.mxu0 %v2914
        %3324 = vmatpush1.msra.mxu0 %v2913
        %3325 = vmatprep.subr.mxu0 %v2922
        %3326 = vmatpush1.msra.mxu0 %v2921
        %3327 = vmatprep.subr.mxu0 %v2930
        %3328 = vmatpush1.msra.mxu0 %v2929
        %3329 = vmatprep.subr.mxu0 %v2938
        %3330 = vmatpush1.msra.mxu0 %v2937
        %3331 = vmatprep.subr.mxu0 %v2946
        %3332 = vmatpush1.msra.mxu0 %v2945
        %3333 = vmatprep.subr.mxu0 %v2954
        %3334 = vmatpush1.msra.mxu0 %v2953
        %3335 = vmatprep.subr.mxu0 %v2962
        %3336 = vmatpush1.msra.mxu0 %v2961
        %3337 = vmatprep.subr.mxu0 %v2970
        %3338 = vmatpush1.msra.mxu0 %v2969
        %3339 = vmatprep.subr.mxu0 %v2978
        %3340 = vmatpush1.msra.mxu0 %v2977
        %3341 = vmatprep.subr.mxu0 %v2986
        %3342 = vmatpush1.msra.mxu0 %v2985
        %3343 = vmatprep.subr.mxu0 %v2994
        %3344 = vmatpush1.msra.mxu0 %v2993
        %3345 = vmatprep.subr.mxu0 %v3002
        %3346 = vmatpush1.msra.mxu0 %v3001
        %3347 = vmatprep.subr.mxu0 %v3010
        %3348 = vmatpush1.msra.mxu0 %v3009
        %3349 = vmatprep.mubr.f32.mxu0 %v3282
        %3350 = vmatmul.mubr.f32.gmra.mrb[0].mxu0 %v3281
        %v3351 = vpop.f32.mrb[0].mxu0
        %v3352 = vadd.f32 0.0, %v3351
        %v3353 = vpop.f32.mrb[0].mxu0
        %v3354 = vadd.f32 0.0, %v3353
        %3355 = vdwg.mxu0
        %3356 = vmatprep.subr.mxu0 %v2764
        %3357 = vmatpush1.msra.mxu0 %v2763
        %3358 = vmatprep.subr.mxu0 %v2772
        %3359 = vmatpush1.msra.mxu0 %v2771
        %3360 = vmatprep.subr.mxu0 %v2780
        %3361 = vmatpush1.msra.mxu0 %v2779
        %3362 = vmatprep.subr.mxu0 %v2788
        %3363 = vmatpush1.msra.mxu0 %v2787
        %3364 = vmatprep.subr.mxu0 %v2796
        %3365 = vmatpush1.msra.mxu0 %v2795
        %3366 = vmatprep.subr.mxu0 %v2804
        %3367 = vmatpush1.msra.mxu0 %v2803
        %3368 = vmatprep.subr.mxu0 %v2812
        %3369 = vmatpush1.msra.mxu0 %v2811
        %3370 = vmatprep.subr.mxu0 %v2820
        %3371 = vmatpush1.msra.mxu0 %v2819
        %3372 = vmatprep.subr.mxu0 %v2828
        %3373 = vmatpush1.msra.mxu0 %v2827
        %3374 = vmatprep.subr.mxu0 %v2836
        %3375 = vmatpush1.msra.mxu0 %v2835
        %3376 = vmatprep.subr.mxu0 %v2844
        %3377 = vmatpush1.msra.mxu0 %v2843
        %3378 = vmatprep.subr.mxu0 %v2852
        %3379 = vmatpush1.msra.mxu0 %v2851
        %3380 = vmatprep.subr.mxu0 %v2860
        %3381 = vmatpush1.msra.mxu0 %v2859
        %3382 = vmatprep.subr.mxu0 %v2868
        %3383 = vmatpush1.msra.mxu0 %v2867
        %3384 = vmatprep.subr.mxu0 %v2876
        %3385 = vmatpush1.msra.mxu0 %v2875
        %3386 = vmatprep.subr.mxu0 %v2884
        %3387 = vmatpush1.msra.mxu0 %v2883
        %3388 = vmatprep.subr.mxu0 %v2892
        %3389 = vmatpush1.msra.mxu0 %v2891
        %3390 = vmatprep.subr.mxu0 %v2900
        %3391 = vmatpush1.msra.mxu0 %v2899
        %3392 = vmatprep.subr.mxu0 %v2908
        %3393 = vmatpush1.msra.mxu0 %v2907
        %3394 = vmatprep.subr.mxu0 %v2916
        %3395 = vmatpush1.msra.mxu0 %v2915
        %3396 = vmatprep.subr.mxu0 %v2924
        %3397 = vmatpush1.msra.mxu0 %v2923
        %3398 = vmatprep.subr.mxu0 %v2932
        %3399 = vmatpush1.msra.mxu0 %v2931
        %3400 = vmatprep.subr.mxu0 %v2940
        %3401 = vmatpush1.msra.mxu0 %v2939
        %3402 = vmatprep.subr.mxu0 %v2948
        %3403 = vmatpush1.msra.mxu0 %v2947
        %3404 = vmatprep.subr.mxu0 %v2956
        %3405 = vmatpush1.msra.mxu0 %v2955
        %3406 = vmatprep.subr.mxu0 %v2964
        %3407 = vmatpush1.msra.mxu0 %v2963
        %3408 = vmatprep.subr.mxu0 %v2972
        %3409 = vmatpush1.msra.mxu0 %v2971
        %3410 = vmatprep.subr.mxu0 %v2980
        %3411 = vmatpush1.msra.mxu0 %v2979
        %3412 = vmatprep.subr.mxu0 %v2988
        %3413 = vmatpush1.msra.mxu0 %v2987
        %3414 = vmatprep.subr.mxu0 %v2996
        %3415 = vmatpush1.msra.mxu0 %v2995
        %3416 = vmatprep.subr.mxu0 %v3004
        %3417 = vmatpush1.msra.mxu0 %v3003
        %3418 = vmatprep.subr.mxu0 %v3012
        %3419 = vmatpush1.msra.mxu0 %v3011
        %3420 = vmatprep.mubr.f32.mxu0 %v3282
        %3421 = vmatmul.mubr.f32.gmra.mrb[0].mxu0 %v3281
        %v3422 = vpop.f32.mrb[0].mxu0
        %v3423 = vadd.f32 0.0, %v3422
        %v3424 = vpop.f32.mrb[0].mxu0
        %v3425 = vadd.f32 0.0, %v3424
        %3426 = vdwg.mxu0
        %3427 = vmatprep.subr.mxu0 %v2766
        %3428 = vmatpush1.msra.mxu0 %v2765
        %3429 = vmatprep.subr.mxu0 %v2774
        %3430 = vmatpush1.msra.mxu0 %v2773
        %3431 = vmatprep.subr.mxu0 %v2782
        %3432 = vmatpush1.msra.mxu0 %v2781
        %3433 = vmatprep.subr.mxu0 %v2790
        %3434 = vmatpush1.msra.mxu0 %v2789
        %3435 = vmatprep.subr.mxu0 %v2798
        %3436 = vmatpush1.msra.mxu0 %v2797
        %3437 = vmatprep.subr.mxu0 %v2806
        %3438 = vmatpush1.msra.mxu0 %v2805
        %3439 = vmatprep.subr.mxu0 %v2814
        %3440 = vmatpush1.msra.mxu0 %v2813
        %3441 = vmatprep.subr.mxu0 %v2822
        %3442 = vmatpush1.msra.mxu0 %v2821
        %3443 = vmatprep.subr.mxu0 %v2830
        %3444 = vmatpush1.msra.mxu0 %v2829
        %3445 = vmatprep.subr.mxu0 %v2838
        %3446 = vmatpush1.msra.mxu0 %v2837
        %3447 = vmatprep.subr.mxu0 %v2846
        %3448 = vmatpush1.msra.mxu0 %v2845
        %3449 = vmatprep.subr.mxu0 %v2854
        %3450 = vmatpush1.msra.mxu0 %v2853
        %3451 = vmatprep.subr.mxu0 %v2862
        %3452 = vmatpush1.msra.mxu0 %v2861
        %3453 = vmatprep.subr.mxu0 %v2870
        %3454 = vmatpush1.msra.mxu0 %v2869
        %3455 = vmatprep.subr.mxu0 %v2878
        %3456 = vmatpush1.msra.mxu0 %v2877
        %3457 = vmatprep.subr.mxu0 %v2886
        %3458 = vmatpush1.msra.mxu0 %v2885
        %3459 = vmatprep.subr.mxu0 %v2894
        %3460 = vmatpush1.msra.mxu0 %v2893
        %3461 = vmatprep.subr.mxu0 %v2902
        %3462 = vmatpush1.msra.mxu0 %v2901
        %3463 = vmatprep.subr.mxu0 %v2910
        %3464 = vmatpush1.msra.mxu0 %v2909
        %3465 = vmatprep.subr.mxu0 %v2918
        %3466 = vmatpush1.msra.mxu0 %v2917
        %3467 = vmatprep.subr.mxu0 %v2926
        %3468 = vmatpush1.msra.mxu0 %v2925
        %3469 = vmatprep.subr.mxu0 %v2934
        %3470 = vmatpush1.msra.mxu0 %v2933
        %3471 = vmatprep.subr.mxu0 %v2942
        %3472 = vmatpush1.msra.mxu0 %v2941
        %3473 = vmatprep.subr.mxu0 %v2950
        %3474 = vmatpush1.msra.mxu0 %v2949
        %3475 = vmatprep.subr.mxu0 %v2958
        %3476 = vmatpush1.msra.mxu0 %v2957
        %3477 = vmatprep.subr.mxu0 %v2966
        %3478 = vmatpush1.msra.mxu0 %v2965
        %3479 = vmatprep.subr.mxu0 %v2974
        %3480 = vmatpush1.msra.mxu0 %v2973
        %3481 = vmatprep.subr.mxu0 %v2982
        %3482 = vmatpush1.msra.mxu0 %v2981
        %3483 = vmatprep.subr.mxu0 %v2990
        %3484 = vmatpush1.msra.mxu0 %v2989
        %3485 = vmatprep.subr.mxu0 %v2998
        %3486 = vmatpush1.msra.mxu0 %v2997
        %3487 = vmatprep.subr.mxu0 %v3006
        %3488 = vmatpush1.msra.mxu0 %v3005
        %3489 = vmatprep.subr.mxu0 %v3014
        %3490 = vmatpush1.msra.mxu0 %v3013
        %3491 = vmatprep.mubr.f32.mxu0 %v3282
        %3492 = vmatmul.mubr.f32.gmra.mrb[0].mxu0 %v3281
        %v3493 = vpop.f32.mrb[0].mxu0
        %v3494 = vadd.f32 0.0, %v3493
        %v3495 = vpop.f32.mrb[0].mxu0
        %v3496 = vadd.f32 0.0, %v3495
        %3497 = vdwg.mxu0
        %3498 = vmatprep.subr.mxu0 %v2768
        %3499 = vmatpush1.msra.mxu0 %v2767
        %3500 = vmatprep.subr.mxu0 %v2776
        %3501 = vmatpush1.msra.mxu0 %v2775
        %3502 = vmatprep.subr.mxu0 %v2784
        %3503 = vmatpush1.msra.mxu0 %v2783
        %3504 = vmatprep.subr.mxu0 %v2792
        %3505 = vmatpush1.msra.mxu0 %v2791
        %3506 = vmatprep.subr.mxu0 %v2800
        %3507 = vmatpush1.msra.mxu0 %v2799
        %3508 = vmatprep.subr.mxu0 %v2808
        %3509 = vmatpush1.msra.mxu0 %v2807
        %3510 = vmatprep.subr.mxu0 %v2816
        %3511 = vmatpush1.msra.mxu0 %v2815
        %3512 = vmatprep.subr.mxu0 %v2824
        %3513 = vmatpush1.msra.mxu0 %v2823
        %3514 = vmatprep.subr.mxu0 %v2832
        %3515 = vmatpush1.msra.mxu0 %v2831
        %3516 = vmatprep.subr.mxu0 %v2840
        %3517 = vmatpush1.msra.mxu0 %v2839
        %3518 = vmatprep.subr.mxu0 %v2848
        %3519 = vmatpush1.msra.mxu0 %v2847
        %3520 = vmatprep.subr.mxu0 %v2856
        %3521 = vmatpush1.msra.mxu0 %v2855
        %3522 = vmatprep.subr.mxu0 %v2864
        %3523 = vmatpush1.msra.mxu0 %v2863
        %3524 = vmatprep.subr.mxu0 %v2872
        %3525 = vmatpush1.msra.mxu0 %v2871
        %3526 = vmatprep.subr.mxu0 %v2880
        %3527 = vmatpush1.msra.mxu0 %v2879
        %3528 = vmatprep.subr.mxu0 %v2888
        %3529 = vmatpush1.msra.mxu0 %v2887
        %3530 = vmatprep.subr.mxu0 %v2896
        %3531 = vmatpush1.msra.mxu0 %v2895
        %3532 = vmatprep.subr.mxu0 %v2904
        %3533 = vmatpush1.msra.mxu0 %v2903
        %3534 = vmatprep.subr.mxu0 %v2912
        %3535 = vmatpush1.msra.mxu0 %v2911
        %3536 = vmatprep.subr.mxu0 %v2920
        %3537 = vmatpush1.msra.mxu0 %v2919
        %3538 = vmatprep.subr.mxu0 %v2928
        %3539 = vmatpush1.msra.mxu0 %v2927
        %3540 = vmatprep.subr.mxu0 %v2936
        %3541 = vmatpush1.msra.mxu0 %v2935
        %3542 = vmatprep.subr.mxu0 %v2944
        %3543 = vmatpush1.msra.mxu0 %v2943
        %3544 = vmatprep.subr.mxu0 %v2952
        %3545 = vmatpush1.msra.mxu0 %v2951
        %3546 = vmatprep.subr.mxu0 %v2960
        %3547 = vmatpush1.msra.mxu0 %v2959
        %3548 = vmatprep.subr.mxu0 %v2968
        %3549 = vmatpush1.msra.mxu0 %v2967
        %3550 = vmatprep.subr.mxu0 %v2976
        %3551 = vmatpush1.msra.mxu0 %v2975
        %3552 = vmatprep.subr.mxu0 %v2984
        %3553 = vmatpush1.msra.mxu0 %v2983
        %3554 = vmatprep.subr.mxu0 %v2992
        %3555 = vmatpush1.msra.mxu0 %v2991
        %3556 = vmatprep.subr.mxu0 %v3000
        %3557 = vmatpush1.msra.mxu0 %v2999
        %3558 = vmatprep.subr.mxu0 %v3008
        %3559 = vmatpush1.msra.mxu0 %v3007
        %3560 = vmatprep.subr.mxu0 %v3016
        %3561 = vmatpush1.msra.mxu0 %v3015
        %3562 = vmatprep.mubr.f32.mxu0 %v3282
        %3563 = vmatmul.mubr.f32.gmra.mrb[0].mxu0 %v3281
        %v3564 = vpop.f32.mrb[0].mxu0
        %v3565 = vadd.f32 0.0, %v3564
        %v3566 = vpop.f32.mrb[0].mxu0
        %v3567 = vadd.f32 0.0, %v3566
        %3568 = vdwg.mxu0
        %v3577 = vcombine.low %v3352, %v3354
        %v3578 = vcombine.low %v3423, %v3425
        %v3580 = vunpack.c.l.s4 1983009808
        %v3581 = vunpack.c.0.s8 %v3580
        %v3582 = vlaneseq
        %v3583 = vshrl.u32 %v3582, 7
        %v3584 = vsub.s32 %v3581, %v3583
        %v3585 = vrot.slane %v3577, %v3584
        %v3587 = vunpack.c.l.s4 1983009808
        %v3588 = vunpack.c.0.s8 %v3587
        %v3589 = vlaneseq
        %v3590 = vshrl.u32 %v3589, 7
        %v3591 = vsub.s32 %v3588, %v3590
        %v3592 = vrot.slane %v3578, %v3591
        %v3593 = vcombine.low %v3585, %v3592
        %v3594 = vcombine.low %v3494, %v3496
        %v3595 = vcombine.low %v3565, %v3567
        %v3597 = vunpack.c.l.s4 1983009808
        %v3598 = vunpack.c.0.s8 %v3597
        %v3599 = vlaneseq
        %v3600 = vshrl.u32 %v3599, 7
        %v3601 = vsub.s32 %v3598, %v3600
        %v3602 = vrot.slane %v3594, %v3601
        %v3604 = vunpack.c.l.s4 1983009808
        %v3605 = vunpack.c.0.s8 %v3604
        %v3606 = vlaneseq
        %v3607 = vshrl.u32 %v3606, 7
        %v3608 = vsub.s32 %v3605, %v3607
        %v3609 = vrot.slane %v3595, %v3608
        %v3610 = vcombine.low %v3602, %v3609
        %3613 = vst [vmem:[%s275] sm:$0xff] %v3593
        %3614 = vst [vmem:[%s275 + $0x8] sm:$0xff] %v3610
        %v3615 = vld [vmem:[%s4] sm:$0xff]
        %v3616 = vld [vmem:[%s4 + $0x8] sm:$0xff]
        %3617 = vmatprep.subr.mxu0 %v3018
        %3618 = vmatpush1.msra.mxu0 %v3017
        %3619 = vmatprep.subr.mxu0 %v3026
        %3620 = vmatpush1.msra.mxu0 %v3025
        %3621 = vmatprep.subr.mxu0 %v3034
        %3622 = vmatpush1.msra.mxu0 %v3033
        %3623 = vmatprep.subr.mxu0 %v3042
        %3624 = vmatpush1.msra.mxu0 %v3041
        %3625 = vmatprep.subr.mxu0 %v3050
        %3626 = vmatpush1.msra.mxu0 %v3049
        %3627 = vmatprep.subr.mxu0 %v3058
        %3628 = vmatpush1.msra.mxu0 %v3057
        %3629 = vmatprep.subr.mxu0 %v3066
        %3630 = vmatpush1.msra.mxu0 %v3065
        %3631 = vmatprep.subr.mxu0 %v3074
        %3632 = vmatpush1.msra.mxu0 %v3073
        %3633 = vmatprep.subr.mxu0 %v3082
        %3634 = vmatpush1.msra.mxu0 %v3081
        %3635 = vmatprep.subr.mxu0 %v3090
        %3636 = vmatpush1.msra.mxu0 %v3089
        %3637 = vmatprep.subr.mxu0 %v3098
        %3638 = vmatpush1.msra.mxu0 %v3097
        %3639 = vmatprep.subr.mxu0 %v3106
        %3640 = vmatpush1.msra.mxu0 %v3105
        %3641 = vmatprep.subr.mxu0 %v3114
        %3642 = vmatpush1.msra.mxu0 %v3113
        %3643 = vmatprep.subr.mxu0 %v3122
        %3644 = vmatpush1.msra.mxu0 %v3121
        %3645 = vmatprep.subr.mxu0 %v3130
        %3646 = vmatpush1.msra.mxu0 %v3129
        %3647 = vmatprep.subr.mxu0 %v3138
        %3648 = vmatpush1.msra.mxu0 %v3137
        %3649 = vmatprep.subr.mxu0 %v3146
        %3650 = vmatpush1.msra.mxu0 %v3145
        %3651 = vmatprep.subr.mxu0 %v3154
        %3652 = vmatpush1.msra.mxu0 %v3153
        %3653 = vmatprep.subr.mxu0 %v3162
        %3654 = vmatpush1.msra.mxu0 %v3161
        %3655 = vmatprep.subr.mxu0 %v3170
        %3656 = vmatpush1.msra.mxu0 %v3169
        %3657 = vmatprep.subr.mxu0 %v3178
        %3658 = vmatpush1.msra.mxu0 %v3177
        %3659 = vmatprep.subr.mxu0 %v3186
        %3660 = vmatpush1.msra.mxu0 %v3185
        %3661 = vmatprep.subr.mxu0 %v3194
        %3662 = vmatpush1.msra.mxu0 %v3193
        %3663 = vmatprep.subr.mxu0 %v3202
        %3664 = vmatpush1.msra.mxu0 %v3201
        %3665 = vmatprep.subr.mxu0 %v3210
        %3666 = vmatpush1.msra.mxu0 %v3209
        %3667 = vmatprep.subr.mxu0 %v3218
        %3668 = vmatpush1.msra.mxu0 %v3217
        %3669 = vmatprep.subr.mxu0 %v3226
        %3670 = vmatpush1.msra.mxu0 %v3225
        %3671 = vmatprep.subr.mxu0 %v3234
        %3672 = vmatpush1.msra.mxu0 %v3233
        %3673 = vmatprep.subr.mxu0 %v3242
        %3674 = vmatpush1.msra.mxu0 %v3241
        %3675 = vmatprep.subr.mxu0 %v3250
        %3676 = vmatpush1.msra.mxu0 %v3249
        %3677 = vmatprep.subr.mxu0 %v3258
        %3678 = vmatpush1.msra.mxu0 %v3257
        %3679 = vmatprep.subr.mxu0 %v3266
        %3680 = vmatpush1.msra.mxu0 %v3265
        %3681 = vmatprep.mubr.f32.mxu0 %v3616
        %3682 = vmatmul.mubr.f32.gmra.mrb[0].mxu0 %v3615
        %v3683 = vpop.f32.mrb[0].mxu0
        %v3684 = vadd.f32 0.0, %v3683
        %v3685 = vpop.f32.mrb[0].mxu0
        %v3686 = vadd.f32 0.0, %v3685
        %3687 = vdwg.mxu0
        %3688 = vmatprep.subr.mxu0 %v3020
        %3689 = vmatpush1.msra.mxu0 %v3019
        %3690 = vmatprep.subr.mxu0 %v3028
        %3691 = vmatpush1.msra.mxu0 %v3027
        %3692 = vmatprep.subr.mxu0 %v3036
        %3693 = vmatpush1.msra.mxu0 %v3035
        %3694 = vmatprep.subr.mxu0 %v3044
        %3695 = vmatpush1.msra.mxu0 %v3043
        %3696 = vmatprep.subr.mxu0 %v3052
        %3697 = vmatpush1.msra.mxu0 %v3051
        %3698 = vmatprep.subr.mxu0 %v3060
        %3699 = vmatpush1.msra.mxu0 %v3059
        %3700 = vmatprep.subr.mxu0 %v3068
        %3701 = vmatpush1.msra.mxu0 %v3067
        %3702 = vmatprep.subr.mxu0 %v3076
        %3703 = vmatpush1.msra.mxu0 %v3075
        %3704 = vmatprep.subr.mxu0 %v3084
        %3705 = vmatpush1.msra.mxu0 %v3083
        %3706 = vmatprep.subr.mxu0 %v3092
        %3707 = vmatpush1.msra.mxu0 %v3091
        %3708 = vmatprep.subr.mxu0 %v3100
        %3709 = vmatpush1.msra.mxu0 %v3099
        %3710 = vmatprep.subr.mxu0 %v3108
        %3711 = vmatpush1.msra.mxu0 %v3107
        %3712 = vmatprep.subr.mxu0 %v3116
        %3713 = vmatpush1.msra.mxu0 %v3115
        %3714 = vmatprep.subr.mxu0 %v3124
        %3715 = vmatpush1.msra.mxu0 %v3123
        %3716 = vmatprep.subr.mxu0 %v3132
        %3717 = vmatpush1.msra.mxu0 %v3131
        %3718 = vmatprep.subr.mxu0 %v3140
        %3719 = vmatpush1.msra.mxu0 %v3139
        %3720 = vmatprep.subr.mxu0 %v3148
        %3721 = vmatpush1.msra.mxu0 %v3147
        %3722 = vmatprep.subr.mxu0 %v3156
        %3723 = vmatpush1.msra.mxu0 %v3155
        %3724 = vmatprep.subr.mxu0 %v3164
        %3725 = vmatpush1.msra.mxu0 %v3163
        %3726 = vmatprep.subr.mxu0 %v3172
        %3727 = vmatpush1.msra.mxu0 %v3171
        %3728 = vmatprep.subr.mxu0 %v3180
        %3729 = vmatpush1.msra.mxu0 %v3179
        %3730 = vmatprep.subr.mxu0 %v3188
        %3731 = vmatpush1.msra.mxu0 %v3187
        %3732 = vmatprep.subr.mxu0 %v3196
        %3733 = vmatpush1.msra.mxu0 %v3195
        %3734 = vmatprep.subr.mxu0 %v3204
        %3735 = vmatpush1.msra.mxu0 %v3203
        %3736 = vmatprep.subr.mxu0 %v3212
        %3737 = vmatpush1.msra.mxu0 %v3211
        %3738 = vmatprep.subr.mxu0 %v3220
        %3739 = vmatpush1.msra.mxu0 %v3219
        %3740 = vmatprep.subr.mxu0 %v3228
        %3741 = vmatpush1.msra.mxu0 %v3227
        %3742 = vmatprep.subr.mxu0 %v3236
        %3743 = vmatpush1.msra.mxu0 %v3235
        %3744 = vmatprep.subr.mxu0 %v3244
        %3745 = vmatpush1.msra.mxu0 %v3243
        %3746 = vmatprep.subr.mxu0 %v3252
        %3747 = vmatpush1.msra.mxu0 %v3251
        %3748 = vmatprep.subr.mxu0 %v3260
        %3749 = vmatpush1.msra.mxu0 %v3259
        %3750 = vmatprep.subr.mxu0 %v3268
        %3751 = vmatpush1.msra.mxu0 %v3267
        %3752 = vmatprep.mubr.f32.mxu0 %v3616
        %3753 = vmatmul.mubr.f32.gmra.mrb[0].mxu0 %v3615
        %v3754 = vpop.f32.mrb[0].mxu0
        %v3755 = vadd.f32 0.0, %v3754
        %v3756 = vpop.f32.mrb[0].mxu0
        %v3757 = vadd.f32 0.0, %v3756
        %3758 = vdwg.mxu0
        %3759 = vmatprep.subr.mxu0 %v3022
        %3760 = vmatpush1.msra.mxu0 %v3021
        %3761 = vmatprep.subr.mxu0 %v3030
        %3762 = vmatpush1.msra.mxu0 %v3029
        %3763 = vmatprep.subr.mxu0 %v3038
        %3764 = vmatpush1.msra.mxu0 %v3037
        %3765 = vmatprep.subr.mxu0 %v3046
        %3766 = vmatpush1.msra.mxu0 %v3045
        %3767 = vmatprep.subr.mxu0 %v3054
        %3768 = vmatpush1.msra.mxu0 %v3053
        %3769 = vmatprep.subr.mxu0 %v3062
        %3770 = vmatpush1.msra.mxu0 %v3061
        %3771 = vmatprep.subr.mxu0 %v3070
        %3772 = vmatpush1.msra.mxu0 %v3069
        %3773 = vmatprep.subr.mxu0 %v3078
        %3774 = vmatpush1.msra.mxu0 %v3077
        %3775 = vmatprep.subr.mxu0 %v3086
        %3776 = vmatpush1.msra.mxu0 %v3085
        %3777 = vmatprep.subr.mxu0 %v3094
        %3778 = vmatpush1.msra.mxu0 %v3093
        %3779 = vmatprep.subr.mxu0 %v3102
        %3780 = vmatpush1.msra.mxu0 %v3101
        %3781 = vmatprep.subr.mxu0 %v3110
        %3782 = vmatpush1.msra.mxu0 %v3109
        %3783 = vmatprep.subr.mxu0 %v3118
        %3784 = vmatpush1.msra.mxu0 %v3117
        %3785 = vmatprep.subr.mxu0 %v3126
        %3786 = vmatpush1.msra.mxu0 %v3125
        %3787 = vmatprep.subr.mxu0 %v3134
        %3788 = vmatpush1.msra.mxu0 %v3133
        %3789 = vmatprep.subr.mxu0 %v3142
        %3790 = vmatpush1.msra.mxu0 %v3141
        %3791 = vmatprep.subr.mxu0 %v3150
        %3792 = vmatpush1.msra.mxu0 %v3149
        %3793 = vmatprep.subr.mxu0 %v3158
        %3794 = vmatpush1.msra.mxu0 %v3157
        %3795 = vmatprep.subr.mxu0 %v3166
        %3796 = vmatpush1.msra.mxu0 %v3165
        %3797 = vmatprep.subr.mxu0 %v3174
        %3798 = vmatpush1.msra.mxu0 %v3173
        %3799 = vmatprep.subr.mxu0 %v3182
        %3800 = vmatpush1.msra.mxu0 %v3181
        %3801 = vmatprep.subr.mxu0 %v3190
        %3802 = vmatpush1.msra.mxu0 %v3189
        %3803 = vmatprep.subr.mxu0 %v3198
        %3804 = vmatpush1.msra.mxu0 %v3197
        %3805 = vmatprep.subr.mxu0 %v3206
        %3806 = vmatpush1.msra.mxu0 %v3205
        %3807 = vmatprep.subr.mxu0 %v3214
        %3808 = vmatpush1.msra.mxu0 %v3213
        %3809 = vmatprep.subr.mxu0 %v3222
        %3810 = vmatpush1.msra.mxu0 %v3221
        %3811 = vmatprep.subr.mxu0 %v3230
        %3812 = vmatpush1.msra.mxu0 %v3229
        %3813 = vmatprep.subr.mxu0 %v3238
        %3814 = vmatpush1.msra.mxu0 %v3237
        %3815 = vmatprep.subr.mxu0 %v3246
        %3816 = vmatpush1.msra.mxu0 %v3245
        %3817 = vmatprep.subr.mxu0 %v3254
        %3818 = vmatpush1.msra.mxu0 %v3253
        %3819 = vmatprep.subr.mxu0 %v3262
        %3820 = vmatpush1.msra.mxu0 %v3261
        %3821 = vmatprep.subr.mxu0 %v3270
        %3822 = vmatpush1.msra.mxu0 %v3269
        %3823 = vmatprep.mubr.f32.mxu0 %v3616
        %3824 = vmatmul.mubr.f32.gmra.mrb[0].mxu0 %v3615
        %v3825 = vpop.f32.mrb[0].mxu0
        %v3826 = vadd.f32 0.0, %v3825
        %v3827 = vpop.f32.mrb[0].mxu0
        %v3828 = vadd.f32 0.0, %v3827
        %3829 = vdwg.mxu0
        %3830 = vmatprep.subr.mxu0 %v3024
        %3831 = vmatpush1.msra.mxu0 %v3023
        %3832 = vmatprep.subr.mxu0 %v3032
        %3833 = vmatpush1.msra.mxu0 %v3031
        %3834 = vmatprep.subr.mxu0 %v3040
        %3835 = vmatpush1.msra.mxu0 %v3039
        %3836 = vmatprep.subr.mxu0 %v3048
        %3837 = vmatpush1.msra.mxu0 %v3047
        %3838 = vmatprep.subr.mxu0 %v3056
        %3839 = vmatpush1.msra.mxu0 %v3055
        %3840 = vmatprep.subr.mxu0 %v3064
        %3841 = vmatpush1.msra.mxu0 %v3063
        %3842 = vmatprep.subr.mxu0 %v3072
        %3843 = vmatpush1.msra.mxu0 %v3071
        %3844 = vmatprep.subr.mxu0 %v3080
        %3845 = vmatpush1.msra.mxu0 %v3079
        %3846 = vmatprep.subr.mxu0 %v3088
        %3847 = vmatpush1.msra.mxu0 %v3087
        %3848 = vmatprep.subr.mxu0 %v3096
        %3849 = vmatpush1.msra.mxu0 %v3095
        %3850 = vmatprep.subr.mxu0 %v3104
        %3851 = vmatpush1.msra.mxu0 %v3103
        %3852 = vmatprep.subr.mxu0 %v3112
        %3853 = vmatpush1.msra.mxu0 %v3111
        %3854 = vmatprep.subr.mxu0 %v3120
        %3855 = vmatpush1.msra.mxu0 %v3119
        %3856 = vmatprep.subr.mxu0 %v3128
        %3857 = vmatpush1.msra.mxu0 %v3127
        %3858 = vmatprep.subr.mxu0 %v3136
        %3859 = vmatpush1.msra.mxu0 %v3135
        %3860 = vmatprep.subr.mxu0 %v3144
        %3861 = vmatpush1.msra.mxu0 %v3143
        %3862 = vmatprep.subr.mxu0 %v3152
        %3863 = vmatpush1.msra.mxu0 %v3151
        %3864 = vmatprep.subr.mxu0 %v3160
        %3865 = vmatpush1.msra.mxu0 %v3159
        %3866 = vmatprep.subr.mxu0 %v3168
        %3867 = vmatpush1.msra.mxu0 %v3167
        %3868 = vmatprep.subr.mxu0 %v3176
        %3869 = vmatpush1.msra.mxu0 %v3175
        %3870 = vmatprep.subr.mxu0 %v3184
        %3871 = vmatpush1.msra.mxu0 %v3183
        %3872 = vmatprep.subr.mxu0 %v3192
        %3873 = vmatpush1.msra.mxu0 %v3191
        %3874 = vmatprep.subr.mxu0 %v3200
        %3875 = vmatpush1.msra.mxu0 %v3199
        %3876 = vmatprep.subr.mxu0 %v3208
        %3877 = vmatpush1.msra.mxu0 %v3207
        %3878 = vmatprep.subr.mxu0 %v3216
        %3879 = vmatpush1.msra.mxu0 %v3215
        %3880 = vmatprep.subr.mxu0 %v3224
        %3881 = vmatpush1.msra.mxu0 %v3223
        %3882 = vmatprep.subr.mxu0 %v3232
        %3883 = vmatpush1.msra.mxu0 %v3231
        %3884 = vmatprep.subr.mxu0 %v3240
        %3885 = vmatpush1.msra.mxu0 %v3239
        %3886 = vmatprep.subr.mxu0 %v3248
        %3887 = vmatpush1.msra.mxu0 %v3247
        %3888 = vmatprep.subr.mxu0 %v3256
        %3889 = vmatpush1.msra.mxu0 %v3255
        %3890 = vmatprep.subr.mxu0 %v3264
        %3891 = vmatpush1.msra.mxu0 %v3263
        %3892 = vmatprep.subr.mxu0 %v3272
        %3893 = vmatpush1.msra.mxu0 %v3271
        %3894 = vmatprep.mubr.f32.mxu0 %v3616
        %3895 = vmatmul.mubr.f32.gmra.mrb[0].mxu0 %v3615
        %v3896 = vpop.f32.mrb[0].mxu0
        %v3897 = vadd.f32 0.0, %v3896
        %v3898 = vpop.f32.mrb[0].mxu0
        %v3899 = vadd.f32 0.0, %v3898
        %3900 = vdwg.mxu0
        %3901 = vst [vmem:[%s282] sm:$0xff] %v3684
        %3902 = vst [vmem:[%s282 + $0x8] sm:$0xff] %v3686
        %3903 = vst [vmem:[%s282 + $0x10] sm:$0xff] %v3755
        %3904 = vst [vmem:[%s282 + $0x18] sm:$0xff] %v3757
        %3905 = vst [vmem:[%s282 + $0x20] sm:$0xff] %v3826
        %3906 = vst [vmem:[%s282 + $0x28] sm:$0xff] %v3828
        %3907 = vst [vmem:[%s282 + $0x30] sm:$0xff] %v3897
        %3908 = vst [vmem:[%s282 + $0x38] sm:$0xff] %v3899
        %s3909 = sand.u32 %s158, 1
        %s3910 = scalar_lea.sflag [#allocation3], %s3909
        %s3911 = sand.u32 %s158, 1
        %s3912 = smul.addr %s3911, 16
        %s3913 = scalar_lea.vmem [#allocation2], %s3912
        %s3914 = sand.u32 %s186, 1
        %s3915 = scalar_lea.sflag [#allocation5], %s3914
        %s3916 = sand.u32 %s186, 1
        %s3917 = smul.addr %s3916, 64
        %s3918 = scalar_lea.vmem [#allocation4], %s3917
        // Predicated region
        $region41: #{tpu_custom_call.1} parent=39 // pred_check
          %p3919 = pneg %p168
        $region42: #{tpu_custom_call.1} parent=39 // pred_check_branch
          %3921 = sbr.rel (%p3919) target = $region44
        $region43: #{tpu_custom_call.1} parent=39 // pred_region
          %s3922 = smul.u32 8, %s29
          %s3924 = ssub.s32 256, 256
          %3925 = vsyncadd %s3910, %s3924
          %s3926 = smul.addr %s28, 8
          %s3927 = sadd.s32 %s3922, %s3926
          %s3928 = smul.addr %s3927, 32
          %s3929 = scalar_lea.hbm %s5, %s3928
          %s3931 = sshll.u32 %s3913, 4
          %s3932 = int_to_ptr.vmem [resolvable:$true] %s3931
          %3934 = dma.vmem_to_hbm [thread:$0]  %s3932, 256, %s3929, %s3910
        $region44: #{tpu_custom_call.1} parent=39 // pred_fallthru
          _
        // Predicated region
        $region45: #{tpu_custom_call.1} parent=39 // pred_check
          %p3935 = pneg %p196
        $region46: #{tpu_custom_call.1} parent=39 // pred_check_branch
          %3937 = sbr.rel (%p3935) target = $region48
        $region47: #{tpu_custom_call.1} parent=39 // pred_region
          %s3938 = smul.u32 8, %s29
          %s3940 = ssub.s32 1024, 1024
          %3941 = vsyncadd %s3915, %s3940
          %s3942 = smul.addr %s28, 8
          %s3943 = sadd.s32 %s3938, %s3942
          %s3944 = smul.addr %s3943, 128
          %s3945 = scalar_lea.hbm %s6, %s3944
          %s3947 = sshll.u32 %s3918, 4
          %s3948 = int_to_ptr.vmem [resolvable:$true] %s3947
          %3950 = dma.vmem_to_hbm [thread:$0]  %s3948, 1024, %s3945, %s3915
        $region48: #{tpu_custom_call.1} parent=39 // pred_fallthru
          _
      $region40: #{tpu_custom_call.1} parent=5 // pred_fallthru
        _
      %p3951 = scmp.le.s32.totalorder 2, %s19
      // Predicated region
      $region49: #{tpu_custom_call.1} parent=5 // pred_check
        %p3952 = pneg %p3951
      $region50: #{tpu_custom_call.1} parent=5 // pred_check_branch
        %3954 = sbr.rel (%p3952) target = $region52
      $region51: #{tpu_custom_call.1} parent=5 // pred_region
        %s3955 = ssub.s32 %s19, 2
        // Predicated region
        $region53: #{tpu_custom_call.1} parent=51 // pred_check
          %p3956 = pneg %p174
        $region54: #{tpu_custom_call.1} parent=51 // pred_check_branch
          %3958 = sbr.rel (%p3956) target = $region56
        $region55: #{tpu_custom_call.1} parent=51 // pred_region
          %s3959 = sand.u32 %s159, 1
          %s3960 = scalar_lea.sflag [#allocation3], %s3959
          %s3961 = sand.u32 %s159, 1
          %s3962 = smul.addr %s3961, 16
          %s3963 = scalar_lea.vmem [#allocation2], %s3962
          %3964 = dma.done %s3960, 256
        $region56: #{tpu_custom_call.1} parent=51 // pred_fallthru
          _
        // Predicated region
        $region57: #{tpu_custom_call.1} parent=51 // pred_check
          %p3965 = pneg %p202
        $region58: #{tpu_custom_call.1} parent=51 // pred_check_branch
          %3967 = sbr.rel (%p3965) target = $region60
        $region59: #{tpu_custom_call.1} parent=51 // pred_region
          %s3968 = sand.u32 %s187, 1
          %s3969 = scalar_lea.sflag [#allocation5], %s3968
          %s3970 = sand.u32 %s187, 1
          %s3971 = smul.addr %s3970, 64
          %s3972 = scalar_lea.vmem [#allocation4], %s3971
          %3973 = dma.done %s3969, 1024
        $region60: #{tpu_custom_call.1} parent=51 // pred_fallthru
          _
      $region52: #{tpu_custom_call.1} parent=5 // pred_fallthru
        _
    $region6: #{tpu_custom_call.1} parent=1 // loop_footer
      %s23 = sadd.s32 1, %s19
    $region7: #{tpu_custom_call.1} parent=1 // loop_footer_branch
      %18 = sbr.rel target = $region3
    $region8: #{tpu_custom_call.1} parent=1 // loop_exit
      _
    %3974 = vsyncpa [#allocation3], 1
    %s3975 = scalar_lea.sflag [#allocation3], 1
    %3976 = vsyncpa %s3975, 1
    %3977 = vsyncpa [#allocation5], 1
    %s3978 = scalar_lea.sflag [#allocation5], 1
    %3979 = vsyncpa %s3978, 1

</llo_original>
